<compile_context>
chip_gen: v7x
topology: tpu7x:2x2x1
jax: 0.10.0
libtpu: 0.0.40
codegen_flags: <defaults>
</compile_context>

<pallas_src>
import math

import jax
import jax.numpy as jnp
from jax.experimental import pallas as pl
from jax.experimental.pallas import tpu as pltpu

_VMEM_LIMIT_BYTES = 32 * 1024 * 1024   # v5e scoped default is 16 MiB -> raise.
# The output tile is double-buffered and the elementwise chain keeps a few
# full-tile temporaries live, so budget the tile well below the limit.
_TILE_BUDGET_BYTES = _VMEM_LIMIT_BYTES // 10


def _pe_kernel(pixx_ref, pixy_ref, coef_ref, out_ref):
    """One lane-tile of the flat, channel-first positional encoding.

    pixx_ref: (1, tile_p)  normalized x coord per flat pixel: 2*(j+0.5)/w - 1
    pixy_ref: (1, tile_p)  normalized y coord per flat pixel: 2*(i+0.5)/h - 1
    coef_ref: (2F, 3)      per-channel [2*pi*G0, 2*pi*G1, phase]; phase is 0
                           for the sin half and pi/2 for the cos half.
    out_ref : (2F, tile_p) output tile (channels on sublanes, pixels on lanes).
    """
    pixx = pixx_ref[...]            # (1, P)  -> broadcasts over channels
    pixy = pixy_ref[...]
    c = coef_ref[...]               # (2F, 3)
    a_x = c[:, 0:1]                 # (2F, 1) -> broadcasts over pixels
    a_y = c[:, 1:2]
    phase = c[:, 2:3]
    # 2 vmul + 2 vadd per output vreg; a single full-128-lane sin produces
    # both the sin and (phase-shifted) cos halves.
    out_ref[...] = jnp.sin(pixx * a_x + pixy * a_y + phase).astype(out_ref.dtype)


def _is_dual_tensorcore_chip():
    """True on chips with 2 TensorCores per device (v7x); safe fallback False."""
    try:
        kind = (jax.devices()[0].device_kind or "").lower()
    except Exception:
        return False
    return "v7" in kind


def _choose_tile_pixels(total_pix, bytes_per_pix, dual_core):
    """Largest lane-aligned pixel tile that fits the VMEM budget.

    Single-TC chips (v5e/v6e): one largest tile (fewest grid steps).
    Dual-TC chips (v7x): prefer an even number of grid steps so both
    TensorCores stay busy, once the output is big enough to amortize the
    per-step overhead.
    """
    max_pix = max(1, _TILE_BUDGET_BYTES // bytes_per_pix)
    cands = []
    if total_pix <= max_pix:
        cands.append(total_pix)
    # 128-multiple divisors of h*w that fit the budget (lane-dense stores).
    cands += [t for t in range(128, min(total_pix, max_pix) + 1, 128)
              if total_pix % t == 0]
    if not cands:
        # TODO(synk): huge grid with h*w not a multiple of 128 -- no aligned
        # multi-block tiling exists; fall back to one (oversized) block rather
        # than masked ragged tiles.
        return total_pix
    if dual_core and total_pix * bytes_per_pix >= (1 << 19):   # >= 512 KiB out
        even = [t for t in cands if (total_pix // t) % 2 == 0]
        if even:
            return max(even)
    return max(cands)


def position_embedding_random(gaussian_matrix, size, *, tile_pixels=None,
                              out_dtype=jnp.float32):
    """Pallas equivalent of PositionEmbeddingRandom.forward(size).

    gaussian_matrix: (2, F) float32 buffer (the registered gaussian buffer).
    size           : (h, w) grid size.
    Returns (2F, h, w) in `out_dtype` (float32 matches PyTorch).
    """
    h, w = size
    f = gaussian_matrix.shape[1]
    two_f = 2 * f
    total_pix = h * w

    # Per-channel coefficients: proj_c(x, y) = x*(2pi*G0_c) + y*(2pi*G1_c),
    # with the gaussian duplicated so channels [F, 2F) carry a +pi/2 phase
    # (cos via shifted sin).  Exactness of the cos->sin shift is well within
    # the test tolerance for unit-scale gaussians.
    g = gaussian_matrix.astype(jnp.float32)
    two_pi = 2.0 * math.pi
    a_x = two_pi * jnp.concatenate([g[0], g[0]])                # (2F,)
    a_y = two_pi * jnp.concatenate([g[1], g[1]])                # (2F,)
    phase = jnp.concatenate([jnp.zeros((f,), jnp.float32),
                             jnp.full((f,), 0.5 * math.pi, jnp.float32)])
    coef = jnp.stack([a_x, a_y, phase], axis=1)                 # (2F, 3)

    # Per-pixel normalized coordinates, flattened row-major (p = i*w + j).
    jj = jnp.tile(jnp.arange(w, dtype=jnp.float32), h)
    ii = jnp.repeat(jnp.arange(h, dtype=jnp.float32), w)
    pixx = (2.0 * (jj + 0.5) / w - 1.0).reshape(1, total_pix)
    pixy = (2.0 * (ii + 0.5) / h - 1.0).reshape(1, total_pix)

    bytes_per_pix = two_f * jnp.dtype(out_dtype).itemsize
    if tile_pixels is None:
        tile_pixels = _choose_tile_pixels(total_pix, bytes_per_pix,
                                          _is_dual_tensorcore_chip())
    assert total_pix % tile_pixels == 0, "tile_pixels must divide h*w"
    assert tile_pixels == total_pix or tile_pixels % 128 == 0, (
        "tile_pixels must be lane-aligned (multiple of 128) or cover h*w")

    out_flat = pl.pallas_call(
        _pe_kernel,
        out_shape=jax.ShapeDtypeStruct((two_f, total_pix), out_dtype),
        grid_spec=pltpu.PrefetchScalarGridSpec(
            num_scalar_prefetch=0,
            grid=(total_pix // tile_pixels,),
            in_specs=[
                pl.BlockSpec((1, tile_pixels), lambda i: (0, i)),
                pl.BlockSpec((1, tile_pixels), lambda i: (0, i)),
                pl.BlockSpec((two_f, 3), lambda i: (0, 0)),
            ],
            out_specs=pl.BlockSpec((two_f, tile_pixels), lambda i: (0, i)),
        ),
        compiler_params=pltpu.CompilerParams(
            dimension_semantics=("parallel",),
            vmem_limit_bytes=_VMEM_LIMIT_BYTES),
    )(pixx, pixy, coef)

    # Row-major split of the flat pixel axis: a free, metadata-only reshape
    # (no transpose, no extra HBM round trip).
    return out_flat.reshape(two_f, h, w)


def _reference(gaussian_matrix, size):
    """Pure-JAX reference mirroring the PyTorch code path."""
    h, w = size
    grid = jnp.ones((h, w), dtype=jnp.float32)
    y_embed = (jnp.cumsum(grid, axis=0) - 0.5) / h
    x_embed = (jnp.cumsum(grid, axis=1) - 0.5) / w
    coords = jnp.stack([x_embed, y_embed], axis=-1)        # (h, w, 2)
    coords = 2.0 * coords - 1.0
    coords = coords @ gaussian_matrix                      # (h, w, F)
    coords = 2.0 * jnp.pi * coords
    pe = jnp.concatenate([jnp.sin(coords), jnp.cos(coords)], axis=-1)
    return jnp.transpose(pe, (2, 0, 1))                    # (2F, h, w)


# TODO(synk): forward_with_coords (per-point encoding) is a tiny (N, 2) @ (2, F)
# op and is not kernelized here; forward(size) is the spec'd path.


if __name__ == "__main__":
    num_pos_feats = 64
    scale = 1.0          # PyTorch: scale=None -> 1.0

    key = jax.random.PRNGKey(0)
    # deterministic stand-in for `scale * torch.randn((2, num_pos_feats))`
    gaussian = scale * jax.random.normal(key, (2, num_pos_feats),
                                         dtype=jnp.float32)

    # channel-first PyTorch layout, several grid sizes (incl. one whose pixel
    # count is not a multiple of 128 -> single masked-tail block).
    for (hh, ww) in [(16, 16), (64, 64), (10, 12)]:
        pe = jax.block_until_ready(position_embedding_random(gaussian, (hh, ww)))
        ref = _reference(gaussian, (hh, ww))
        assert pe.shape == (2 * num_pos_feats, hh, ww)
        assert pe.dtype == jnp.float32
        assert jnp.allclose(pe, ref, atol=1e-4, rtol=1e-5), (hh, ww)

    # multi-step grid path (lane-aligned 1024-pixel tiles over a 64x64 grid).
    pe_tiled = jax.block_until_ready(
        position_embedding_random(gaussian, (64, 64), tile_pixels=1024))
    assert jnp.allclose(pe_tiled, _reference(gaussian, (64, 64)),
                        atol=1e-4, rtol=1e-5)

    # optional bf16 store path (compute f32, cast at the store).
    pe_bf16 = jax.block_until_ready(
        position_embedding_random(gaussian, (32, 32), out_dtype=jnp.bfloat16))
    assert pe_bf16.dtype == jnp.bfloat16
    assert jnp.allclose(pe_bf16.astype(jnp.float32),
                        _reference(gaussian, (32, 32)), atol=2e-2, rtol=0.0)

    print("KERNEL_OK")
</pallas_src>

<mosaic_0001>
module attributes {stable_mosaic.version = 11 : i64} {
  func.func @_pe_kernel(%arg0: i32, %arg1: memref<1x256xf32, #tpu.memory_space<vmem>>, %arg2: memref<1x256xf32, #tpu.memory_space<vmem>>, %arg3: memref<128x3xf32, #tpu.memory_space<vmem>>, %arg4: memref<128x256xf32, #tpu.memory_space<vmem>>) attributes {dimension_semantics = [#tpu.dimension_semantics<parallel>], iteration_bounds = array<i64: 1>, scalar_prefetch = 0 : i64, scratch_operands = 0 : i64, tpu.core_type = #tpu.core_type<tc>, window_params = [{transform_indices = @transform_0, window_bounds = array<i64: 1, 256>}, {transform_indices = @transform_1, window_bounds = array<i64: 1, 256>}, {pipeline_mode = #tpu.pipeline_mode<synchronous>, transform_indices = @transform_2, window_bounds = array<i64: 128, 3>}, {transform_indices = @transform_3, window_bounds = array<i64: 128, 256>}]} {
    %c0 = arith.constant 0 : index
    %c0_0 = arith.constant 0 : index
    %0 = vector.load %arg1[%c0, %c0_0] : memref<1x256xf32, #tpu.memory_space<vmem>>, vector<1x256xf32>
    %c0_1 = arith.constant 0 : index
    %c0_2 = arith.constant 0 : index
    %1 = vector.load %arg2[%c0_1, %c0_2] : memref<1x256xf32, #tpu.memory_space<vmem>>, vector<1x256xf32>
    %c0_3 = arith.constant 0 : index
    %c0_4 = arith.constant 0 : index
    %2 = vector.load %arg3[%c0_3, %c0_4] : memref<128x3xf32, #tpu.memory_space<vmem>>, vector<128x3xf32>
    %3 = vector.extract_strided_slice %2 {offsets = [0, 0], sizes = [128, 1], strides = [1, 1]} : vector<128x3xf32> to vector<128x1xf32>
    %4 = vector.extract_strided_slice %2 {offsets = [0, 1], sizes = [128, 1], strides = [1, 1]} : vector<128x3xf32> to vector<128x1xf32>
    %5 = vector.extract_strided_slice %2 {offsets = [0, 2], sizes = [128, 1], strides = [1, 1]} : vector<128x3xf32> to vector<128x1xf32>
    %6 = vector.broadcast %0 : vector<1x256xf32> to vector<128x256xf32>
    %7 = vector.broadcast %3 : vector<128x1xf32> to vector<128x256xf32>
    %8 = arith.mulf %6, %7 : vector<128x256xf32>
    %9 = vector.broadcast %1 : vector<1x256xf32> to vector<128x256xf32>
    %10 = vector.broadcast %4 : vector<128x1xf32> to vector<128x256xf32>
    %11 = arith.mulf %9, %10 : vector<128x256xf32>
    %12 = arith.addf %8, %11 : vector<128x256xf32>
    %13 = vector.broadcast %5 : vector<128x1xf32> to vector<128x256xf32>
    %14 = arith.addf %12, %13 : vector<128x256xf32>
    %15 = math.sin %14 : vector<128x256xf32>
    %c0_5 = arith.constant 0 : index
    %c0_6 = arith.constant 0 : index
    %16 = vector.load %arg4[%c0_5, %c0_6] : memref<128x256xf32, #tpu.memory_space<vmem>>, vector<128x256xf32>
    tpu.vector_store %arg4[%c0_5, %c0_6], %15 {strides = array<i32>} : memref<128x256xf32, #tpu.memory_space<vmem>>, vector<128x256xf32>,
    return
  }
  func.func @transform_0(%arg0: i32) -> (i32, i32) {
    %c0_i32 = arith.constant 0 : i32
    %c0_i32_0 = arith.constant 0 : i32
    return %c0_i32, %arg0 : i32, i32
  }
  func.func @transform_1(%arg0: i32) -> (i32, i32) {
    %c0_i32 = arith.constant 0 : i32
    %c0_i32_0 = arith.constant 0 : i32
    return %c0_i32, %arg0 : i32, i32
  }
  func.func @transform_2(%arg0: i32) -> (i32, i32) {
    %c0_i32 = arith.constant 0 : i32
    %c0_i32_0 = arith.constant 0 : i32
    %c0_i32_1 = arith.constant 0 : i32
    return %c0_i32, %c0_i32_0 : i32, i32
  }
  func.func @transform_3(%arg0: i32) -> (i32, i32) {
    %c0_i32 = arith.constant 0 : i32
    %c0_i32_0 = arith.constant 0 : i32
    return %c0_i32, %arg0 : i32, i32
  }
}

</mosaic_0001>

<llo_original>
// kernel: tpu_custom_call.1
$region0: #{tpu_custom_call.1}
  #allocation0 [shape = 'u32[]', space=smem, size = 0x4, offset = 0x4, fixed_abs, tag = 'smem constant byte address 0x4 - core index']
  #allocation1 [shape = 'u32[144,128]{1,0:T(1,128)}', space=vmem, size = 0x12000, scoped, tag = 'internal scratch']
  %s0 = inlined_call_operand.vmem [shape: f32[1,256], index: 0, kind: input, shape index: {}]
  %s1 = inlined_call_operand.vmem [shape: f32[1,256], index: 1, kind: input, shape index: {}]
  %s2 = inlined_call_operand.vmem [shape: f32[128,3], index: 2, kind: input, shape index: {}]
  %s3 = inlined_call_operand.hbm [shape: f32[128,256], index: 3, kind: output, shape index: {}]
  %s4 = sld [smem:[#allocation0]]
  $region22: #{tpu_custom_call.1} parent=0
    _
  %s6 = ssub.s32 1, %s4
  %s7 = scalar_select 0, %s6, %s4
  $region1: #{tpu_custom_call.1} parent=0
    #allocation2 [shape = 'u8[131072]{0}', space=vmem, size = 0x20000, scoped, tag = 'output window, operand 0, single buffered']
    #allocation3 [shape = 's32[1]{0}', space=sflag, size = 0x4, scoped, tag = 'scoped memory for tpu_custom_call.1']
    %8 = vsyncpa [#allocation3], 0
    // Predicated region
    $region2: #{tpu_custom_call.1} parent=1 // pred_check
      _
    $region3: #{tpu_custom_call.1} parent=1 // pred_check_branch
      %10 = sbr.rel (0) target = $region5
    $region4: #{tpu_custom_call.1} parent=1 // pred_region
      _
    $region5: #{tpu_custom_call.1} parent=1 // pred_fallthru
      _
    // Predicated region
    $region6: #{tpu_custom_call.1} parent=1 // pred_check
      _
    $region7: #{tpu_custom_call.1} parent=1 // pred_check_branch
      %12 = sbr.rel (0) target = $region9
    $region8: #{tpu_custom_call.1} parent=1 // pred_region
      _
    $region9: #{tpu_custom_call.1} parent=1 // pred_fallthru
      _
    // Predicated region
    $region10: #{tpu_custom_call.1} parent=1 // pred_check
      _
    $region11: #{tpu_custom_call.1} parent=1 // pred_check_branch
      %14 = sbr.rel (0) target = $region13
    $region12: #{tpu_custom_call.1} parent=1 // pred_region
      _
    $region13: #{tpu_custom_call.1} parent=1 // pred_fallthru
      _
    %v15 = vld [vmem:[%s0] sm:$0x3]
    %v16 = vld [vmem:[%s1] sm:$0x3]
    %v17 = vld [vmem:[%s2] sm:$0xff]
    %v18 = vld [vmem:[%s2 + $0x8] sm:$0xff]
    %v19 = vld [vmem:[%s2 + $0x10] sm:$0xff]
    %v20 = vld [vmem:[%s2 + $0x18] sm:$0xff]
    %v21 = vld [vmem:[%s2 + $0x20] sm:$0xff]
    %v22 = vld [vmem:[%s2 + $0x28] sm:$0xff]
    %v23 = vld [vmem:[%s2 + $0x30] sm:$0xff]
    %v24 = vld [vmem:[%s2 + $0x38] sm:$0xff]
    %v25 = vld [vmem:[%s2 + $0x40] sm:$0xff]
    %v26 = vld [vmem:[%s2 + $0x48] sm:$0xff]
    %v27 = vld [vmem:[%s2 + $0x50] sm:$0xff]
    %v28 = vld [vmem:[%s2 + $0x58] sm:$0xff]
    %v29 = vld [vmem:[%s2 + $0x60] sm:$0xff]
    %v30 = vld [vmem:[%s2 + $0x68] sm:$0xff]
    %v31 = vld [vmem:[%s2 + $0x70] sm:$0xff]
    %v32 = vld [vmem:[%s2 + $0x78] sm:$0xff]
    %v34 = vlaneseq
    %v35 = vshrl.u32 %v34, 7
    %v36 = vsub.s32 0, %v35
    %v37 = vrot.slane %v15, %v36
    %v38 = vlaneseq
    %v39 = vshrl.u32 %v38, 7
    %v40 = vsub.s32 1, %v39
    %v41 = vrot.slane %v15, %v40
    %45 = vset.pattern.permute.xlu0 0
    %46 = vperm.xlu0 %45, %v17
    %v47 = vpop.permute.xlu0 %46
    %50 = vset.pattern.permute.xlu0 0
    %51 = vperm.xlu0 %50, %v18
    %v52 = vpop.permute.xlu0 %51
    %55 = vset.pattern.permute.xlu0 0
    %56 = vperm.xlu0 %55, %v19
    %v57 = vpop.permute.xlu0 %56
    %60 = vset.pattern.permute.xlu0 0
    %61 = vperm.xlu0 %60, %v20
    %v62 = vpop.permute.xlu0 %61
    %65 = vset.pattern.permute.xlu0 0
    %66 = vperm.xlu0 %65, %v21
    %v67 = vpop.permute.xlu0 %66
    %70 = vset.pattern.permute.xlu0 0
    %71 = vperm.xlu0 %70, %v22
    %v72 = vpop.permute.xlu0 %71
    %75 = vset.pattern.permute.xlu0 0
    %76 = vperm.xlu0 %75, %v23
    %v77 = vpop.permute.xlu0 %76
    %80 = vset.pattern.permute.xlu0 0
    %81 = vperm.xlu0 %80, %v24
    %v82 = vpop.permute.xlu0 %81
    %85 = vset.pattern.permute.xlu0 0
    %86 = vperm.xlu0 %85, %v25
    %v87 = vpop.permute.xlu0 %86
    %90 = vset.pattern.permute.xlu0 0
    %91 = vperm.xlu0 %90, %v26
    %v92 = vpop.permute.xlu0 %91
    %95 = vset.pattern.permute.xlu0 0
    %96 = vperm.xlu0 %95, %v27
    %v97 = vpop.permute.xlu0 %96
    %100 = vset.pattern.permute.xlu0 0
    %101 = vperm.xlu0 %100, %v28
    %v102 = vpop.permute.xlu0 %101
    %105 = vset.pattern.permute.xlu0 0
    %106 = vperm.xlu0 %105, %v29
    %v107 = vpop.permute.xlu0 %106
    %110 = vset.pattern.permute.xlu0 0
    %111 = vperm.xlu0 %110, %v30
    %v112 = vpop.permute.xlu0 %111
    %115 = vset.pattern.permute.xlu0 0
    %116 = vperm.xlu0 %115, %v31
    %v117 = vpop.permute.xlu0 %116
    %120 = vset.pattern.permute.xlu0 0
    %121 = vperm.xlu0 %120, %v32
    %v122 = vpop.permute.xlu0 %121
    %v124 = vmul.f32 %v37, %v47
    %v125 = vmul.f32 %v41, %v47
    %v126 = vmul.f32 %v37, %v52
    %v127 = vmul.f32 %v41, %v52
    %v128 = vmul.f32 %v37, %v57
    %v129 = vmul.f32 %v41, %v57
    %v130 = vmul.f32 %v37, %v62
    %v131 = vmul.f32 %v41, %v62
    %v132 = vmul.f32 %v37, %v67
    %v133 = vmul.f32 %v41, %v67
    %v134 = vmul.f32 %v37, %v72
    %v135 = vmul.f32 %v41, %v72
    %v136 = vmul.f32 %v37, %v77
    %v137 = vmul.f32 %v41, %v77
    %v138 = vmul.f32 %v37, %v82
    %v139 = vmul.f32 %v41, %v82
    %v140 = vmul.f32 %v37, %v87
    %v141 = vmul.f32 %v41, %v87
    %v142 = vmul.f32 %v37, %v92
    %v143 = vmul.f32 %v41, %v92
    %v144 = vmul.f32 %v37, %v97
    %v145 = vmul.f32 %v41, %v97
    %v146 = vmul.f32 %v37, %v102
    %v147 = vmul.f32 %v41, %v102
    %v148 = vmul.f32 %v37, %v107
    %v149 = vmul.f32 %v41, %v107
    %v150 = vmul.f32 %v37, %v112
    %v151 = vmul.f32 %v41, %v112
    %v152 = vmul.f32 %v37, %v117
    %v153 = vmul.f32 %v41, %v117
    %v154 = vmul.f32 %v37, %v122
    %v155 = vmul.f32 %v41, %v122
    %v157 = vlaneseq
    %v158 = vshrl.u32 %v157, 7
    %v159 = vsub.s32 0, %v158
    %v160 = vrot.slane %v16, %v159
    %v161 = vlaneseq
    %v162 = vshrl.u32 %v161, 7
    %v163 = vsub.s32 1, %v162
    %v164 = vrot.slane %v16, %v163
    %167 = vset.pattern.permute.xlu0 1
    %168 = vperm.xlu0 %167, %v17
    %v169 = vpop.permute.xlu0 %168
    %171 = vset.pattern.permute.xlu0 1
    %172 = vperm.xlu0 %171, %v18
    %v173 = vpop.permute.xlu0 %172
    %175 = vset.pattern.permute.xlu0 1
    %176 = vperm.xlu0 %175, %v19
    %v177 = vpop.permute.xlu0 %176
    %179 = vset.pattern.permute.xlu0 1
    %180 = vperm.xlu0 %179, %v20
    %v181 = vpop.permute.xlu0 %180
    %183 = vset.pattern.permute.xlu0 1
    %184 = vperm.xlu0 %183, %v21
    %v185 = vpop.permute.xlu0 %184
    %187 = vset.pattern.permute.xlu0 1
    %188 = vperm.xlu0 %187, %v22
    %v189 = vpop.permute.xlu0 %188
    %191 = vset.pattern.permute.xlu0 1
    %192 = vperm.xlu0 %191, %v23
    %v193 = vpop.permute.xlu0 %192
    %195 = vset.pattern.permute.xlu0 1
    %196 = vperm.xlu0 %195, %v24
    %v197 = vpop.permute.xlu0 %196
    %199 = vset.pattern.permute.xlu0 1
    %200 = vperm.xlu0 %199, %v25
    %v201 = vpop.permute.xlu0 %200
    %203 = vset.pattern.permute.xlu0 1
    %204 = vperm.xlu0 %203, %v26
    %v205 = vpop.permute.xlu0 %204
    %207 = vset.pattern.permute.xlu0 1
    %208 = vperm.xlu0 %207, %v27
    %v209 = vpop.permute.xlu0 %208
    %211 = vset.pattern.permute.xlu0 1
    %212 = vperm.xlu0 %211, %v28
    %v213 = vpop.permute.xlu0 %212
    %215 = vset.pattern.permute.xlu0 1
    %216 = vperm.xlu0 %215, %v29
    %v217 = vpop.permute.xlu0 %216
    %219 = vset.pattern.permute.xlu0 1
    %220 = vperm.xlu0 %219, %v30
    %v221 = vpop.permute.xlu0 %220
    %223 = vset.pattern.permute.xlu0 1
    %224 = vperm.xlu0 %223, %v31
    %v225 = vpop.permute.xlu0 %224
    %227 = vset.pattern.permute.xlu0 1
    %228 = vperm.xlu0 %227, %v32
    %v229 = vpop.permute.xlu0 %228
    %v231 = vmul.f32 %v160, %v169
    %v232 = vmul.f32 %v164, %v169
    %v233 = vmul.f32 %v160, %v173
    %v234 = vmul.f32 %v164, %v173
    %v235 = vmul.f32 %v160, %v177
    %v236 = vmul.f32 %v164, %v177
    %v237 = vmul.f32 %v160, %v181
    %v238 = vmul.f32 %v164, %v181
    %v239 = vmul.f32 %v160, %v185
    %v240 = vmul.f32 %v164, %v185
    %v241 = vmul.f32 %v160, %v189
    %v242 = vmul.f32 %v164, %v189
    %v243 = vmul.f32 %v160, %v193
    %v244 = vmul.f32 %v164, %v193
    %v245 = vmul.f32 %v160, %v197
    %v246 = vmul.f32 %v164, %v197
    %v247 = vmul.f32 %v160, %v201
    %v248 = vmul.f32 %v164, %v201
    %v249 = vmul.f32 %v160, %v205
    %v250 = vmul.f32 %v164, %v205
    %v251 = vmul.f32 %v160, %v209
    %v252 = vmul.f32 %v164, %v209
    %v253 = vmul.f32 %v160, %v213
    %v254 = vmul.f32 %v164, %v213
    %v255 = vmul.f32 %v160, %v217
    %v256 = vmul.f32 %v164, %v217
    %v257 = vmul.f32 %v160, %v221
    %v258 = vmul.f32 %v164, %v221
    %v259 = vmul.f32 %v160, %v225
    %v260 = vmul.f32 %v164, %v225
    %v261 = vmul.f32 %v160, %v229
    %v262 = vmul.f32 %v164, %v229
    %v263 = vadd.f32 %v124, %v231
    %v264 = vadd.f32 %v125, %v232
    %v265 = vadd.f32 %v126, %v233
    %v266 = vadd.f32 %v127, %v234
    %v267 = vadd.f32 %v128, %v235
    %v268 = vadd.f32 %v129, %v236
    %v269 = vadd.f32 %v130, %v237
    %v270 = vadd.f32 %v131, %v238
    %v271 = vadd.f32 %v132, %v239
    %v272 = vadd.f32 %v133, %v240
    %v273 = vadd.f32 %v134, %v241
    %v274 = vadd.f32 %v135, %v242
    %v275 = vadd.f32 %v136, %v243
    %v276 = vadd.f32 %v137, %v244
    %v277 = vadd.f32 %v138, %v245
    %v278 = vadd.f32 %v139, %v246
    %v279 = vadd.f32 %v140, %v247
    %v280 = vadd.f32 %v141, %v248
    %v281 = vadd.f32 %v142, %v249
    %v282 = vadd.f32 %v143, %v250
    %v283 = vadd.f32 %v144, %v251
    %v284 = vadd.f32 %v145, %v252
    %v285 = vadd.f32 %v146, %v253
    %v286 = vadd.f32 %v147, %v254
    %v287 = vadd.f32 %v148, %v255
    %v288 = vadd.f32 %v149, %v256
    %v289 = vadd.f32 %v150, %v257
    %v290 = vadd.f32 %v151, %v258
    %v291 = vadd.f32 %v152, %v259
    %v292 = vadd.f32 %v153, %v260
    %v293 = vadd.f32 %v154, %v261
    %v294 = vadd.f32 %v155, %v262
    %295 = vset.pattern.permute.xlu0 2
    %296 = vperm.xlu0 %295, %v17
    %v297 = vpop.permute.xlu0 %296
    %299 = vset.pattern.permute.xlu0 2
    %300 = vperm.xlu0 %299, %v18
    %v301 = vpop.permute.xlu0 %300
    %303 = vset.pattern.permute.xlu0 2
    %304 = vperm.xlu0 %303, %v19
    %v305 = vpop.permute.xlu0 %304
    %307 = vset.pattern.permute.xlu0 2
    %308 = vperm.xlu0 %307, %v20
    %v309 = vpop.permute.xlu0 %308
    %311 = vset.pattern.permute.xlu0 2
    %312 = vperm.xlu0 %311, %v21
    %v313 = vpop.permute.xlu0 %312
    %315 = vset.pattern.permute.xlu0 2
    %316 = vperm.xlu0 %315, %v22
    %v317 = vpop.permute.xlu0 %316
    %319 = vset.pattern.permute.xlu0 2
    %320 = vperm.xlu0 %319, %v23
    %v321 = vpop.permute.xlu0 %320
    %323 = vset.pattern.permute.xlu0 2
    %324 = vperm.xlu0 %323, %v24
    %v325 = vpop.permute.xlu0 %324
    %327 = vset.pattern.permute.xlu0 2
    %328 = vperm.xlu0 %327, %v25
    %v329 = vpop.permute.xlu0 %328
    %331 = vset.pattern.permute.xlu0 2
    %332 = vperm.xlu0 %331, %v26
    %v333 = vpop.permute.xlu0 %332
    %335 = vset.pattern.permute.xlu0 2
    %336 = vperm.xlu0 %335, %v27
    %v337 = vpop.permute.xlu0 %336
    %339 = vset.pattern.permute.xlu0 2
    %340 = vperm.xlu0 %339, %v28
    %v341 = vpop.permute.xlu0 %340
    %343 = vset.pattern.permute.xlu0 2
    %344 = vperm.xlu0 %343, %v29
    %v345 = vpop.permute.xlu0 %344
    %347 = vset.pattern.permute.xlu0 2
    %348 = vperm.xlu0 %347, %v30
    %v349 = vpop.permute.xlu0 %348
    %351 = vset.pattern.permute.xlu0 2
    %352 = vperm.xlu0 %351, %v31
    %v353 = vpop.permute.xlu0 %352
    %355 = vset.pattern.permute.xlu0 2
    %356 = vperm.xlu0 %355, %v32
    %v357 = vpop.permute.xlu0 %356
    %v359 = vadd.f32 %v263, %v297
    %v360 = vadd.f32 %v264, %v297
    %v361 = vadd.f32 %v265, %v301
    %v362 = vadd.f32 %v266, %v301
    %v363 = vadd.f32 %v267, %v305
    %v364 = vadd.f32 %v268, %v305
    %v365 = vadd.f32 %v269, %v309
    %v366 = vadd.f32 %v270, %v309
    %v367 = vadd.f32 %v271, %v313
    %v368 = vadd.f32 %v272, %v313
    %v369 = vadd.f32 %v273, %v317
    %v370 = vadd.f32 %v274, %v317
    %v371 = vadd.f32 %v275, %v321
    %v372 = vadd.f32 %v276, %v321
    %v373 = vadd.f32 %v277, %v325
    %v374 = vadd.f32 %v278, %v325
    %v375 = vadd.f32 %v279, %v329
    %v376 = vadd.f32 %v280, %v329
    %v377 = vadd.f32 %v281, %v333
    %v378 = vadd.f32 %v282, %v333
    %v379 = vadd.f32 %v283, %v337
    %v380 = vadd.f32 %v284, %v337
    %v381 = vadd.f32 %v285, %v341
    %v382 = vadd.f32 %v286, %v341
    %v383 = vadd.f32 %v287, %v345
    %v384 = vadd.f32 %v288, %v345
    %v385 = vadd.f32 %v289, %v349
    %v386 = vadd.f32 %v290, %v349
    %v387 = vadd.f32 %v291, %v353
    %v388 = vadd.f32 %v292, %v353
    %v389 = vadd.f32 %v293, %v357
    %v390 = vadd.f32 %v294, %v357
    %v391 = vand.u32 2147483647, %v359
    %vm392 = vcmp.le.f32.partialorder %v391, 0.7853982
    %vm393 = vcmp.lt.s32.totalorder %v359, 0
    %v394 = vand.u32 %v359, 2139095040
    %v395 = vshrl.u32 %v394, 23
    %v396 = vsub.s32 %v395, 127
    %v397 = vand.u32 2147483647, %v359
    %v398 = vand.u32 %v397, 8388607
    %v399 = vor.u32 %v398, 8388608
    %v400 = vsub.s32 0, %v399
    %v401 = vadd.s32 %v396, 1
    %vm402 = vcmp.gt.s32.totalorder %v401, 0
    %v403 = vsel %vm402, %v401, 0
    %v404 = vshrl.u32 %v403, 5
    %v405 = vand.u32 %v403, 31
    %v406 = vsub.s32 32, %v405
    %v407 = vshrl.u32 683565275, %v406
    %v408 = vshll.u32 683565275, %v405
    %v409 = vshrl.u32 2475754826, %v406
    %v410 = vor.u32 %v408, %v409
    %v411 = vshll.u32 2475754826, %v405
    %v412 = vshrl.u32 2131351028, %v406
    %v413 = vor.u32 %v411, %v412
    %v414 = vshll.u32 2131351028, %v405
    %v415 = vshrl.u32 2102212464, %v406
    %v416 = vor.u32 %v414, %v415
    %v417 = vshll.u32 2102212464, %v405
    %v418 = vshrl.u32 920167782, %v406
    %v419 = vor.u32 %v417, %v418
    %v420 = vshll.u32 920167782, %v405
    %v421 = vshrl.u32 1326507024, %v406
    %v422 = vor.u32 %v420, %v421
    %vm423 = vcmp.lt.s32.totalorder %v404, 1
    %vm424 = vcmp.lt.s32.totalorder %v404, 2
    %vm425 = vcmp.lt.s32.totalorder %v404, 3
    %vm426 = vcmp.lt.s32.totalorder %v404, 4
    %v427 = vsel %vm423, %v407, %v410
    %v428 = vsel %vm426, %v416, 2102212464
    %v429 = vsel %vm425, %v413, %v428
    %v430 = vsel %vm424, %v427, %v429
    %v431 = vsel %vm423, %v410, %v413
    %v432 = vsel %vm426, %v419, 920167782
    %v433 = vsel %vm425, %v416, %v432
    %v434 = vsel %vm424, %v431, %v433
    %v435 = vsel %vm423, %v413, %v416
    %v436 = vsel %vm426, %v422, 1326507024
    %v437 = vsel %vm425, %v419, %v436
    %v438 = vsel %vm424, %v435, %v437
    %v439 = vshll.u32 %v399, 8
    %v440 = vmul.u32.u64.compose %v439, %v438
    %v441 = vextract.low.u32 %v440
    %v442 = vextract.high.u32 %v440
    %v443 = vmul.u32.u64.compose %v439, %v434
    %v444 = vextract.low.u32 %v443
    %v445 = vextract.high.u32 %v443
    %v446 = vmul.u32 %v439, %v430
    %v447 = vadd.s32 %v442, %v444
    %vm448 = vc.u32 %v442, %v444
    %v449 = vadd.s32 %v445, 1
    %v450 = vsel %vm448, %v449, %v445
    %v451 = vadd.s32 %v446, %v450
    %v452 = vadd.s32 %v451, 536870912
    %v453 = vshrl.u32 %v452, 30
    %v454 = vshll.u32 %v453, 30
    %v455 = vsub.s32 %v451, %v454
    %vm456 = vcmp.lt.s32.totalorder %v455, 0
    %v457 = vsub.s32 0, %v455
    %v458 = vsel %vm456, %v457, %v455
    %v459 = vclz %v458
    %v460 = vsub.s32 %v459, 2
    %vm461 = vcmp.gt.s32.totalorder 0, %v460
    %v462 = vsel %vm461, 0, %v460
    %v463 = vsub.s32 32, %v462
    %v464 = vshll.u32 %v455, %v462
    %v465 = vshrl.u32 %v447, %v463
    %v466 = vor.u32 %v464, %v465
    %v467 = vsub.s32 4294967266, %v462
    %v468 = vadd.s32 %v467, 127
    %v469 = vshll.u32 %v468, 23
    %v470 = vor.u32 4788187, %v469
    %v471 = vand.u32 2147483647, %v470
    %v473 = vcvt.s32.f32 %v466
    %v474 = vmul.f32 %v473, %v471
    %v475 = vxor.u32 %v474, 2147483648
    %v476 = vsel %vm393, %v475, %v474
    %v477 = vsub.s32 4, %v453
    %v478 = vsel %vm393, %v477, %v453
    %v479 = vsel %vm392, %v359, %v476
    %v480 = vsel %vm392, 0, %v478
    %v481 = vcosq.f32.pop %v479
    %v482 = vsinq.f32.pop %v479
    %vm483 = vweird.f32 %v359
    %v484 = vadd.s32 %v480, 3
    %v485 = vand.u32 %v484, 3
    %vm486 = vcmp.lt.s32.totalorder %v485, 2
    %vm487 = vcmp.eq.s32.totalorder %v485, 0
    %v488 = vxor.u32 %v482, 2147483648
    %v489 = vsel %vm487, %v481, %v488
    %vm490 = vcmp.eq.s32.totalorder %v485, 2
    %v491 = vxor.u32 %v481, 2147483648
    %v492 = vsel %vm490, %v491, %v482
    %v493 = vsel %vm486, %v489, %v492
    %v494 = vsel %vm483, nan, %v493
    %v495 = vand.u32 2147483647, %v360
    %vm496 = vcmp.le.f32.partialorder %v495, 0.7853982
    %vm497 = vcmp.lt.s32.totalorder %v360, 0
    %v498 = vand.u32 %v360, 2139095040
    %v499 = vshrl.u32 %v498, 23
    %v500 = vsub.s32 %v499, 127
    %v501 = vand.u32 2147483647, %v360
    %v502 = vand.u32 %v501, 8388607
    %v503 = vor.u32 %v502, 8388608
    %v504 = vsub.s32 0, %v503
    %v505 = vadd.s32 %v500, 1
    %vm506 = vcmp.gt.s32.totalorder %v505, 0
    %v507 = vsel %vm506, %v505, 0
    %v508 = vshrl.u32 %v507, 5
    %v509 = vand.u32 %v507, 31
    %v510 = vsub.s32 32, %v509
    %v511 = vshrl.u32 683565275, %v510
    %v512 = vshll.u32 683565275, %v509
    %v513 = vshrl.u32 2475754826, %v510
    %v514 = vor.u32 %v512, %v513
    %v515 = vshll.u32 2475754826, %v509
    %v516 = vshrl.u32 2131351028, %v510
    %v517 = vor.u32 %v515, %v516
    %v518 = vshll.u32 2131351028, %v509
    %v519 = vshrl.u32 2102212464, %v510
    %v520 = vor.u32 %v518, %v519
    %v521 = vshll.u32 2102212464, %v509
    %v522 = vshrl.u32 920167782, %v510
    %v523 = vor.u32 %v521, %v522
    %v524 = vshll.u32 920167782, %v509
    %v525 = vshrl.u32 1326507024, %v510
    %v526 = vor.u32 %v524, %v525
    %vm527 = vcmp.lt.s32.totalorder %v508, 1
    %vm528 = vcmp.lt.s32.totalorder %v508, 2
    %vm529 = vcmp.lt.s32.totalorder %v508, 3
    %vm530 = vcmp.lt.s32.totalorder %v508, 4
    %v531 = vsel %vm527, %v511, %v514
    %v532 = vsel %vm530, %v520, 2102212464
    %v533 = vsel %vm529, %v517, %v532
    %v534 = vsel %vm528, %v531, %v533
    %v535 = vsel %vm527, %v514, %v517
    %v536 = vsel %vm530, %v523, 920167782
    %v537 = vsel %vm529, %v520, %v536
    %v538 = vsel %vm528, %v535, %v537
    %v539 = vsel %vm527, %v517, %v520
    %v540 = vsel %vm530, %v526, 1326507024
    %v541 = vsel %vm529, %v523, %v540
    %v542 = vsel %vm528, %v539, %v541
    %v543 = vshll.u32 %v503, 8
    %v544 = vmul.u32.u64.compose %v543, %v542
    %v545 = vextract.low.u32 %v544
    %v546 = vextract.high.u32 %v544
    %v547 = vmul.u32.u64.compose %v543, %v538
    %v548 = vextract.low.u32 %v547
    %v549 = vextract.high.u32 %v547
    %v550 = vmul.u32 %v543, %v534
    %v551 = vadd.s32 %v546, %v548
    %vm552 = vc.u32 %v546, %v548
    %v553 = vadd.s32 %v549, 1
    %v554 = vsel %vm552, %v553, %v549
    %v555 = vadd.s32 %v550, %v554
    %v556 = vadd.s32 %v555, 536870912
    %v557 = vshrl.u32 %v556, 30
    %v558 = vshll.u32 %v557, 30
    %v559 = vsub.s32 %v555, %v558
    %vm560 = vcmp.lt.s32.totalorder %v559, 0
    %v561 = vsub.s32 0, %v559
    %v562 = vsel %vm560, %v561, %v559
    %v563 = vclz %v562
    %v564 = vsub.s32 %v563, 2
    %vm565 = vcmp.gt.s32.totalorder 0, %v564
    %v566 = vsel %vm565, 0, %v564
    %v567 = vsub.s32 32, %v566
    %v568 = vshll.u32 %v559, %v566
    %v569 = vshrl.u32 %v551, %v567
    %v570 = vor.u32 %v568, %v569
    %v571 = vsub.s32 4294967266, %v566
    %v572 = vadd.s32 %v571, 127
    %v573 = vshll.u32 %v572, 23
    %v574 = vor.u32 4788187, %v573
    %v575 = vand.u32 2147483647, %v574
    %v577 = vcvt.s32.f32 %v570
    %v578 = vmul.f32 %v577, %v575
    %v579 = vxor.u32 %v578, 2147483648
    %v580 = vsel %vm497, %v579, %v578
    %v581 = vsub.s32 4, %v557
    %v582 = vsel %vm497, %v581, %v557
    %v583 = vsel %vm496, %v360, %v580
    %v584 = vsel %vm496, 0, %v582
    %v585 = vcosq.f32.pop %v583
    %v586 = vsinq.f32.pop %v583
    %vm587 = vweird.f32 %v360
    %v588 = vadd.s32 %v584, 3
    %v589 = vand.u32 %v588, 3
    %vm590 = vcmp.lt.s32.totalorder %v589, 2
    %vm591 = vcmp.eq.s32.totalorder %v589, 0
    %v592 = vxor.u32 %v586, 2147483648
    %v593 = vsel %vm591, %v585, %v592
    %vm594 = vcmp.eq.s32.totalorder %v589, 2
    %v595 = vxor.u32 %v585, 2147483648
    %v596 = vsel %vm594, %v595, %v586
    %v597 = vsel %vm590, %v593, %v596
    %v598 = vsel %vm587, nan, %v597
    %v599 = vand.u32 2147483647, %v361
    %vm600 = vcmp.le.f32.partialorder %v599, 0.7853982
    %vm601 = vcmp.lt.s32.totalorder %v361, 0
    %v602 = vand.u32 %v361, 2139095040
    %v603 = vshrl.u32 %v602, 23
    %v604 = vsub.s32 %v603, 127
    %v605 = vand.u32 2147483647, %v361
    %v606 = vand.u32 %v605, 8388607
    %v607 = vor.u32 %v606, 8388608
    %v608 = vsub.s32 0, %v607
    %v609 = vadd.s32 %v604, 1
    %vm610 = vcmp.gt.s32.totalorder %v609, 0
    %v611 = vsel %vm610, %v609, 0
    %v612 = vshrl.u32 %v611, 5
    %v613 = vand.u32 %v611, 31
    %v614 = vsub.s32 32, %v613
    %v615 = vshrl.u32 683565275, %v614
    %v616 = vshll.u32 683565275, %v613
    %v617 = vshrl.u32 2475754826, %v614
    %v618 = vor.u32 %v616, %v617
    %v619 = vshll.u32 2475754826, %v613
    %v620 = vshrl.u32 2131351028, %v614
    %v621 = vor.u32 %v619, %v620
    %v622 = vshll.u32 2131351028, %v613
    %v623 = vshrl.u32 2102212464, %v614
    %v624 = vor.u32 %v622, %v623
    %v625 = vshll.u32 2102212464, %v613
    %v626 = vshrl.u32 920167782, %v614
    %v627 = vor.u32 %v625, %v626
    %v628 = vshll.u32 920167782, %v613
    %v629 = vshrl.u32 1326507024, %v614
    %v630 = vor.u32 %v628, %v629
    %vm631 = vcmp.lt.s32.totalorder %v612, 1
    %vm632 = vcmp.lt.s32.totalorder %v612, 2
    %vm633 = vcmp.lt.s32.totalorder %v612, 3
    %vm634 = vcmp.lt.s32.totalorder %v612, 4
    %v635 = vsel %vm631, %v615, %v618
    %v636 = vsel %vm634, %v624, 2102212464
    %v637 = vsel %vm633, %v621, %v636
    %v638 = vsel %vm632, %v635, %v637
    %v639 = vsel %vm631, %v618, %v621
    %v640 = vsel %vm634, %v627, 920167782
    %v641 = vsel %vm633, %v624, %v640
    %v642 = vsel %vm632, %v639, %v641
    %v643 = vsel %vm631, %v621, %v624
    %v644 = vsel %vm634, %v630, 1326507024
    %v645 = vsel %vm633, %v627, %v644
    %v646 = vsel %vm632, %v643, %v645
    %v647 = vshll.u32 %v607, 8
    %v648 = vmul.u32.u64.compose %v647, %v646
    %v649 = vextract.low.u32 %v648
    %v650 = vextract.high.u32 %v648
    %v651 = vmul.u32.u64.compose %v647, %v642
    %v652 = vextract.low.u32 %v651
    %v653 = vextract.high.u32 %v651
    %v654 = vmul.u32 %v647, %v638
    %v655 = vadd.s32 %v650, %v652
    %vm656 = vc.u32 %v650, %v652
    %v657 = vadd.s32 %v653, 1
    %v658 = vsel %vm656, %v657, %v653
    %v659 = vadd.s32 %v654, %v658
    %v660 = vadd.s32 %v659, 536870912
    %v661 = vshrl.u32 %v660, 30
    %v662 = vshll.u32 %v661, 30
    %v663 = vsub.s32 %v659, %v662
    %vm664 = vcmp.lt.s32.totalorder %v663, 0
    %v665 = vsub.s32 0, %v663
    %v666 = vsel %vm664, %v665, %v663
    %v667 = vclz %v666
    %v668 = vsub.s32 %v667, 2
    %vm669 = vcmp.gt.s32.totalorder 0, %v668
    %v670 = vsel %vm669, 0, %v668
    %v671 = vsub.s32 32, %v670
    %v672 = vshll.u32 %v663, %v670
    %v673 = vshrl.u32 %v655, %v671
    %v674 = vor.u32 %v672, %v673
    %v675 = vsub.s32 4294967266, %v670
    %v676 = vadd.s32 %v675, 127
    %v677 = vshll.u32 %v676, 23
    %v678 = vor.u32 4788187, %v677
    %v679 = vand.u32 2147483647, %v678
    %v681 = vcvt.s32.f32 %v674
    %v682 = vmul.f32 %v681, %v679
    %v683 = vxor.u32 %v682, 2147483648
    %v684 = vsel %vm601, %v683, %v682
    %v685 = vsub.s32 4, %v661
    %v686 = vsel %vm601, %v685, %v661
    %v687 = vsel %vm600, %v361, %v684
    %v688 = vsel %vm600, 0, %v686
    %v689 = vcosq.f32.pop %v687
    %v690 = vsinq.f32.pop %v687
    %vm691 = vweird.f32 %v361
    %v692 = vadd.s32 %v688, 3
    %v693 = vand.u32 %v692, 3
    %vm694 = vcmp.lt.s32.totalorder %v693, 2
    %vm695 = vcmp.eq.s32.totalorder %v693, 0
    %v696 = vxor.u32 %v690, 2147483648
    %v697 = vsel %vm695, %v689, %v696
    %vm698 = vcmp.eq.s32.totalorder %v693, 2
    %v699 = vxor.u32 %v689, 2147483648
    %v700 = vsel %vm698, %v699, %v690
    %v701 = vsel %vm694, %v697, %v700
    %v702 = vsel %vm691, nan, %v701
    %v703 = vand.u32 2147483647, %v362
    %vm704 = vcmp.le.f32.partialorder %v703, 0.7853982
    %vm705 = vcmp.lt.s32.totalorder %v362, 0
    %v706 = vand.u32 %v362, 2139095040
    %v707 = vshrl.u32 %v706, 23
    %v708 = vsub.s32 %v707, 127
    %v709 = vand.u32 2147483647, %v362
    %v710 = vand.u32 %v709, 8388607
    %v711 = vor.u32 %v710, 8388608
    %v712 = vsub.s32 0, %v711
    %v713 = vadd.s32 %v708, 1
    %vm714 = vcmp.gt.s32.totalorder %v713, 0
    %v715 = vsel %vm714, %v713, 0
    %v716 = vshrl.u32 %v715, 5
    %v717 = vand.u32 %v715, 31
    %v718 = vsub.s32 32, %v717
    %v719 = vshrl.u32 683565275, %v718
    %v720 = vshll.u32 683565275, %v717
    %v721 = vshrl.u32 2475754826, %v718
    %v722 = vor.u32 %v720, %v721
    %v723 = vshll.u32 2475754826, %v717
    %v724 = vshrl.u32 2131351028, %v718
    %v725 = vor.u32 %v723, %v724
    %v726 = vshll.u32 2131351028, %v717
    %v727 = vshrl.u32 2102212464, %v718
    %v728 = vor.u32 %v726, %v727
    %v729 = vshll.u32 2102212464, %v717
    %v730 = vshrl.u32 920167782, %v718
    %v731 = vor.u32 %v729, %v730
    %v732 = vshll.u32 920167782, %v717
    %v733 = vshrl.u32 1326507024, %v718
    %v734 = vor.u32 %v732, %v733
    %vm735 = vcmp.lt.s32.totalorder %v716, 1
    %vm736 = vcmp.lt.s32.totalorder %v716, 2
    %vm737 = vcmp.lt.s32.totalorder %v716, 3
    %vm738 = vcmp.lt.s32.totalorder %v716, 4
    %v739 = vsel %vm735, %v719, %v722
    %v740 = vsel %vm738, %v728, 2102212464
    %v741 = vsel %vm737, %v725, %v740
    %v742 = vsel %vm736, %v739, %v741
    %v743 = vsel %vm735, %v722, %v725
    %v744 = vsel %vm738, %v731, 920167782
    %v745 = vsel %vm737, %v728, %v744
    %v746 = vsel %vm736, %v743, %v745
    %v747 = vsel %vm735, %v725, %v728
    %v748 = vsel %vm738, %v734, 1326507024
    %v749 = vsel %vm737, %v731, %v748
    %v750 = vsel %vm736, %v747, %v749
    %v751 = vshll.u32 %v711, 8
    %v752 = vmul.u32.u64.compose %v751, %v750
    %v753 = vextract.low.u32 %v752
    %v754 = vextract.high.u32 %v752
    %v755 = vmul.u32.u64.compose %v751, %v746
    %v756 = vextract.low.u32 %v755
    %v757 = vextract.high.u32 %v755
    %v758 = vmul.u32 %v751, %v742
    %v759 = vadd.s32 %v754, %v756
    %vm760 = vc.u32 %v754, %v756
    %v761 = vadd.s32 %v757, 1
    %v762 = vsel %vm760, %v761, %v757
    %v763 = vadd.s32 %v758, %v762
    %v764 = vadd.s32 %v763, 536870912
    %v765 = vshrl.u32 %v764, 30
    %v766 = vshll.u32 %v765, 30
    %v767 = vsub.s32 %v763, %v766
    %vm768 = vcmp.lt.s32.totalorder %v767, 0
    %v769 = vsub.s32 0, %v767
    %v770 = vsel %vm768, %v769, %v767
    %v771 = vclz %v770
    %v772 = vsub.s32 %v771, 2
    %vm773 = vcmp.gt.s32.totalorder 0, %v772
    %v774 = vsel %vm773, 0, %v772
    %v775 = vsub.s32 32, %v774
    %v776 = vshll.u32 %v767, %v774
    %v777 = vshrl.u32 %v759, %v775
    %v778 = vor.u32 %v776, %v777
    %v779 = vsub.s32 4294967266, %v774
    %v780 = vadd.s32 %v779, 127
    %v781 = vshll.u32 %v780, 23
    %v782 = vor.u32 4788187, %v781
    %v783 = vand.u32 2147483647, %v782
    %v785 = vcvt.s32.f32 %v778
    %v786 = vmul.f32 %v785, %v783
    %v787 = vxor.u32 %v786, 2147483648
    %v788 = vsel %vm705, %v787, %v786
    %v789 = vsub.s32 4, %v765
    %v790 = vsel %vm705, %v789, %v765
    %v791 = vsel %vm704, %v362, %v788
    %v792 = vsel %vm704, 0, %v790
    %v793 = vcosq.f32.pop %v791
    %v794 = vsinq.f32.pop %v791
    %vm795 = vweird.f32 %v362
    %v796 = vadd.s32 %v792, 3
    %v797 = vand.u32 %v796, 3
    %vm798 = vcmp.lt.s32.totalorder %v797, 2
    %vm799 = vcmp.eq.s32.totalorder %v797, 0
    %v800 = vxor.u32 %v794, 2147483648
    %v801 = vsel %vm799, %v793, %v800
    %vm802 = vcmp.eq.s32.totalorder %v797, 2
    %v803 = vxor.u32 %v793, 2147483648
    %v804 = vsel %vm802, %v803, %v794
    %v805 = vsel %vm798, %v801, %v804
    %v806 = vsel %vm795, nan, %v805
    %v807 = vand.u32 2147483647, %v363
    %vm808 = vcmp.le.f32.partialorder %v807, 0.7853982
    %vm809 = vcmp.lt.s32.totalorder %v363, 0
    %v810 = vand.u32 %v363, 2139095040
    %v811 = vshrl.u32 %v810, 23
    %v812 = vsub.s32 %v811, 127
    %v813 = vand.u32 2147483647, %v363
    %v814 = vand.u32 %v813, 8388607
    %v815 = vor.u32 %v814, 8388608
    %v816 = vsub.s32 0, %v815
    %v817 = vadd.s32 %v812, 1
    %vm818 = vcmp.gt.s32.totalorder %v817, 0
    %v819 = vsel %vm818, %v817, 0
    %v820 = vshrl.u32 %v819, 5
    %v821 = vand.u32 %v819, 31
    %v822 = vsub.s32 32, %v821
    %v823 = vshrl.u32 683565275, %v822
    %v824 = vshll.u32 683565275, %v821
    %v825 = vshrl.u32 2475754826, %v822
    %v826 = vor.u32 %v824, %v825
    %v827 = vshll.u32 2475754826, %v821
    %v828 = vshrl.u32 2131351028, %v822
    %v829 = vor.u32 %v827, %v828
    %v830 = vshll.u32 2131351028, %v821
    %v831 = vshrl.u32 2102212464, %v822
    %v832 = vor.u32 %v830, %v831
    %v833 = vshll.u32 2102212464, %v821
    %v834 = vshrl.u32 920167782, %v822
    %v835 = vor.u32 %v833, %v834
    %v836 = vshll.u32 920167782, %v821
    %v837 = vshrl.u32 1326507024, %v822
    %v838 = vor.u32 %v836, %v837
    %vm839 = vcmp.lt.s32.totalorder %v820, 1
    %vm840 = vcmp.lt.s32.totalorder %v820, 2
    %vm841 = vcmp.lt.s32.totalorder %v820, 3
    %vm842 = vcmp.lt.s32.totalorder %v820, 4
    %v843 = vsel %vm839, %v823, %v826
    %v844 = vsel %vm842, %v832, 2102212464
    %v845 = vsel %vm841, %v829, %v844
    %v846 = vsel %vm840, %v843, %v845
    %v847 = vsel %vm839, %v826, %v829
    %v848 = vsel %vm842, %v835, 920167782
    %v849 = vsel %vm841, %v832, %v848
    %v850 = vsel %vm840, %v847, %v849
    %v851 = vsel %vm839, %v829, %v832
    %v852 = vsel %vm842, %v838, 1326507024
    %v853 = vsel %vm841, %v835, %v852
    %v854 = vsel %vm840, %v851, %v853
    %v855 = vshll.u32 %v815, 8
    %v856 = vmul.u32.u64.compose %v855, %v854
    %v857 = vextract.low.u32 %v856
    %v858 = vextract.high.u32 %v856
    %v859 = vmul.u32.u64.compose %v855, %v850
    %v860 = vextract.low.u32 %v859
    %v861 = vextract.high.u32 %v859
    %v862 = vmul.u32 %v855, %v846
    %v863 = vadd.s32 %v858, %v860
    %vm864 = vc.u32 %v858, %v860
    %v865 = vadd.s32 %v861, 1
    %v866 = vsel %vm864, %v865, %v861
    %v867 = vadd.s32 %v862, %v866
    %v868 = vadd.s32 %v867, 536870912
    %v869 = vshrl.u32 %v868, 30
    %v870 = vshll.u32 %v869, 30
    %v871 = vsub.s32 %v867, %v870
    %vm872 = vcmp.lt.s32.totalorder %v871, 0
    %v873 = vsub.s32 0, %v871
    %v874 = vsel %vm872, %v873, %v871
    %v875 = vclz %v874
    %v876 = vsub.s32 %v875, 2
    %vm877 = vcmp.gt.s32.totalorder 0, %v876
    %v878 = vsel %vm877, 0, %v876
    %v879 = vsub.s32 32, %v878
    %v880 = vshll.u32 %v871, %v878
    %v881 = vshrl.u32 %v863, %v879
    %v882 = vor.u32 %v880, %v881
    %v883 = vsub.s32 4294967266, %v878
    %v884 = vadd.s32 %v883, 127
    %v885 = vshll.u32 %v884, 23
    %v886 = vor.u32 4788187, %v885
    %v887 = vand.u32 2147483647, %v886
    %v889 = vcvt.s32.f32 %v882
    %v890 = vmul.f32 %v889, %v887
    %v891 = vxor.u32 %v890, 2147483648
    %v892 = vsel %vm809, %v891, %v890
    %v893 = vsub.s32 4, %v869
    %v894 = vsel %vm809, %v893, %v869
    %v895 = vsel %vm808, %v363, %v892
    %v896 = vsel %vm808, 0, %v894
    %v897 = vcosq.f32.pop %v895
    %v898 = vsinq.f32.pop %v895
    %vm899 = vweird.f32 %v363
    %v900 = vadd.s32 %v896, 3
    %v901 = vand.u32 %v900, 3
    %vm902 = vcmp.lt.s32.totalorder %v901, 2
    %vm903 = vcmp.eq.s32.totalorder %v901, 0
    %v904 = vxor.u32 %v898, 2147483648
    %v905 = vsel %vm903, %v897, %v904
    %vm906 = vcmp.eq.s32.totalorder %v901, 2
    %v907 = vxor.u32 %v897, 2147483648
    %v908 = vsel %vm906, %v907, %v898
    %v909 = vsel %vm902, %v905, %v908
    %v910 = vsel %vm899, nan, %v909
    %v911 = vand.u32 2147483647, %v364
    %vm912 = vcmp.le.f32.partialorder %v911, 0.7853982
    %vm913 = vcmp.lt.s32.totalorder %v364, 0
    %v914 = vand.u32 %v364, 2139095040
    %v915 = vshrl.u32 %v914, 23
    %v916 = vsub.s32 %v915, 127
    %v917 = vand.u32 2147483647, %v364
    %v918 = vand.u32 %v917, 8388607
    %v919 = vor.u32 %v918, 8388608
    %v920 = vsub.s32 0, %v919
    %v921 = vadd.s32 %v916, 1
    %vm922 = vcmp.gt.s32.totalorder %v921, 0
    %v923 = vsel %vm922, %v921, 0
    %v924 = vshrl.u32 %v923, 5
    %v925 = vand.u32 %v923, 31
    %v926 = vsub.s32 32, %v925
    %v927 = vshrl.u32 683565275, %v926
    %v928 = vshll.u32 683565275, %v925
    %v929 = vshrl.u32 2475754826, %v926
    %v930 = vor.u32 %v928, %v929
    %v931 = vshll.u32 2475754826, %v925
    %v932 = vshrl.u32 2131351028, %v926
    %v933 = vor.u32 %v931, %v932
    %v934 = vshll.u32 2131351028, %v925
    %v935 = vshrl.u32 2102212464, %v926
    %v936 = vor.u32 %v934, %v935
    %v937 = vshll.u32 2102212464, %v925
    %v938 = vshrl.u32 920167782, %v926
    %v939 = vor.u32 %v937, %v938
    %v940 = vshll.u32 920167782, %v925
    %v941 = vshrl.u32 1326507024, %v926
    %v942 = vor.u32 %v940, %v941
    %vm943 = vcmp.lt.s32.totalorder %v924, 1
    %vm944 = vcmp.lt.s32.totalorder %v924, 2
    %vm945 = vcmp.lt.s32.totalorder %v924, 3
    %vm946 = vcmp.lt.s32.totalorder %v924, 4
    %v947 = vsel %vm943, %v927, %v930
    %v948 = vsel %vm946, %v936, 2102212464
    %v949 = vsel %vm945, %v933, %v948
    %v950 = vsel %vm944, %v947, %v949
    %v951 = vsel %vm943, %v930, %v933
    %v952 = vsel %vm946, %v939, 920167782
    %v953 = vsel %vm945, %v936, %v952
    %v954 = vsel %vm944, %v951, %v953
    %v955 = vsel %vm943, %v933, %v936
    %v956 = vsel %vm946, %v942, 1326507024
    %v957 = vsel %vm945, %v939, %v956
    %v958 = vsel %vm944, %v955, %v957
    %v959 = vshll.u32 %v919, 8
    %v960 = vmul.u32.u64.compose %v959, %v958
    %v961 = vextract.low.u32 %v960
    %v962 = vextract.high.u32 %v960
    %v963 = vmul.u32.u64.compose %v959, %v954
    %v964 = vextract.low.u32 %v963
    %v965 = vextract.high.u32 %v963
    %v966 = vmul.u32 %v959, %v950
    %v967 = vadd.s32 %v962, %v964
    %vm968 = vc.u32 %v962, %v964
    %v969 = vadd.s32 %v965, 1
    %v970 = vsel %vm968, %v969, %v965
    %v971 = vadd.s32 %v966, %v970
    %v972 = vadd.s32 %v971, 536870912
    %v973 = vshrl.u32 %v972, 30
    %v974 = vshll.u32 %v973, 30
    %v975 = vsub.s32 %v971, %v974
    %vm976 = vcmp.lt.s32.totalorder %v975, 0
    %v977 = vsub.s32 0, %v975
    %v978 = vsel %vm976, %v977, %v975
    %v979 = vclz %v978
    %v980 = vsub.s32 %v979, 2
    %vm981 = vcmp.gt.s32.totalorder 0, %v980
    %v982 = vsel %vm981, 0, %v980
    %v983 = vsub.s32 32, %v982
    %v984 = vshll.u32 %v975, %v982
    %v985 = vshrl.u32 %v967, %v983
    %v986 = vor.u32 %v984, %v985
    %v987 = vsub.s32 4294967266, %v982
    %v988 = vadd.s32 %v987, 127
    %v989 = vshll.u32 %v988, 23
    %v990 = vor.u32 4788187, %v989
    %v991 = vand.u32 2147483647, %v990
    %v993 = vcvt.s32.f32 %v986
    %v994 = vmul.f32 %v993, %v991
    %v995 = vxor.u32 %v994, 2147483648
    %v996 = vsel %vm913, %v995, %v994
    %v997 = vsub.s32 4, %v973
    %v998 = vsel %vm913, %v997, %v973
    %v999 = vsel %vm912, %v364, %v996
    %v1000 = vsel %vm912, 0, %v998
    %v1001 = vcosq.f32.pop %v999
    %v1002 = vsinq.f32.pop %v999
    %vm1003 = vweird.f32 %v364
    %v1004 = vadd.s32 %v1000, 3
    %v1005 = vand.u32 %v1004, 3
    %vm1006 = vcmp.lt.s32.totalorder %v1005, 2
    %vm1007 = vcmp.eq.s32.totalorder %v1005, 0
    %v1008 = vxor.u32 %v1002, 2147483648
    %v1009 = vsel %vm1007, %v1001, %v1008
    %vm1010 = vcmp.eq.s32.totalorder %v1005, 2
    %v1011 = vxor.u32 %v1001, 2147483648
    %v1012 = vsel %vm1010, %v1011, %v1002
    %v1013 = vsel %vm1006, %v1009, %v1012
    %v1014 = vsel %vm1003, nan, %v1013
    %v1015 = vand.u32 2147483647, %v365
    %vm1016 = vcmp.le.f32.partialorder %v1015, 0.7853982
    %vm1017 = vcmp.lt.s32.totalorder %v365, 0
    %v1018 = vand.u32 %v365, 2139095040
    %v1019 = vshrl.u32 %v1018, 23
    %v1020 = vsub.s32 %v1019, 127
    %v1021 = vand.u32 2147483647, %v365
    %v1022 = vand.u32 %v1021, 8388607
    %v1023 = vor.u32 %v1022, 8388608
    %v1024 = vsub.s32 0, %v1023
    %v1025 = vadd.s32 %v1020, 1
    %vm1026 = vcmp.gt.s32.totalorder %v1025, 0
    %v1027 = vsel %vm1026, %v1025, 0
    %v1028 = vshrl.u32 %v1027, 5
    %v1029 = vand.u32 %v1027, 31
    %v1030 = vsub.s32 32, %v1029
    %v1031 = vshrl.u32 683565275, %v1030
    %v1032 = vshll.u32 683565275, %v1029
    %v1033 = vshrl.u32 2475754826, %v1030
    %v1034 = vor.u32 %v1032, %v1033
    %v1035 = vshll.u32 2475754826, %v1029
    %v1036 = vshrl.u32 2131351028, %v1030
    %v1037 = vor.u32 %v1035, %v1036
    %v1038 = vshll.u32 2131351028, %v1029
    %v1039 = vshrl.u32 2102212464, %v1030
    %v1040 = vor.u32 %v1038, %v1039
    %v1041 = vshll.u32 2102212464, %v1029
    %v1042 = vshrl.u32 920167782, %v1030
    %v1043 = vor.u32 %v1041, %v1042
    %v1044 = vshll.u32 920167782, %v1029
    %v1045 = vshrl.u32 1326507024, %v1030
    %v1046 = vor.u32 %v1044, %v1045
    %vm1047 = vcmp.lt.s32.totalorder %v1028, 1
    %vm1048 = vcmp.lt.s32.totalorder %v1028, 2
    %vm1049 = vcmp.lt.s32.totalorder %v1028, 3
    %vm1050 = vcmp.lt.s32.totalorder %v1028, 4
    %v1051 = vsel %vm1047, %v1031, %v1034
    %v1052 = vsel %vm1050, %v1040, 2102212464
    %v1053 = vsel %vm1049, %v1037, %v1052
    %v1054 = vsel %vm1048, %v1051, %v1053
    %v1055 = vsel %vm1047, %v1034, %v1037
    %v1056 = vsel %vm1050, %v1043, 920167782
    %v1057 = vsel %vm1049, %v1040, %v1056
    %v1058 = vsel %vm1048, %v1055, %v1057
    %v1059 = vsel %vm1047, %v1037, %v1040
    %v1060 = vsel %vm1050, %v1046, 1326507024
    %v1061 = vsel %vm1049, %v1043, %v1060
    %v1062 = vsel %vm1048, %v1059, %v1061
    %v1063 = vshll.u32 %v1023, 8
    %v1064 = vmul.u32.u64.compose %v1063, %v1062
    %v1065 = vextract.low.u32 %v1064
    %v1066 = vextract.high.u32 %v1064
    %v1067 = vmul.u32.u64.compose %v1063, %v1058
    %v1068 = vextract.low.u32 %v1067
    %v1069 = vextract.high.u32 %v1067
    %v1070 = vmul.u32 %v1063, %v1054
    %v1071 = vadd.s32 %v1066, %v1068
    %vm1072 = vc.u32 %v1066, %v1068
    %v1073 = vadd.s32 %v1069, 1
    %v1074 = vsel %vm1072, %v1073, %v1069
    %v1075 = vadd.s32 %v1070, %v1074
    %v1076 = vadd.s32 %v1075, 536870912
    %v1077 = vshrl.u32 %v1076, 30
    %v1078 = vshll.u32 %v1077, 30
    %v1079 = vsub.s32 %v1075, %v1078
    %vm1080 = vcmp.lt.s32.totalorder %v1079, 0
    %v1081 = vsub.s32 0, %v1079
    %v1082 = vsel %vm1080, %v1081, %v1079
    %v1083 = vclz %v1082
    %v1084 = vsub.s32 %v1083, 2
    %vm1085 = vcmp.gt.s32.totalorder 0, %v1084
    %v1086 = vsel %vm1085, 0, %v1084
    %v1087 = vsub.s32 32, %v1086
    %v1088 = vshll.u32 %v1079, %v1086
    %v1089 = vshrl.u32 %v1071, %v1087
    %v1090 = vor.u32 %v1088, %v1089
    %v1091 = vsub.s32 4294967266, %v1086
    %v1092 = vadd.s32 %v1091, 127
    %v1093 = vshll.u32 %v1092, 23
    %v1094 = vor.u32 4788187, %v1093
    %v1095 = vand.u32 2147483647, %v1094
    %v1097 = vcvt.s32.f32 %v1090
    %v1098 = vmul.f32 %v1097, %v1095
    %v1099 = vxor.u32 %v1098, 2147483648
    %v1100 = vsel %vm1017, %v1099, %v1098
    %v1101 = vsub.s32 4, %v1077
    %v1102 = vsel %vm1017, %v1101, %v1077
    %v1103 = vsel %vm1016, %v365, %v1100
    %v1104 = vsel %vm1016, 0, %v1102
    %v1105 = vcosq.f32.pop %v1103
    %v1106 = vsinq.f32.pop %v1103
    %vm1107 = vweird.f32 %v365
    %v1108 = vadd.s32 %v1104, 3
    %v1109 = vand.u32 %v1108, 3
    %vm1110 = vcmp.lt.s32.totalorder %v1109, 2
    %vm1111 = vcmp.eq.s32.totalorder %v1109, 0
    %v1112 = vxor.u32 %v1106, 2147483648
    %v1113 = vsel %vm1111, %v1105, %v1112
    %vm1114 = vcmp.eq.s32.totalorder %v1109, 2
    %v1115 = vxor.u32 %v1105, 2147483648
    %v1116 = vsel %vm1114, %v1115, %v1106
    %v1117 = vsel %vm1110, %v1113, %v1116
    %v1118 = vsel %vm1107, nan, %v1117
    %v1119 = vand.u32 2147483647, %v366
    %vm1120 = vcmp.le.f32.partialorder %v1119, 0.7853982
    %vm1121 = vcmp.lt.s32.totalorder %v366, 0
    %v1122 = vand.u32 %v366, 2139095040
    %v1123 = vshrl.u32 %v1122, 23
    %v1124 = vsub.s32 %v1123, 127
    %v1125 = vand.u32 2147483647, %v366
    %v1126 = vand.u32 %v1125, 8388607
    %v1127 = vor.u32 %v1126, 8388608
    %v1128 = vsub.s32 0, %v1127
    %v1129 = vadd.s32 %v1124, 1
    %vm1130 = vcmp.gt.s32.totalorder %v1129, 0
    %v1131 = vsel %vm1130, %v1129, 0
    %v1132 = vshrl.u32 %v1131, 5
    %v1133 = vand.u32 %v1131, 31
    %v1134 = vsub.s32 32, %v1133
    %v1135 = vshrl.u32 683565275, %v1134
    %v1136 = vshll.u32 683565275, %v1133
    %v1137 = vshrl.u32 2475754826, %v1134
    %v1138 = vor.u32 %v1136, %v1137
    %v1139 = vshll.u32 2475754826, %v1133
    %v1140 = vshrl.u32 2131351028, %v1134
    %v1141 = vor.u32 %v1139, %v1140
    %v1142 = vshll.u32 2131351028, %v1133
    %v1143 = vshrl.u32 2102212464, %v1134
    %v1144 = vor.u32 %v1142, %v1143
    %v1145 = vshll.u32 2102212464, %v1133
    %v1146 = vshrl.u32 920167782, %v1134
    %v1147 = vor.u32 %v1145, %v1146
    %v1148 = vshll.u32 920167782, %v1133
    %v1149 = vshrl.u32 1326507024, %v1134
    %v1150 = vor.u32 %v1148, %v1149
    %vm1151 = vcmp.lt.s32.totalorder %v1132, 1
    %vm1152 = vcmp.lt.s32.totalorder %v1132, 2
    %vm1153 = vcmp.lt.s32.totalorder %v1132, 3
    %vm1154 = vcmp.lt.s32.totalorder %v1132, 4
    %v1155 = vsel %vm1151, %v1135, %v1138
    %v1156 = vsel %vm1154, %v1144, 2102212464
    %v1157 = vsel %vm1153, %v1141, %v1156
    %v1158 = vsel %vm1152, %v1155, %v1157
    %v1159 = vsel %vm1151, %v1138, %v1141
    %v1160 = vsel %vm1154, %v1147, 920167782
    %v1161 = vsel %vm1153, %v1144, %v1160
    %v1162 = vsel %vm1152, %v1159, %v1161
    %v1163 = vsel %vm1151, %v1141, %v1144
    %v1164 = vsel %vm1154, %v1150, 1326507024
    %v1165 = vsel %vm1153, %v1147, %v1164
    %v1166 = vsel %vm1152, %v1163, %v1165
    %v1167 = vshll.u32 %v1127, 8
    %v1168 = vmul.u32.u64.compose %v1167, %v1166
    %v1169 = vextract.low.u32 %v1168
    %v1170 = vextract.high.u32 %v1168
    %v1171 = vmul.u32.u64.compose %v1167, %v1162
    %v1172 = vextract.low.u32 %v1171
    %v1173 = vextract.high.u32 %v1171
    %v1174 = vmul.u32 %v1167, %v1158
    %v1175 = vadd.s32 %v1170, %v1172
    %vm1176 = vc.u32 %v1170, %v1172
    %v1177 = vadd.s32 %v1173, 1
    %v1178 = vsel %vm1176, %v1177, %v1173
    %v1179 = vadd.s32 %v1174, %v1178
    %v1180 = vadd.s32 %v1179, 536870912
    %v1181 = vshrl.u32 %v1180, 30
    %v1182 = vshll.u32 %v1181, 30
    %v1183 = vsub.s32 %v1179, %v1182
    %vm1184 = vcmp.lt.s32.totalorder %v1183, 0
    %v1185 = vsub.s32 0, %v1183
    %v1186 = vsel %vm1184, %v1185, %v1183
    %v1187 = vclz %v1186
    %v1188 = vsub.s32 %v1187, 2
    %vm1189 = vcmp.gt.s32.totalorder 0, %v1188
    %v1190 = vsel %vm1189, 0, %v1188
    %v1191 = vsub.s32 32, %v1190
    %v1192 = vshll.u32 %v1183, %v1190
    %v1193 = vshrl.u32 %v1175, %v1191
    %v1194 = vor.u32 %v1192, %v1193
    %v1195 = vsub.s32 4294967266, %v1190
    %v1196 = vadd.s32 %v1195, 127
    %v1197 = vshll.u32 %v1196, 23
    %v1198 = vor.u32 4788187, %v1197
    %v1199 = vand.u32 2147483647, %v1198
    %v1201 = vcvt.s32.f32 %v1194
    %v1202 = vmul.f32 %v1201, %v1199
    %v1203 = vxor.u32 %v1202, 2147483648
    %v1204 = vsel %vm1121, %v1203, %v1202
    %v1205 = vsub.s32 4, %v1181
    %v1206 = vsel %vm1121, %v1205, %v1181
    %v1207 = vsel %vm1120, %v366, %v1204
    %v1208 = vsel %vm1120, 0, %v1206
    %v1209 = vcosq.f32.pop %v1207
    %v1210 = vsinq.f32.pop %v1207
    %vm1211 = vweird.f32 %v366
    %v1212 = vadd.s32 %v1208, 3
    %v1213 = vand.u32 %v1212, 3
    %vm1214 = vcmp.lt.s32.totalorder %v1213, 2
    %vm1215 = vcmp.eq.s32.totalorder %v1213, 0
    %v1216 = vxor.u32 %v1210, 2147483648
    %v1217 = vsel %vm1215, %v1209, %v1216
    %vm1218 = vcmp.eq.s32.totalorder %v1213, 2
    %v1219 = vxor.u32 %v1209, 2147483648
    %v1220 = vsel %vm1218, %v1219, %v1210
    %v1221 = vsel %vm1214, %v1217, %v1220
    %v1222 = vsel %vm1211, nan, %v1221
    %v1223 = vand.u32 2147483647, %v367
    %vm1224 = vcmp.le.f32.partialorder %v1223, 0.7853982
    %vm1225 = vcmp.lt.s32.totalorder %v367, 0
    %v1226 = vand.u32 %v367, 2139095040
    %v1227 = vshrl.u32 %v1226, 23
    %v1228 = vsub.s32 %v1227, 127
    %v1229 = vand.u32 2147483647, %v367
    %v1230 = vand.u32 %v1229, 8388607
    %v1231 = vor.u32 %v1230, 8388608
    %v1232 = vsub.s32 0, %v1231
    %v1233 = vadd.s32 %v1228, 1
    %vm1234 = vcmp.gt.s32.totalorder %v1233, 0
    %v1235 = vsel %vm1234, %v1233, 0
    %v1236 = vshrl.u32 %v1235, 5
    %v1237 = vand.u32 %v1235, 31
    %v1238 = vsub.s32 32, %v1237
    %v1239 = vshrl.u32 683565275, %v1238
    %v1240 = vshll.u32 683565275, %v1237
    %v1241 = vshrl.u32 2475754826, %v1238
    %v1242 = vor.u32 %v1240, %v1241
    %v1243 = vshll.u32 2475754826, %v1237
    %v1244 = vshrl.u32 2131351028, %v1238
    %v1245 = vor.u32 %v1243, %v1244
    %v1246 = vshll.u32 2131351028, %v1237
    %v1247 = vshrl.u32 2102212464, %v1238
    %v1248 = vor.u32 %v1246, %v1247
    %v1249 = vshll.u32 2102212464, %v1237
    %v1250 = vshrl.u32 920167782, %v1238
    %v1251 = vor.u32 %v1249, %v1250
    %v1252 = vshll.u32 920167782, %v1237
    %v1253 = vshrl.u32 1326507024, %v1238
    %v1254 = vor.u32 %v1252, %v1253
    %vm1255 = vcmp.lt.s32.totalorder %v1236, 1
    %vm1256 = vcmp.lt.s32.totalorder %v1236, 2
    %vm1257 = vcmp.lt.s32.totalorder %v1236, 3
    %vm1258 = vcmp.lt.s32.totalorder %v1236, 4
    %v1259 = vsel %vm1255, %v1239, %v1242
    %v1260 = vsel %vm1258, %v1248, 2102212464
    %v1261 = vsel %vm1257, %v1245, %v1260
    %v1262 = vsel %vm1256, %v1259, %v1261
    %v1263 = vsel %vm1255, %v1242, %v1245
    %v1264 = vsel %vm1258, %v1251, 920167782
    %v1265 = vsel %vm1257, %v1248, %v1264
    %v1266 = vsel %vm1256, %v1263, %v1265
    %v1267 = vsel %vm1255, %v1245, %v1248
    %v1268 = vsel %vm1258, %v1254, 1326507024
    %v1269 = vsel %vm1257, %v1251, %v1268
    %v1270 = vsel %vm1256, %v1267, %v1269
    %v1271 = vshll.u32 %v1231, 8
    %v1272 = vmul.u32.u64.compose %v1271, %v1270
    %v1273 = vextract.low.u32 %v1272
    %v1274 = vextract.high.u32 %v1272
    %v1275 = vmul.u32.u64.compose %v1271, %v1266
    %v1276 = vextract.low.u32 %v1275
    %v1277 = vextract.high.u32 %v1275
    %v1278 = vmul.u32 %v1271, %v1262
    %v1279 = vadd.s32 %v1274, %v1276
    %vm1280 = vc.u32 %v1274, %v1276
    %v1281 = vadd.s32 %v1277, 1
    %v1282 = vsel %vm1280, %v1281, %v1277
    %v1283 = vadd.s32 %v1278, %v1282
    %v1284 = vadd.s32 %v1283, 536870912
    %v1285 = vshrl.u32 %v1284, 30
    %v1286 = vshll.u32 %v1285, 30
    %v1287 = vsub.s32 %v1283, %v1286
    %vm1288 = vcmp.lt.s32.totalorder %v1287, 0
    %v1289 = vsub.s32 0, %v1287
    %v1290 = vsel %vm1288, %v1289, %v1287
    %v1291 = vclz %v1290
    %v1292 = vsub.s32 %v1291, 2
    %vm1293 = vcmp.gt.s32.totalorder 0, %v1292
    %v1294 = vsel %vm1293, 0, %v1292
    %v1295 = vsub.s32 32, %v1294
    %v1296 = vshll.u32 %v1287, %v1294
    %v1297 = vshrl.u32 %v1279, %v1295
    %v1298 = vor.u32 %v1296, %v1297
    %v1299 = vsub.s32 4294967266, %v1294
    %v1300 = vadd.s32 %v1299, 127
    %v1301 = vshll.u32 %v1300, 23
    %v1302 = vor.u32 4788187, %v1301
    %v1303 = vand.u32 2147483647, %v1302
    %v1305 = vcvt.s32.f32 %v1298
    %v1306 = vmul.f32 %v1305, %v1303
    %v1307 = vxor.u32 %v1306, 2147483648
    %v1308 = vsel %vm1225, %v1307, %v1306
    %v1309 = vsub.s32 4, %v1285
    %v1310 = vsel %vm1225, %v1309, %v1285
    %v1311 = vsel %vm1224, %v367, %v1308
    %v1312 = vsel %vm1224, 0, %v1310
    %v1313 = vcosq.f32.pop %v1311
    %v1314 = vsinq.f32.pop %v1311
    %vm1315 = vweird.f32 %v367
    %v1316 = vadd.s32 %v1312, 3
    %v1317 = vand.u32 %v1316, 3
    %vm1318 = vcmp.lt.s32.totalorder %v1317, 2
    %vm1319 = vcmp.eq.s32.totalorder %v1317, 0
    %v1320 = vxor.u32 %v1314, 2147483648
    %v1321 = vsel %vm1319, %v1313, %v1320
    %vm1322 = vcmp.eq.s32.totalorder %v1317, 2
    %v1323 = vxor.u32 %v1313, 2147483648
    %v1324 = vsel %vm1322, %v1323, %v1314
    %v1325 = vsel %vm1318, %v1321, %v1324
    %v1326 = vsel %vm1315, nan, %v1325
    %v1327 = vand.u32 2147483647, %v368
    %vm1328 = vcmp.le.f32.partialorder %v1327, 0.7853982
    %vm1329 = vcmp.lt.s32.totalorder %v368, 0
    %v1330 = vand.u32 %v368, 2139095040
    %v1331 = vshrl.u32 %v1330, 23
    %v1332 = vsub.s32 %v1331, 127
    %v1333 = vand.u32 2147483647, %v368
    %v1334 = vand.u32 %v1333, 8388607
    %v1335 = vor.u32 %v1334, 8388608
    %v1336 = vsub.s32 0, %v1335
    %v1337 = vadd.s32 %v1332, 1
    %vm1338 = vcmp.gt.s32.totalorder %v1337, 0
    %v1339 = vsel %vm1338, %v1337, 0
    %v1340 = vshrl.u32 %v1339, 5
    %v1341 = vand.u32 %v1339, 31
    %v1342 = vsub.s32 32, %v1341
    %v1343 = vshrl.u32 683565275, %v1342
    %v1344 = vshll.u32 683565275, %v1341
    %v1345 = vshrl.u32 2475754826, %v1342
    %v1346 = vor.u32 %v1344, %v1345
    %v1347 = vshll.u32 2475754826, %v1341
    %v1348 = vshrl.u32 2131351028, %v1342
    %v1349 = vor.u32 %v1347, %v1348
    %v1350 = vshll.u32 2131351028, %v1341
    %v1351 = vshrl.u32 2102212464, %v1342
    %v1352 = vor.u32 %v1350, %v1351
    %v1353 = vshll.u32 2102212464, %v1341
    %v1354 = vshrl.u32 920167782, %v1342
    %v1355 = vor.u32 %v1353, %v1354
    %v1356 = vshll.u32 920167782, %v1341
    %v1357 = vshrl.u32 1326507024, %v1342
    %v1358 = vor.u32 %v1356, %v1357
    %vm1359 = vcmp.lt.s32.totalorder %v1340, 1
    %vm1360 = vcmp.lt.s32.totalorder %v1340, 2
    %vm1361 = vcmp.lt.s32.totalorder %v1340, 3
    %vm1362 = vcmp.lt.s32.totalorder %v1340, 4
    %v1363 = vsel %vm1359, %v1343, %v1346
    %v1364 = vsel %vm1362, %v1352, 2102212464
    %v1365 = vsel %vm1361, %v1349, %v1364
    %v1366 = vsel %vm1360, %v1363, %v1365
    %v1367 = vsel %vm1359, %v1346, %v1349
    %v1368 = vsel %vm1362, %v1355, 920167782
    %v1369 = vsel %vm1361, %v1352, %v1368
    %v1370 = vsel %vm1360, %v1367, %v1369
    %v1371 = vsel %vm1359, %v1349, %v1352
    %v1372 = vsel %vm1362, %v1358, 1326507024
    %v1373 = vsel %vm1361, %v1355, %v1372
    %v1374 = vsel %vm1360, %v1371, %v1373
    %v1375 = vshll.u32 %v1335, 8
    %v1376 = vmul.u32.u64.compose %v1375, %v1374
    %v1377 = vextract.low.u32 %v1376
    %v1378 = vextract.high.u32 %v1376
    %v1379 = vmul.u32.u64.compose %v1375, %v1370
    %v1380 = vextract.low.u32 %v1379
    %v1381 = vextract.high.u32 %v1379
    %v1382 = vmul.u32 %v1375, %v1366
    %v1383 = vadd.s32 %v1378, %v1380
    %vm1384 = vc.u32 %v1378, %v1380
    %v1385 = vadd.s32 %v1381, 1
    %v1386 = vsel %vm1384, %v1385, %v1381
    %v1387 = vadd.s32 %v1382, %v1386
    %v1388 = vadd.s32 %v1387, 536870912
    %v1389 = vshrl.u32 %v1388, 30
    %v1390 = vshll.u32 %v1389, 30
    %v1391 = vsub.s32 %v1387, %v1390
    %vm1392 = vcmp.lt.s32.totalorder %v1391, 0
    %v1393 = vsub.s32 0, %v1391
    %v1394 = vsel %vm1392, %v1393, %v1391
    %v1395 = vclz %v1394
    %v1396 = vsub.s32 %v1395, 2
    %vm1397 = vcmp.gt.s32.totalorder 0, %v1396
    %v1398 = vsel %vm1397, 0, %v1396
    %v1399 = vsub.s32 32, %v1398
    %v1400 = vshll.u32 %v1391, %v1398
    %v1401 = vshrl.u32 %v1383, %v1399
    %v1402 = vor.u32 %v1400, %v1401
    %v1403 = vsub.s32 4294967266, %v1398
    %v1404 = vadd.s32 %v1403, 127
    %v1405 = vshll.u32 %v1404, 23
    %v1406 = vor.u32 4788187, %v1405
    %v1407 = vand.u32 2147483647, %v1406
    %v1409 = vcvt.s32.f32 %v1402
    %v1410 = vmul.f32 %v1409, %v1407
    %v1411 = vxor.u32 %v1410, 2147483648
    %v1412 = vsel %vm1329, %v1411, %v1410
    %v1413 = vsub.s32 4, %v1389
    %v1414 = vsel %vm1329, %v1413, %v1389
    %v1415 = vsel %vm1328, %v368, %v1412
    %v1416 = vsel %vm1328, 0, %v1414
    %v1417 = vcosq.f32.pop %v1415
    %v1418 = vsinq.f32.pop %v1415
    %vm1419 = vweird.f32 %v368
    %v1420 = vadd.s32 %v1416, 3
    %v1421 = vand.u32 %v1420, 3
    %vm1422 = vcmp.lt.s32.totalorder %v1421, 2
    %vm1423 = vcmp.eq.s32.totalorder %v1421, 0
    %v1424 = vxor.u32 %v1418, 2147483648
    %v1425 = vsel %vm1423, %v1417, %v1424
    %vm1426 = vcmp.eq.s32.totalorder %v1421, 2
    %v1427 = vxor.u32 %v1417, 2147483648
    %v1428 = vsel %vm1426, %v1427, %v1418
    %v1429 = vsel %vm1422, %v1425, %v1428
    %v1430 = vsel %vm1419, nan, %v1429
    %v1431 = vand.u32 2147483647, %v369
    %vm1432 = vcmp.le.f32.partialorder %v1431, 0.7853982
    %vm1433 = vcmp.lt.s32.totalorder %v369, 0
    %v1434 = vand.u32 %v369, 2139095040
    %v1435 = vshrl.u32 %v1434, 23
    %v1436 = vsub.s32 %v1435, 127
    %v1437 = vand.u32 2147483647, %v369
    %v1438 = vand.u32 %v1437, 8388607
    %v1439 = vor.u32 %v1438, 8388608
    %v1440 = vsub.s32 0, %v1439
    %v1441 = vadd.s32 %v1436, 1
    %vm1442 = vcmp.gt.s32.totalorder %v1441, 0
    %v1443 = vsel %vm1442, %v1441, 0
    %v1444 = vshrl.u32 %v1443, 5
    %v1445 = vand.u32 %v1443, 31
    %v1446 = vsub.s32 32, %v1445
    %v1447 = vshrl.u32 683565275, %v1446
    %v1448 = vshll.u32 683565275, %v1445
    %v1449 = vshrl.u32 2475754826, %v1446
    %v1450 = vor.u32 %v1448, %v1449
    %v1451 = vshll.u32 2475754826, %v1445
    %v1452 = vshrl.u32 2131351028, %v1446
    %v1453 = vor.u32 %v1451, %v1452
    %v1454 = vshll.u32 2131351028, %v1445
    %v1455 = vshrl.u32 2102212464, %v1446
    %v1456 = vor.u32 %v1454, %v1455
    %v1457 = vshll.u32 2102212464, %v1445
    %v1458 = vshrl.u32 920167782, %v1446
    %v1459 = vor.u32 %v1457, %v1458
    %v1460 = vshll.u32 920167782, %v1445
    %v1461 = vshrl.u32 1326507024, %v1446
    %v1462 = vor.u32 %v1460, %v1461
    %vm1463 = vcmp.lt.s32.totalorder %v1444, 1
    %vm1464 = vcmp.lt.s32.totalorder %v1444, 2
    %vm1465 = vcmp.lt.s32.totalorder %v1444, 3
    %vm1466 = vcmp.lt.s32.totalorder %v1444, 4
    %v1467 = vsel %vm1463, %v1447, %v1450
    %v1468 = vsel %vm1466, %v1456, 2102212464
    %v1469 = vsel %vm1465, %v1453, %v1468
    %v1470 = vsel %vm1464, %v1467, %v1469
    %v1471 = vsel %vm1463, %v1450, %v1453
    %v1472 = vsel %vm1466, %v1459, 920167782
    %v1473 = vsel %vm1465, %v1456, %v1472
    %v1474 = vsel %vm1464, %v1471, %v1473
    %v1475 = vsel %vm1463, %v1453, %v1456
    %v1476 = vsel %vm1466, %v1462, 1326507024
    %v1477 = vsel %vm1465, %v1459, %v1476
    %v1478 = vsel %vm1464, %v1475, %v1477
    %v1479 = vshll.u32 %v1439, 8
    %v1480 = vmul.u32.u64.compose %v1479, %v1478
    %v1481 = vextract.low.u32 %v1480
    %v1482 = vextract.high.u32 %v1480
    %v1483 = vmul.u32.u64.compose %v1479, %v1474
    %v1484 = vextract.low.u32 %v1483
    %v1485 = vextract.high.u32 %v1483
    %v1486 = vmul.u32 %v1479, %v1470
    %v1487 = vadd.s32 %v1482, %v1484
    %vm1488 = vc.u32 %v1482, %v1484
    %v1489 = vadd.s32 %v1485, 1
    %v1490 = vsel %vm1488, %v1489, %v1485
    %v1491 = vadd.s32 %v1486, %v1490
    %v1492 = vadd.s32 %v1491, 536870912
    %v1493 = vshrl.u32 %v1492, 30
    %v1494 = vshll.u32 %v1493, 30
    %v1495 = vsub.s32 %v1491, %v1494
    %vm1496 = vcmp.lt.s32.totalorder %v1495, 0
    %v1497 = vsub.s32 0, %v1495
    %v1498 = vsel %vm1496, %v1497, %v1495
    %v1499 = vclz %v1498
    %v1500 = vsub.s32 %v1499, 2
    %vm1501 = vcmp.gt.s32.totalorder 0, %v1500
    %v1502 = vsel %vm1501, 0, %v1500
    %v1503 = vsub.s32 32, %v1502
    %v1504 = vshll.u32 %v1495, %v1502
    %v1505 = vshrl.u32 %v1487, %v1503
    %v1506 = vor.u32 %v1504, %v1505
    %v1507 = vsub.s32 4294967266, %v1502
    %v1508 = vadd.s32 %v1507, 127
    %v1509 = vshll.u32 %v1508, 23
    %v1510 = vor.u32 4788187, %v1509
    %v1511 = vand.u32 2147483647, %v1510
    %v1513 = vcvt.s32.f32 %v1506
    %v1514 = vmul.f32 %v1513, %v1511
    %v1515 = vxor.u32 %v1514, 2147483648
    %v1516 = vsel %vm1433, %v1515, %v1514
    %v1517 = vsub.s32 4, %v1493
    %v1518 = vsel %vm1433, %v1517, %v1493
    %v1519 = vsel %vm1432, %v369, %v1516
    %v1520 = vsel %vm1432, 0, %v1518
    %v1521 = vcosq.f32.pop %v1519
    %v1522 = vsinq.f32.pop %v1519
    %vm1523 = vweird.f32 %v369
    %v1524 = vadd.s32 %v1520, 3
    %v1525 = vand.u32 %v1524, 3
    %vm1526 = vcmp.lt.s32.totalorder %v1525, 2
    %vm1527 = vcmp.eq.s32.totalorder %v1525, 0
    %v1528 = vxor.u32 %v1522, 2147483648
    %v1529 = vsel %vm1527, %v1521, %v1528
    %vm1530 = vcmp.eq.s32.totalorder %v1525, 2
    %v1531 = vxor.u32 %v1521, 2147483648
    %v1532 = vsel %vm1530, %v1531, %v1522
    %v1533 = vsel %vm1526, %v1529, %v1532
    %v1534 = vsel %vm1523, nan, %v1533
    %v1535 = vand.u32 2147483647, %v370
    %vm1536 = vcmp.le.f32.partialorder %v1535, 0.7853982
    %vm1537 = vcmp.lt.s32.totalorder %v370, 0
    %v1538 = vand.u32 %v370, 2139095040
    %v1539 = vshrl.u32 %v1538, 23
    %v1540 = vsub.s32 %v1539, 127
    %v1541 = vand.u32 2147483647, %v370
    %v1542 = vand.u32 %v1541, 8388607
    %v1543 = vor.u32 %v1542, 8388608
    %v1544 = vsub.s32 0, %v1543
    %v1545 = vadd.s32 %v1540, 1
    %vm1546 = vcmp.gt.s32.totalorder %v1545, 0
    %v1547 = vsel %vm1546, %v1545, 0
    %v1548 = vshrl.u32 %v1547, 5
    %v1549 = vand.u32 %v1547, 31
    %v1550 = vsub.s32 32, %v1549
    %v1551 = vshrl.u32 683565275, %v1550
    %v1552 = vshll.u32 683565275, %v1549
    %v1553 = vshrl.u32 2475754826, %v1550
    %v1554 = vor.u32 %v1552, %v1553
    %v1555 = vshll.u32 2475754826, %v1549
    %v1556 = vshrl.u32 2131351028, %v1550
    %v1557 = vor.u32 %v1555, %v1556
    %v1558 = vshll.u32 2131351028, %v1549
    %v1559 = vshrl.u32 2102212464, %v1550
    %v1560 = vor.u32 %v1558, %v1559
    %v1561 = vshll.u32 2102212464, %v1549
    %v1562 = vshrl.u32 920167782, %v1550
    %v1563 = vor.u32 %v1561, %v1562
    %v1564 = vshll.u32 920167782, %v1549
    %v1565 = vshrl.u32 1326507024, %v1550
    %v1566 = vor.u32 %v1564, %v1565
    %vm1567 = vcmp.lt.s32.totalorder %v1548, 1
    %vm1568 = vcmp.lt.s32.totalorder %v1548, 2
    %vm1569 = vcmp.lt.s32.totalorder %v1548, 3
    %vm1570 = vcmp.lt.s32.totalorder %v1548, 4
    %v1571 = vsel %vm1567, %v1551, %v1554
    %v1572 = vsel %vm1570, %v1560, 2102212464
    %v1573 = vsel %vm1569, %v1557, %v1572
    %v1574 = vsel %vm1568, %v1571, %v1573
    %v1575 = vsel %vm1567, %v1554, %v1557
    %v1576 = vsel %vm1570, %v1563, 920167782
    %v1577 = vsel %vm1569, %v1560, %v1576
    %v1578 = vsel %vm1568, %v1575, %v1577
    %v1579 = vsel %vm1567, %v1557, %v1560
    %v1580 = vsel %vm1570, %v1566, 1326507024
    %v1581 = vsel %vm1569, %v1563, %v1580
    %v1582 = vsel %vm1568, %v1579, %v1581
    %v1583 = vshll.u32 %v1543, 8
    %v1584 = vmul.u32.u64.compose %v1583, %v1582
    %v1585 = vextract.low.u32 %v1584
    %v1586 = vextract.high.u32 %v1584
    %v1587 = vmul.u32.u64.compose %v1583, %v1578
    %v1588 = vextract.low.u32 %v1587
    %v1589 = vextract.high.u32 %v1587
    %v1590 = vmul.u32 %v1583, %v1574
    %v1591 = vadd.s32 %v1586, %v1588
    %vm1592 = vc.u32 %v1586, %v1588
    %v1593 = vadd.s32 %v1589, 1
    %v1594 = vsel %vm1592, %v1593, %v1589
    %v1595 = vadd.s32 %v1590, %v1594
    %v1596 = vadd.s32 %v1595, 536870912
    %v1597 = vshrl.u32 %v1596, 30
    %v1598 = vshll.u32 %v1597, 30
    %v1599 = vsub.s32 %v1595, %v1598
    %vm1600 = vcmp.lt.s32.totalorder %v1599, 0
    %v1601 = vsub.s32 0, %v1599
    %v1602 = vsel %vm1600, %v1601, %v1599
    %v1603 = vclz %v1602
    %v1604 = vsub.s32 %v1603, 2
    %vm1605 = vcmp.gt.s32.totalorder 0, %v1604
    %v1606 = vsel %vm1605, 0, %v1604
    %v1607 = vsub.s32 32, %v1606
    %v1608 = vshll.u32 %v1599, %v1606
    %v1609 = vshrl.u32 %v1591, %v1607
    %v1610 = vor.u32 %v1608, %v1609
    %v1611 = vsub.s32 4294967266, %v1606
    %v1612 = vadd.s32 %v1611, 127
    %v1613 = vshll.u32 %v1612, 23
    %v1614 = vor.u32 4788187, %v1613
    %v1615 = vand.u32 2147483647, %v1614
    %v1617 = vcvt.s32.f32 %v1610
    %v1618 = vmul.f32 %v1617, %v1615
    %v1619 = vxor.u32 %v1618, 2147483648
    %v1620 = vsel %vm1537, %v1619, %v1618
    %v1621 = vsub.s32 4, %v1597
    %v1622 = vsel %vm1537, %v1621, %v1597
    %v1623 = vsel %vm1536, %v370, %v1620
    %v1624 = vsel %vm1536, 0, %v1622
    %v1625 = vcosq.f32.pop %v1623
    %v1626 = vsinq.f32.pop %v1623
    %vm1627 = vweird.f32 %v370
    %v1628 = vadd.s32 %v1624, 3
    %v1629 = vand.u32 %v1628, 3
    %vm1630 = vcmp.lt.s32.totalorder %v1629, 2
    %vm1631 = vcmp.eq.s32.totalorder %v1629, 0
    %v1632 = vxor.u32 %v1626, 2147483648
    %v1633 = vsel %vm1631, %v1625, %v1632
    %vm1634 = vcmp.eq.s32.totalorder %v1629, 2
    %v1635 = vxor.u32 %v1625, 2147483648
    %v1636 = vsel %vm1634, %v1635, %v1626
    %v1637 = vsel %vm1630, %v1633, %v1636
    %v1638 = vsel %vm1627, nan, %v1637
    %v1639 = vand.u32 2147483647, %v371
    %vm1640 = vcmp.le.f32.partialorder %v1639, 0.7853982
    %vm1641 = vcmp.lt.s32.totalorder %v371, 0
    %v1642 = vand.u32 %v371, 2139095040
    %v1643 = vshrl.u32 %v1642, 23
    %v1644 = vsub.s32 %v1643, 127
    %v1645 = vand.u32 2147483647, %v371
    %v1646 = vand.u32 %v1645, 8388607
    %v1647 = vor.u32 %v1646, 8388608
    %v1648 = vsub.s32 0, %v1647
    %v1649 = vadd.s32 %v1644, 1
    %vm1650 = vcmp.gt.s32.totalorder %v1649, 0
    %v1651 = vsel %vm1650, %v1649, 0
    %v1652 = vshrl.u32 %v1651, 5
    %v1653 = vand.u32 %v1651, 31
    %v1654 = vsub.s32 32, %v1653
    %v1655 = vshrl.u32 683565275, %v1654
    %v1656 = vshll.u32 683565275, %v1653
    %v1657 = vshrl.u32 2475754826, %v1654
    %v1658 = vor.u32 %v1656, %v1657
    %v1659 = vshll.u32 2475754826, %v1653
    %v1660 = vshrl.u32 2131351028, %v1654
    %v1661 = vor.u32 %v1659, %v1660
    %v1662 = vshll.u32 2131351028, %v1653
    %v1663 = vshrl.u32 2102212464, %v1654
    %v1664 = vor.u32 %v1662, %v1663
    %v1665 = vshll.u32 2102212464, %v1653
    %v1666 = vshrl.u32 920167782, %v1654
    %v1667 = vor.u32 %v1665, %v1666
    %v1668 = vshll.u32 920167782, %v1653
    %v1669 = vshrl.u32 1326507024, %v1654
    %v1670 = vor.u32 %v1668, %v1669
    %vm1671 = vcmp.lt.s32.totalorder %v1652, 1
    %vm1672 = vcmp.lt.s32.totalorder %v1652, 2
    %vm1673 = vcmp.lt.s32.totalorder %v1652, 3
    %vm1674 = vcmp.lt.s32.totalorder %v1652, 4
    %v1675 = vsel %vm1671, %v1655, %v1658
    %v1676 = vsel %vm1674, %v1664, 2102212464
    %v1677 = vsel %vm1673, %v1661, %v1676
    %v1678 = vsel %vm1672, %v1675, %v1677
    %v1679 = vsel %vm1671, %v1658, %v1661
    %v1680 = vsel %vm1674, %v1667, 920167782
    %v1681 = vsel %vm1673, %v1664, %v1680
    %v1682 = vsel %vm1672, %v1679, %v1681
    %v1683 = vsel %vm1671, %v1661, %v1664
    %v1684 = vsel %vm1674, %v1670, 1326507024
    %v1685 = vsel %vm1673, %v1667, %v1684
    %v1686 = vsel %vm1672, %v1683, %v1685
    %v1687 = vshll.u32 %v1647, 8
    %v1688 = vmul.u32.u64.compose %v1687, %v1686
    %v1689 = vextract.low.u32 %v1688
    %v1690 = vextract.high.u32 %v1688
    %v1691 = vmul.u32.u64.compose %v1687, %v1682
    %v1692 = vextract.low.u32 %v1691
    %v1693 = vextract.high.u32 %v1691
    %v1694 = vmul.u32 %v1687, %v1678
    %v1695 = vadd.s32 %v1690, %v1692
    %vm1696 = vc.u32 %v1690, %v1692
    %v1697 = vadd.s32 %v1693, 1
    %v1698 = vsel %vm1696, %v1697, %v1693
    %v1699 = vadd.s32 %v1694, %v1698
    %v1700 = vadd.s32 %v1699, 536870912
    %v1701 = vshrl.u32 %v1700, 30
    %v1702 = vshll.u32 %v1701, 30
    %v1703 = vsub.s32 %v1699, %v1702
    %vm1704 = vcmp.lt.s32.totalorder %v1703, 0
    %v1705 = vsub.s32 0, %v1703
    %v1706 = vsel %vm1704, %v1705, %v1703
    %v1707 = vclz %v1706
    %v1708 = vsub.s32 %v1707, 2
    %vm1709 = vcmp.gt.s32.totalorder 0, %v1708
    %v1710 = vsel %vm1709, 0, %v1708
    %v1711 = vsub.s32 32, %v1710
    %v1712 = vshll.u32 %v1703, %v1710
    %v1713 = vshrl.u32 %v1695, %v1711
    %v1714 = vor.u32 %v1712, %v1713
    %v1715 = vsub.s32 4294967266, %v1710
    %v1716 = vadd.s32 %v1715, 127
    %v1717 = vshll.u32 %v1716, 23
    %v1718 = vor.u32 4788187, %v1717
    %v1719 = vand.u32 2147483647, %v1718
    %v1721 = vcvt.s32.f32 %v1714
    %v1722 = vmul.f32 %v1721, %v1719
    %v1723 = vxor.u32 %v1722, 2147483648
    %v1724 = vsel %vm1641, %v1723, %v1722
    %v1725 = vsub.s32 4, %v1701
    %v1726 = vsel %vm1641, %v1725, %v1701
    %v1727 = vsel %vm1640, %v371, %v1724
    %v1728 = vsel %vm1640, 0, %v1726
    %v1729 = vcosq.f32.pop %v1727
    %v1730 = vsinq.f32.pop %v1727
    %vm1731 = vweird.f32 %v371
    %v1732 = vadd.s32 %v1728, 3
    %v1733 = vand.u32 %v1732, 3
    %vm1734 = vcmp.lt.s32.totalorder %v1733, 2
    %vm1735 = vcmp.eq.s32.totalorder %v1733, 0
    %v1736 = vxor.u32 %v1730, 2147483648
    %v1737 = vsel %vm1735, %v1729, %v1736
    %vm1738 = vcmp.eq.s32.totalorder %v1733, 2
    %v1739 = vxor.u32 %v1729, 2147483648
    %v1740 = vsel %vm1738, %v1739, %v1730
    %v1741 = vsel %vm1734, %v1737, %v1740
    %v1742 = vsel %vm1731, nan, %v1741
    %v1743 = vand.u32 2147483647, %v372
    %vm1744 = vcmp.le.f32.partialorder %v1743, 0.7853982
    %vm1745 = vcmp.lt.s32.totalorder %v372, 0
    %v1746 = vand.u32 %v372, 2139095040
    %v1747 = vshrl.u32 %v1746, 23
    %v1748 = vsub.s32 %v1747, 127
    %v1749 = vand.u32 2147483647, %v372
    %v1750 = vand.u32 %v1749, 8388607
    %v1751 = vor.u32 %v1750, 8388608
    %v1752 = vsub.s32 0, %v1751
    %v1753 = vadd.s32 %v1748, 1
    %vm1754 = vcmp.gt.s32.totalorder %v1753, 0
    %v1755 = vsel %vm1754, %v1753, 0
    %v1756 = vshrl.u32 %v1755, 5
    %v1757 = vand.u32 %v1755, 31
    %v1758 = vsub.s32 32, %v1757
    %v1759 = vshrl.u32 683565275, %v1758
    %v1760 = vshll.u32 683565275, %v1757
    %v1761 = vshrl.u32 2475754826, %v1758
    %v1762 = vor.u32 %v1760, %v1761
    %v1763 = vshll.u32 2475754826, %v1757
    %v1764 = vshrl.u32 2131351028, %v1758
    %v1765 = vor.u32 %v1763, %v1764
    %v1766 = vshll.u32 2131351028, %v1757
    %v1767 = vshrl.u32 2102212464, %v1758
    %v1768 = vor.u32 %v1766, %v1767
    %v1769 = vshll.u32 2102212464, %v1757
    %v1770 = vshrl.u32 920167782, %v1758
    %v1771 = vor.u32 %v1769, %v1770
    %v1772 = vshll.u32 920167782, %v1757
    %v1773 = vshrl.u32 1326507024, %v1758
    %v1774 = vor.u32 %v1772, %v1773
    %vm1775 = vcmp.lt.s32.totalorder %v1756, 1
    %vm1776 = vcmp.lt.s32.totalorder %v1756, 2
    %vm1777 = vcmp.lt.s32.totalorder %v1756, 3
    %vm1778 = vcmp.lt.s32.totalorder %v1756, 4
    %v1779 = vsel %vm1775, %v1759, %v1762
    %v1780 = vsel %vm1778, %v1768, 2102212464
    %v1781 = vsel %vm1777, %v1765, %v1780
    %v1782 = vsel %vm1776, %v1779, %v1781
    %v1783 = vsel %vm1775, %v1762, %v1765
    %v1784 = vsel %vm1778, %v1771, 920167782
    %v1785 = vsel %vm1777, %v1768, %v1784
    %v1786 = vsel %vm1776, %v1783, %v1785
    %v1787 = vsel %vm1775, %v1765, %v1768
    %v1788 = vsel %vm1778, %v1774, 1326507024
    %v1789 = vsel %vm1777, %v1771, %v1788
    %v1790 = vsel %vm1776, %v1787, %v1789
    %v1791 = vshll.u32 %v1751, 8
    %v1792 = vmul.u32.u64.compose %v1791, %v1790
    %v1793 = vextract.low.u32 %v1792
    %v1794 = vextract.high.u32 %v1792
    %v1795 = vmul.u32.u64.compose %v1791, %v1786
    %v1796 = vextract.low.u32 %v1795
    %v1797 = vextract.high.u32 %v1795
    %v1798 = vmul.u32 %v1791, %v1782
    %v1799 = vadd.s32 %v1794, %v1796
    %vm1800 = vc.u32 %v1794, %v1796
    %v1801 = vadd.s32 %v1797, 1
    %v1802 = vsel %vm1800, %v1801, %v1797
    %v1803 = vadd.s32 %v1798, %v1802
    %v1804 = vadd.s32 %v1803, 536870912
    %v1805 = vshrl.u32 %v1804, 30
    %v1806 = vshll.u32 %v1805, 30
    %v1807 = vsub.s32 %v1803, %v1806
    %vm1808 = vcmp.lt.s32.totalorder %v1807, 0
    %v1809 = vsub.s32 0, %v1807
    %v1810 = vsel %vm1808, %v1809, %v1807
    %v1811 = vclz %v1810
    %v1812 = vsub.s32 %v1811, 2
    %vm1813 = vcmp.gt.s32.totalorder 0, %v1812
    %v1814 = vsel %vm1813, 0, %v1812
    %v1815 = vsub.s32 32, %v1814
    %v1816 = vshll.u32 %v1807, %v1814
    %v1817 = vshrl.u32 %v1799, %v1815
    %v1818 = vor.u32 %v1816, %v1817
    %v1819 = vsub.s32 4294967266, %v1814
    %v1820 = vadd.s32 %v1819, 127
    %v1821 = vshll.u32 %v1820, 23
    %v1822 = vor.u32 4788187, %v1821
    %v1823 = vand.u32 2147483647, %v1822
    %v1825 = vcvt.s32.f32 %v1818
    %v1826 = vmul.f32 %v1825, %v1823
    %v1827 = vxor.u32 %v1826, 2147483648
    %v1828 = vsel %vm1745, %v1827, %v1826
    %v1829 = vsub.s32 4, %v1805
    %v1830 = vsel %vm1745, %v1829, %v1805
    %v1831 = vsel %vm1744, %v372, %v1828
    %v1832 = vsel %vm1744, 0, %v1830
    %v1833 = vcosq.f32.pop %v1831
    %v1834 = vsinq.f32.pop %v1831
    %vm1835 = vweird.f32 %v372
    %v1836 = vadd.s32 %v1832, 3
    %v1837 = vand.u32 %v1836, 3
    %vm1838 = vcmp.lt.s32.totalorder %v1837, 2
    %vm1839 = vcmp.eq.s32.totalorder %v1837, 0
    %v1840 = vxor.u32 %v1834, 2147483648
    %v1841 = vsel %vm1839, %v1833, %v1840
    %vm1842 = vcmp.eq.s32.totalorder %v1837, 2
    %v1843 = vxor.u32 %v1833, 2147483648
    %v1844 = vsel %vm1842, %v1843, %v1834
    %v1845 = vsel %vm1838, %v1841, %v1844
    %v1846 = vsel %vm1835, nan, %v1845
    %v1847 = vand.u32 2147483647, %v373
    %vm1848 = vcmp.le.f32.partialorder %v1847, 0.7853982
    %vm1849 = vcmp.lt.s32.totalorder %v373, 0
    %v1850 = vand.u32 %v373, 2139095040
    %v1851 = vshrl.u32 %v1850, 23
    %v1852 = vsub.s32 %v1851, 127
    %v1853 = vand.u32 2147483647, %v373
    %v1854 = vand.u32 %v1853, 8388607
    %v1855 = vor.u32 %v1854, 8388608
    %v1856 = vsub.s32 0, %v1855
    %v1857 = vadd.s32 %v1852, 1
    %vm1858 = vcmp.gt.s32.totalorder %v1857, 0
    %v1859 = vsel %vm1858, %v1857, 0
    %v1860 = vshrl.u32 %v1859, 5
    %v1861 = vand.u32 %v1859, 31
    %v1862 = vsub.s32 32, %v1861
    %v1863 = vshrl.u32 683565275, %v1862
    %v1864 = vshll.u32 683565275, %v1861
    %v1865 = vshrl.u32 2475754826, %v1862
    %v1866 = vor.u32 %v1864, %v1865
    %v1867 = vshll.u32 2475754826, %v1861
    %v1868 = vshrl.u32 2131351028, %v1862
    %v1869 = vor.u32 %v1867, %v1868
    %v1870 = vshll.u32 2131351028, %v1861
    %v1871 = vshrl.u32 2102212464, %v1862
    %v1872 = vor.u32 %v1870, %v1871
    %v1873 = vshll.u32 2102212464, %v1861
    %v1874 = vshrl.u32 920167782, %v1862
    %v1875 = vor.u32 %v1873, %v1874
    %v1876 = vshll.u32 920167782, %v1861
    %v1877 = vshrl.u32 1326507024, %v1862
    %v1878 = vor.u32 %v1876, %v1877
    %vm1879 = vcmp.lt.s32.totalorder %v1860, 1
    %vm1880 = vcmp.lt.s32.totalorder %v1860, 2
    %vm1881 = vcmp.lt.s32.totalorder %v1860, 3
    %vm1882 = vcmp.lt.s32.totalorder %v1860, 4
    %v1883 = vsel %vm1879, %v1863, %v1866
    %v1884 = vsel %vm1882, %v1872, 2102212464
    %v1885 = vsel %vm1881, %v1869, %v1884
    %v1886 = vsel %vm1880, %v1883, %v1885
    %v1887 = vsel %vm1879, %v1866, %v1869
    %v1888 = vsel %vm1882, %v1875, 920167782
    %v1889 = vsel %vm1881, %v1872, %v1888
    %v1890 = vsel %vm1880, %v1887, %v1889
    %v1891 = vsel %vm1879, %v1869, %v1872
    %v1892 = vsel %vm1882, %v1878, 1326507024
    %v1893 = vsel %vm1881, %v1875, %v1892
    %v1894 = vsel %vm1880, %v1891, %v1893
    %v1895 = vshll.u32 %v1855, 8
    %v1896 = vmul.u32.u64.compose %v1895, %v1894
    %v1897 = vextract.low.u32 %v1896
    %v1898 = vextract.high.u32 %v1896
    %v1899 = vmul.u32.u64.compose %v1895, %v1890
    %v1900 = vextract.low.u32 %v1899
    %v1901 = vextract.high.u32 %v1899
    %v1902 = vmul.u32 %v1895, %v1886
    %v1903 = vadd.s32 %v1898, %v1900
    %vm1904 = vc.u32 %v1898, %v1900
    %v1905 = vadd.s32 %v1901, 1
    %v1906 = vsel %vm1904, %v1905, %v1901
    %v1907 = vadd.s32 %v1902, %v1906
    %v1908 = vadd.s32 %v1907, 536870912
    %v1909 = vshrl.u32 %v1908, 30
    %v1910 = vshll.u32 %v1909, 30
    %v1911 = vsub.s32 %v1907, %v1910
    %vm1912 = vcmp.lt.s32.totalorder %v1911, 0
    %v1913 = vsub.s32 0, %v1911
    %v1914 = vsel %vm1912, %v1913, %v1911
    %v1915 = vclz %v1914
    %v1916 = vsub.s32 %v1915, 2
    %vm1917 = vcmp.gt.s32.totalorder 0, %v1916
    %v1918 = vsel %vm1917, 0, %v1916
    %v1919 = vsub.s32 32, %v1918
    %v1920 = vshll.u32 %v1911, %v1918
    %v1921 = vshrl.u32 %v1903, %v1919
    %v1922 = vor.u32 %v1920, %v1921
    %v1923 = vsub.s32 4294967266, %v1918
    %v1924 = vadd.s32 %v1923, 127
    %v1925 = vshll.u32 %v1924, 23
    %v1926 = vor.u32 4788187, %v1925
    %v1927 = vand.u32 2147483647, %v1926
    %v1929 = vcvt.s32.f32 %v1922
    %v1930 = vmul.f32 %v1929, %v1927
    %v1931 = vxor.u32 %v1930, 2147483648
    %v1932 = vsel %vm1849, %v1931, %v1930
    %v1933 = vsub.s32 4, %v1909
    %v1934 = vsel %vm1849, %v1933, %v1909
    %v1935 = vsel %vm1848, %v373, %v1932
    %v1936 = vsel %vm1848, 0, %v1934
    %v1937 = vcosq.f32.pop %v1935
    %v1938 = vsinq.f32.pop %v1935
    %vm1939 = vweird.f32 %v373
    %v1940 = vadd.s32 %v1936, 3
    %v1941 = vand.u32 %v1940, 3
    %vm1942 = vcmp.lt.s32.totalorder %v1941, 2
    %vm1943 = vcmp.eq.s32.totalorder %v1941, 0
    %v1944 = vxor.u32 %v1938, 2147483648
    %v1945 = vsel %vm1943, %v1937, %v1944
    %vm1946 = vcmp.eq.s32.totalorder %v1941, 2
    %v1947 = vxor.u32 %v1937, 2147483648
    %v1948 = vsel %vm1946, %v1947, %v1938
    %v1949 = vsel %vm1942, %v1945, %v1948
    %v1950 = vsel %vm1939, nan, %v1949
    %v1951 = vand.u32 2147483647, %v374
    %vm1952 = vcmp.le.f32.partialorder %v1951, 0.7853982
    %vm1953 = vcmp.lt.s32.totalorder %v374, 0
    %v1954 = vand.u32 %v374, 2139095040
    %v1955 = vshrl.u32 %v1954, 23
    %v1956 = vsub.s32 %v1955, 127
    %v1957 = vand.u32 2147483647, %v374
    %v1958 = vand.u32 %v1957, 8388607
    %v1959 = vor.u32 %v1958, 8388608
    %v1960 = vsub.s32 0, %v1959
    %v1961 = vadd.s32 %v1956, 1
    %vm1962 = vcmp.gt.s32.totalorder %v1961, 0
    %v1963 = vsel %vm1962, %v1961, 0
    %v1964 = vshrl.u32 %v1963, 5
    %v1965 = vand.u32 %v1963, 31
    %v1966 = vsub.s32 32, %v1965
    %v1967 = vshrl.u32 683565275, %v1966
    %v1968 = vshll.u32 683565275, %v1965
    %v1969 = vshrl.u32 2475754826, %v1966
    %v1970 = vor.u32 %v1968, %v1969
    %v1971 = vshll.u32 2475754826, %v1965
    %v1972 = vshrl.u32 2131351028, %v1966
    %v1973 = vor.u32 %v1971, %v1972
    %v1974 = vshll.u32 2131351028, %v1965
    %v1975 = vshrl.u32 2102212464, %v1966
    %v1976 = vor.u32 %v1974, %v1975
    %v1977 = vshll.u32 2102212464, %v1965
    %v1978 = vshrl.u32 920167782, %v1966
    %v1979 = vor.u32 %v1977, %v1978
    %v1980 = vshll.u32 920167782, %v1965
    %v1981 = vshrl.u32 1326507024, %v1966
    %v1982 = vor.u32 %v1980, %v1981
    %vm1983 = vcmp.lt.s32.totalorder %v1964, 1
    %vm1984 = vcmp.lt.s32.totalorder %v1964, 2
    %vm1985 = vcmp.lt.s32.totalorder %v1964, 3
    %vm1986 = vcmp.lt.s32.totalorder %v1964, 4
    %v1987 = vsel %vm1983, %v1967, %v1970
    %v1988 = vsel %vm1986, %v1976, 2102212464
    %v1989 = vsel %vm1985, %v1973, %v1988
    %v1990 = vsel %vm1984, %v1987, %v1989
    %v1991 = vsel %vm1983, %v1970, %v1973
    %v1992 = vsel %vm1986, %v1979, 920167782
    %v1993 = vsel %vm1985, %v1976, %v1992
    %v1994 = vsel %vm1984, %v1991, %v1993
    %v1995 = vsel %vm1983, %v1973, %v1976
    %v1996 = vsel %vm1986, %v1982, 1326507024
    %v1997 = vsel %vm1985, %v1979, %v1996
    %v1998 = vsel %vm1984, %v1995, %v1997
    %v1999 = vshll.u32 %v1959, 8
    %v2000 = vmul.u32.u64.compose %v1999, %v1998
    %v2001 = vextract.low.u32 %v2000
    %v2002 = vextract.high.u32 %v2000
    %v2003 = vmul.u32.u64.compose %v1999, %v1994
    %v2004 = vextract.low.u32 %v2003
    %v2005 = vextract.high.u32 %v2003
    %v2006 = vmul.u32 %v1999, %v1990
    %v2007 = vadd.s32 %v2002, %v2004
    %vm2008 = vc.u32 %v2002, %v2004
    %v2009 = vadd.s32 %v2005, 1
    %v2010 = vsel %vm2008, %v2009, %v2005
    %v2011 = vadd.s32 %v2006, %v2010
    %v2012 = vadd.s32 %v2011, 536870912
    %v2013 = vshrl.u32 %v2012, 30
    %v2014 = vshll.u32 %v2013, 30
    %v2015 = vsub.s32 %v2011, %v2014
    %vm2016 = vcmp.lt.s32.totalorder %v2015, 0
    %v2017 = vsub.s32 0, %v2015
    %v2018 = vsel %vm2016, %v2017, %v2015
    %v2019 = vclz %v2018
    %v2020 = vsub.s32 %v2019, 2
    %vm2021 = vcmp.gt.s32.totalorder 0, %v2020
    %v2022 = vsel %vm2021, 0, %v2020
    %v2023 = vsub.s32 32, %v2022
    %v2024 = vshll.u32 %v2015, %v2022
    %v2025 = vshrl.u32 %v2007, %v2023
    %v2026 = vor.u32 %v2024, %v2025
    %v2027 = vsub.s32 4294967266, %v2022
    %v2028 = vadd.s32 %v2027, 127
    %v2029 = vshll.u32 %v2028, 23
    %v2030 = vor.u32 4788187, %v2029
    %v2031 = vand.u32 2147483647, %v2030
    %v2033 = vcvt.s32.f32 %v2026
    %v2034 = vmul.f32 %v2033, %v2031
    %v2035 = vxor.u32 %v2034, 2147483648
    %v2036 = vsel %vm1953, %v2035, %v2034
    %v2037 = vsub.s32 4, %v2013
    %v2038 = vsel %vm1953, %v2037, %v2013
    %v2039 = vsel %vm1952, %v374, %v2036
    %v2040 = vsel %vm1952, 0, %v2038
    %v2041 = vcosq.f32.pop %v2039
    %v2042 = vsinq.f32.pop %v2039
    %vm2043 = vweird.f32 %v374
    %v2044 = vadd.s32 %v2040, 3
    %v2045 = vand.u32 %v2044, 3
    %vm2046 = vcmp.lt.s32.totalorder %v2045, 2
    %vm2047 = vcmp.eq.s32.totalorder %v2045, 0
    %v2048 = vxor.u32 %v2042, 2147483648
    %v2049 = vsel %vm2047, %v2041, %v2048
    %vm2050 = vcmp.eq.s32.totalorder %v2045, 2
    %v2051 = vxor.u32 %v2041, 2147483648
    %v2052 = vsel %vm2050, %v2051, %v2042
    %v2053 = vsel %vm2046, %v2049, %v2052
    %v2054 = vsel %vm2043, nan, %v2053
    %v2055 = vand.u32 2147483647, %v375
    %vm2056 = vcmp.le.f32.partialorder %v2055, 0.7853982
    %vm2057 = vcmp.lt.s32.totalorder %v375, 0
    %v2058 = vand.u32 %v375, 2139095040
    %v2059 = vshrl.u32 %v2058, 23
    %v2060 = vsub.s32 %v2059, 127
    %v2061 = vand.u32 2147483647, %v375
    %v2062 = vand.u32 %v2061, 8388607
    %v2063 = vor.u32 %v2062, 8388608
    %v2064 = vsub.s32 0, %v2063
    %v2065 = vadd.s32 %v2060, 1
    %vm2066 = vcmp.gt.s32.totalorder %v2065, 0
    %v2067 = vsel %vm2066, %v2065, 0
    %v2068 = vshrl.u32 %v2067, 5
    %v2069 = vand.u32 %v2067, 31
    %v2070 = vsub.s32 32, %v2069
    %v2071 = vshrl.u32 683565275, %v2070
    %v2072 = vshll.u32 683565275, %v2069
    %v2073 = vshrl.u32 2475754826, %v2070
    %v2074 = vor.u32 %v2072, %v2073
    %v2075 = vshll.u32 2475754826, %v2069
    %v2076 = vshrl.u32 2131351028, %v2070
    %v2077 = vor.u32 %v2075, %v2076
    %v2078 = vshll.u32 2131351028, %v2069
    %v2079 = vshrl.u32 2102212464, %v2070
    %v2080 = vor.u32 %v2078, %v2079
    %v2081 = vshll.u32 2102212464, %v2069
    %v2082 = vshrl.u32 920167782, %v2070
    %v2083 = vor.u32 %v2081, %v2082
    %v2084 = vshll.u32 920167782, %v2069
    %v2085 = vshrl.u32 1326507024, %v2070
    %v2086 = vor.u32 %v2084, %v2085
    %vm2087 = vcmp.lt.s32.totalorder %v2068, 1
    %vm2088 = vcmp.lt.s32.totalorder %v2068, 2
    %vm2089 = vcmp.lt.s32.totalorder %v2068, 3
    %vm2090 = vcmp.lt.s32.totalorder %v2068, 4
    %v2091 = vsel %vm2087, %v2071, %v2074
    %v2092 = vsel %vm2090, %v2080, 2102212464
    %v2093 = vsel %vm2089, %v2077, %v2092
    %v2094 = vsel %vm2088, %v2091, %v2093
    %v2095 = vsel %vm2087, %v2074, %v2077
    %v2096 = vsel %vm2090, %v2083, 920167782
    %v2097 = vsel %vm2089, %v2080, %v2096
    %v2098 = vsel %vm2088, %v2095, %v2097
    %v2099 = vsel %vm2087, %v2077, %v2080
    %v2100 = vsel %vm2090, %v2086, 1326507024
    %v2101 = vsel %vm2089, %v2083, %v2100
    %v2102 = vsel %vm2088, %v2099, %v2101
    %v2103 = vshll.u32 %v2063, 8
    %v2104 = vmul.u32.u64.compose %v2103, %v2102
    %v2105 = vextract.low.u32 %v2104
    %v2106 = vextract.high.u32 %v2104
    %v2107 = vmul.u32.u64.compose %v2103, %v2098
    %v2108 = vextract.low.u32 %v2107
    %v2109 = vextract.high.u32 %v2107
    %v2110 = vmul.u32 %v2103, %v2094
    %v2111 = vadd.s32 %v2106, %v2108
    %vm2112 = vc.u32 %v2106, %v2108
    %v2113 = vadd.s32 %v2109, 1
    %v2114 = vsel %vm2112, %v2113, %v2109
    %v2115 = vadd.s32 %v2110, %v2114
    %v2116 = vadd.s32 %v2115, 536870912
    %v2117 = vshrl.u32 %v2116, 30
    %v2118 = vshll.u32 %v2117, 30
    %v2119 = vsub.s32 %v2115, %v2118
    %vm2120 = vcmp.lt.s32.totalorder %v2119, 0
    %v2121 = vsub.s32 0, %v2119
    %v2122 = vsel %vm2120, %v2121, %v2119
    %v2123 = vclz %v2122
    %v2124 = vsub.s32 %v2123, 2
    %vm2125 = vcmp.gt.s32.totalorder 0, %v2124
    %v2126 = vsel %vm2125, 0, %v2124
    %v2127 = vsub.s32 32, %v2126
    %v2128 = vshll.u32 %v2119, %v2126
    %v2129 = vshrl.u32 %v2111, %v2127
    %v2130 = vor.u32 %v2128, %v2129
    %v2131 = vsub.s32 4294967266, %v2126
    %v2132 = vadd.s32 %v2131, 127
    %v2133 = vshll.u32 %v2132, 23
    %v2134 = vor.u32 4788187, %v2133
    %v2135 = vand.u32 2147483647, %v2134
    %v2137 = vcvt.s32.f32 %v2130
    %v2138 = vmul.f32 %v2137, %v2135
    %v2139 = vxor.u32 %v2138, 2147483648
    %v2140 = vsel %vm2057, %v2139, %v2138
    %v2141 = vsub.s32 4, %v2117
    %v2142 = vsel %vm2057, %v2141, %v2117
    %v2143 = vsel %vm2056, %v375, %v2140
    %v2144 = vsel %vm2056, 0, %v2142
    %v2145 = vcosq.f32.pop %v2143
    %v2146 = vsinq.f32.pop %v2143
    %vm2147 = vweird.f32 %v375
    %v2148 = vadd.s32 %v2144, 3
    %v2149 = vand.u32 %v2148, 3
    %vm2150 = vcmp.lt.s32.totalorder %v2149, 2
    %vm2151 = vcmp.eq.s32.totalorder %v2149, 0
    %v2152 = vxor.u32 %v2146, 2147483648
    %v2153 = vsel %vm2151, %v2145, %v2152
    %vm2154 = vcmp.eq.s32.totalorder %v2149, 2
    %v2155 = vxor.u32 %v2145, 2147483648
    %v2156 = vsel %vm2154, %v2155, %v2146
    %v2157 = vsel %vm2150, %v2153, %v2156
    %v2158 = vsel %vm2147, nan, %v2157
    %v2159 = vand.u32 2147483647, %v376
    %vm2160 = vcmp.le.f32.partialorder %v2159, 0.7853982
    %vm2161 = vcmp.lt.s32.totalorder %v376, 0
    %v2162 = vand.u32 %v376, 2139095040
    %v2163 = vshrl.u32 %v2162, 23
    %v2164 = vsub.s32 %v2163, 127
    %v2165 = vand.u32 2147483647, %v376
    %v2166 = vand.u32 %v2165, 8388607
    %v2167 = vor.u32 %v2166, 8388608
    %v2168 = vsub.s32 0, %v2167
    %v2169 = vadd.s32 %v2164, 1
    %vm2170 = vcmp.gt.s32.totalorder %v2169, 0
    %v2171 = vsel %vm2170, %v2169, 0
    %v2172 = vshrl.u32 %v2171, 5
    %v2173 = vand.u32 %v2171, 31
    %v2174 = vsub.s32 32, %v2173
    %v2175 = vshrl.u32 683565275, %v2174
    %v2176 = vshll.u32 683565275, %v2173
    %v2177 = vshrl.u32 2475754826, %v2174
    %v2178 = vor.u32 %v2176, %v2177
    %v2179 = vshll.u32 2475754826, %v2173
    %v2180 = vshrl.u32 2131351028, %v2174
    %v2181 = vor.u32 %v2179, %v2180
    %v2182 = vshll.u32 2131351028, %v2173
    %v2183 = vshrl.u32 2102212464, %v2174
    %v2184 = vor.u32 %v2182, %v2183
    %v2185 = vshll.u32 2102212464, %v2173
    %v2186 = vshrl.u32 920167782, %v2174
    %v2187 = vor.u32 %v2185, %v2186
    %v2188 = vshll.u32 920167782, %v2173
    %v2189 = vshrl.u32 1326507024, %v2174
    %v2190 = vor.u32 %v2188, %v2189
    %vm2191 = vcmp.lt.s32.totalorder %v2172, 1
    %vm2192 = vcmp.lt.s32.totalorder %v2172, 2
    %vm2193 = vcmp.lt.s32.totalorder %v2172, 3
    %vm2194 = vcmp.lt.s32.totalorder %v2172, 4
    %v2195 = vsel %vm2191, %v2175, %v2178
    %v2196 = vsel %vm2194, %v2184, 2102212464
    %v2197 = vsel %vm2193, %v2181, %v2196
    %v2198 = vsel %vm2192, %v2195, %v2197
    %v2199 = vsel %vm2191, %v2178, %v2181
    %v2200 = vsel %vm2194, %v2187, 920167782
    %v2201 = vsel %vm2193, %v2184, %v2200
    %v2202 = vsel %vm2192, %v2199, %v2201
    %v2203 = vsel %vm2191, %v2181, %v2184
    %v2204 = vsel %vm2194, %v2190, 1326507024
    %v2205 = vsel %vm2193, %v2187, %v2204
    %v2206 = vsel %vm2192, %v2203, %v2205
    %v2207 = vshll.u32 %v2167, 8
    %v2208 = vmul.u32.u64.compose %v2207, %v2206
    %v2209 = vextract.low.u32 %v2208
    %v2210 = vextract.high.u32 %v2208
    %v2211 = vmul.u32.u64.compose %v2207, %v2202
    %v2212 = vextract.low.u32 %v2211
    %v2213 = vextract.high.u32 %v2211
    %v2214 = vmul.u32 %v2207, %v2198
    %v2215 = vadd.s32 %v2210, %v2212
    %vm2216 = vc.u32 %v2210, %v2212
    %v2217 = vadd.s32 %v2213, 1
    %v2218 = vsel %vm2216, %v2217, %v2213
    %v2219 = vadd.s32 %v2214, %v2218
    %v2220 = vadd.s32 %v2219, 536870912
    %v2221 = vshrl.u32 %v2220, 30
    %v2222 = vshll.u32 %v2221, 30
    %v2223 = vsub.s32 %v2219, %v2222
    %vm2224 = vcmp.lt.s32.totalorder %v2223, 0
    %v2225 = vsub.s32 0, %v2223
    %v2226 = vsel %vm2224, %v2225, %v2223
    %v2227 = vclz %v2226
    %v2228 = vsub.s32 %v2227, 2
    %vm2229 = vcmp.gt.s32.totalorder 0, %v2228
    %v2230 = vsel %vm2229, 0, %v2228
    %v2231 = vsub.s32 32, %v2230
    %v2232 = vshll.u32 %v2223, %v2230
    %v2233 = vshrl.u32 %v2215, %v2231
    %v2234 = vor.u32 %v2232, %v2233
    %v2235 = vsub.s32 4294967266, %v2230
    %v2236 = vadd.s32 %v2235, 127
    %v2237 = vshll.u32 %v2236, 23
    %v2238 = vor.u32 4788187, %v2237
    %v2239 = vand.u32 2147483647, %v2238
    %v2241 = vcvt.s32.f32 %v2234
    %v2242 = vmul.f32 %v2241, %v2239
    %v2243 = vxor.u32 %v2242, 2147483648
    %v2244 = vsel %vm2161, %v2243, %v2242
    %v2245 = vsub.s32 4, %v2221
    %v2246 = vsel %vm2161, %v2245, %v2221
    %v2247 = vsel %vm2160, %v376, %v2244
    %v2248 = vsel %vm2160, 0, %v2246
    %v2249 = vcosq.f32.pop %v2247
    %v2250 = vsinq.f32.pop %v2247
    %vm2251 = vweird.f32 %v376
    %v2252 = vadd.s32 %v2248, 3
    %v2253 = vand.u32 %v2252, 3
    %vm2254 = vcmp.lt.s32.totalorder %v2253, 2
    %vm2255 = vcmp.eq.s32.totalorder %v2253, 0
    %v2256 = vxor.u32 %v2250, 2147483648
    %v2257 = vsel %vm2255, %v2249, %v2256
    %vm2258 = vcmp.eq.s32.totalorder %v2253, 2
    %v2259 = vxor.u32 %v2249, 2147483648
    %v2260 = vsel %vm2258, %v2259, %v2250
    %v2261 = vsel %vm2254, %v2257, %v2260
    %v2262 = vsel %vm2251, nan, %v2261
    %v2263 = vand.u32 2147483647, %v377
    %vm2264 = vcmp.le.f32.partialorder %v2263, 0.7853982
    %vm2265 = vcmp.lt.s32.totalorder %v377, 0
    %v2266 = vand.u32 %v377, 2139095040
    %v2267 = vshrl.u32 %v2266, 23
    %v2268 = vsub.s32 %v2267, 127
    %v2269 = vand.u32 2147483647, %v377
    %v2270 = vand.u32 %v2269, 8388607
    %v2271 = vor.u32 %v2270, 8388608
    %v2272 = vsub.s32 0, %v2271
    %v2273 = vadd.s32 %v2268, 1
    %vm2274 = vcmp.gt.s32.totalorder %v2273, 0
    %v2275 = vsel %vm2274, %v2273, 0
    %v2276 = vshrl.u32 %v2275, 5
    %v2277 = vand.u32 %v2275, 31
    %v2278 = vsub.s32 32, %v2277
    %v2279 = vshrl.u32 683565275, %v2278
    %v2280 = vshll.u32 683565275, %v2277
    %v2281 = vshrl.u32 2475754826, %v2278
    %v2282 = vor.u32 %v2280, %v2281
    %v2283 = vshll.u32 2475754826, %v2277
    %v2284 = vshrl.u32 2131351028, %v2278
    %v2285 = vor.u32 %v2283, %v2284
    %v2286 = vshll.u32 2131351028, %v2277
    %v2287 = vshrl.u32 2102212464, %v2278
    %v2288 = vor.u32 %v2286, %v2287
    %v2289 = vshll.u32 2102212464, %v2277
    %v2290 = vshrl.u32 920167782, %v2278
    %v2291 = vor.u32 %v2289, %v2290
    %v2292 = vshll.u32 920167782, %v2277
    %v2293 = vshrl.u32 1326507024, %v2278
    %v2294 = vor.u32 %v2292, %v2293
    %vm2295 = vcmp.lt.s32.totalorder %v2276, 1
    %vm2296 = vcmp.lt.s32.totalorder %v2276, 2
    %vm2297 = vcmp.lt.s32.totalorder %v2276, 3
    %vm2298 = vcmp.lt.s32.totalorder %v2276, 4
    %v2299 = vsel %vm2295, %v2279, %v2282
    %v2300 = vsel %vm2298, %v2288, 2102212464
    %v2301 = vsel %vm2297, %v2285, %v2300
    %v2302 = vsel %vm2296, %v2299, %v2301
    %v2303 = vsel %vm2295, %v2282, %v2285
    %v2304 = vsel %vm2298, %v2291, 920167782
    %v2305 = vsel %vm2297, %v2288, %v2304
    %v2306 = vsel %vm2296, %v2303, %v2305
    %v2307 = vsel %vm2295, %v2285, %v2288
    %v2308 = vsel %vm2298, %v2294, 1326507024
    %v2309 = vsel %vm2297, %v2291, %v2308
    %v2310 = vsel %vm2296, %v2307, %v2309
    %v2311 = vshll.u32 %v2271, 8
    %v2312 = vmul.u32.u64.compose %v2311, %v2310
    %v2313 = vextract.low.u32 %v2312
    %v2314 = vextract.high.u32 %v2312
    %v2315 = vmul.u32.u64.compose %v2311, %v2306
    %v2316 = vextract.low.u32 %v2315
    %v2317 = vextract.high.u32 %v2315
    %v2318 = vmul.u32 %v2311, %v2302
    %v2319 = vadd.s32 %v2314, %v2316
    %vm2320 = vc.u32 %v2314, %v2316
    %v2321 = vadd.s32 %v2317, 1
    %v2322 = vsel %vm2320, %v2321, %v2317
    %v2323 = vadd.s32 %v2318, %v2322
    %v2324 = vadd.s32 %v2323, 536870912
    %v2325 = vshrl.u32 %v2324, 30
    %v2326 = vshll.u32 %v2325, 30
    %v2327 = vsub.s32 %v2323, %v2326
    %vm2328 = vcmp.lt.s32.totalorder %v2327, 0
    %v2329 = vsub.s32 0, %v2327
    %v2330 = vsel %vm2328, %v2329, %v2327
    %v2331 = vclz %v2330
    %v2332 = vsub.s32 %v2331, 2
    %vm2333 = vcmp.gt.s32.totalorder 0, %v2332
    %v2334 = vsel %vm2333, 0, %v2332
    %v2335 = vsub.s32 32, %v2334
    %v2336 = vshll.u32 %v2327, %v2334
    %v2337 = vshrl.u32 %v2319, %v2335
    %v2338 = vor.u32 %v2336, %v2337
    %v2339 = vsub.s32 4294967266, %v2334
    %v2340 = vadd.s32 %v2339, 127
    %v2341 = vshll.u32 %v2340, 23
    %v2342 = vor.u32 4788187, %v2341
    %v2343 = vand.u32 2147483647, %v2342
    %v2345 = vcvt.s32.f32 %v2338
    %v2346 = vmul.f32 %v2345, %v2343
    %v2347 = vxor.u32 %v2346, 2147483648
    %v2348 = vsel %vm2265, %v2347, %v2346
    %v2349 = vsub.s32 4, %v2325
    %v2350 = vsel %vm2265, %v2349, %v2325
    %v2351 = vsel %vm2264, %v377, %v2348
    %v2352 = vsel %vm2264, 0, %v2350
    %v2353 = vcosq.f32.pop %v2351
    %v2354 = vsinq.f32.pop %v2351
    %vm2355 = vweird.f32 %v377
    %v2356 = vadd.s32 %v2352, 3
    %v2357 = vand.u32 %v2356, 3
    %vm2358 = vcmp.lt.s32.totalorder %v2357, 2
    %vm2359 = vcmp.eq.s32.totalorder %v2357, 0
    %v2360 = vxor.u32 %v2354, 2147483648
    %v2361 = vsel %vm2359, %v2353, %v2360
    %vm2362 = vcmp.eq.s32.totalorder %v2357, 2
    %v2363 = vxor.u32 %v2353, 2147483648
    %v2364 = vsel %vm2362, %v2363, %v2354
    %v2365 = vsel %vm2358, %v2361, %v2364
    %v2366 = vsel %vm2355, nan, %v2365
    %v2367 = vand.u32 2147483647, %v378
    %vm2368 = vcmp.le.f32.partialorder %v2367, 0.7853982
    %vm2369 = vcmp.lt.s32.totalorder %v378, 0
    %v2370 = vand.u32 %v378, 2139095040
    %v2371 = vshrl.u32 %v2370, 23
    %v2372 = vsub.s32 %v2371, 127
    %v2373 = vand.u32 2147483647, %v378
    %v2374 = vand.u32 %v2373, 8388607
    %v2375 = vor.u32 %v2374, 8388608
    %v2376 = vsub.s32 0, %v2375
    %v2377 = vadd.s32 %v2372, 1
    %vm2378 = vcmp.gt.s32.totalorder %v2377, 0
    %v2379 = vsel %vm2378, %v2377, 0
    %v2380 = vshrl.u32 %v2379, 5
    %v2381 = vand.u32 %v2379, 31
    %v2382 = vsub.s32 32, %v2381
    %v2383 = vshrl.u32 683565275, %v2382
    %v2384 = vshll.u32 683565275, %v2381
    %v2385 = vshrl.u32 2475754826, %v2382
    %v2386 = vor.u32 %v2384, %v2385
    %v2387 = vshll.u32 2475754826, %v2381
    %v2388 = vshrl.u32 2131351028, %v2382
    %v2389 = vor.u32 %v2387, %v2388
    %v2390 = vshll.u32 2131351028, %v2381
    %v2391 = vshrl.u32 2102212464, %v2382
    %v2392 = vor.u32 %v2390, %v2391
    %v2393 = vshll.u32 2102212464, %v2381
    %v2394 = vshrl.u32 920167782, %v2382
    %v2395 = vor.u32 %v2393, %v2394
    %v2396 = vshll.u32 920167782, %v2381
    %v2397 = vshrl.u32 1326507024, %v2382
    %v2398 = vor.u32 %v2396, %v2397
    %vm2399 = vcmp.lt.s32.totalorder %v2380, 1
    %vm2400 = vcmp.lt.s32.totalorder %v2380, 2
    %vm2401 = vcmp.lt.s32.totalorder %v2380, 3
    %vm2402 = vcmp.lt.s32.totalorder %v2380, 4
    %v2403 = vsel %vm2399, %v2383, %v2386
    %v2404 = vsel %vm2402, %v2392, 2102212464
    %v2405 = vsel %vm2401, %v2389, %v2404
    %v2406 = vsel %vm2400, %v2403, %v2405
    %v2407 = vsel %vm2399, %v2386, %v2389
    %v2408 = vsel %vm2402, %v2395, 920167782
    %v2409 = vsel %vm2401, %v2392, %v2408
    %v2410 = vsel %vm2400, %v2407, %v2409
    %v2411 = vsel %vm2399, %v2389, %v2392
    %v2412 = vsel %vm2402, %v2398, 1326507024
    %v2413 = vsel %vm2401, %v2395, %v2412
    %v2414 = vsel %vm2400, %v2411, %v2413
    %v2415 = vshll.u32 %v2375, 8
    %v2416 = vmul.u32.u64.compose %v2415, %v2414
    %v2417 = vextract.low.u32 %v2416
    %v2418 = vextract.high.u32 %v2416
    %v2419 = vmul.u32.u64.compose %v2415, %v2410
    %v2420 = vextract.low.u32 %v2419
    %v2421 = vextract.high.u32 %v2419
    %v2422 = vmul.u32 %v2415, %v2406
    %v2423 = vadd.s32 %v2418, %v2420
    %vm2424 = vc.u32 %v2418, %v2420
    %v2425 = vadd.s32 %v2421, 1
    %v2426 = vsel %vm2424, %v2425, %v2421
    %v2427 = vadd.s32 %v2422, %v2426
    %v2428 = vadd.s32 %v2427, 536870912
    %v2429 = vshrl.u32 %v2428, 30
    %v2430 = vshll.u32 %v2429, 30
    %v2431 = vsub.s32 %v2427, %v2430
    %vm2432 = vcmp.lt.s32.totalorder %v2431, 0
    %v2433 = vsub.s32 0, %v2431
    %v2434 = vsel %vm2432, %v2433, %v2431
    %v2435 = vclz %v2434
    %v2436 = vsub.s32 %v2435, 2
    %vm2437 = vcmp.gt.s32.totalorder 0, %v2436
    %v2438 = vsel %vm2437, 0, %v2436
    %v2439 = vsub.s32 32, %v2438
    %v2440 = vshll.u32 %v2431, %v2438
    %v2441 = vshrl.u32 %v2423, %v2439
    %v2442 = vor.u32 %v2440, %v2441
    %v2443 = vsub.s32 4294967266, %v2438
    %v2444 = vadd.s32 %v2443, 127
    %v2445 = vshll.u32 %v2444, 23
    %v2446 = vor.u32 4788187, %v2445
    %v2447 = vand.u32 2147483647, %v2446
    %v2449 = vcvt.s32.f32 %v2442
    %v2450 = vmul.f32 %v2449, %v2447
    %v2451 = vxor.u32 %v2450, 2147483648
    %v2452 = vsel %vm2369, %v2451, %v2450
    %v2453 = vsub.s32 4, %v2429
    %v2454 = vsel %vm2369, %v2453, %v2429
    %v2455 = vsel %vm2368, %v378, %v2452
    %v2456 = vsel %vm2368, 0, %v2454
    %v2457 = vcosq.f32.pop %v2455
    %v2458 = vsinq.f32.pop %v2455
    %vm2459 = vweird.f32 %v378
    %v2460 = vadd.s32 %v2456, 3
    %v2461 = vand.u32 %v2460, 3
    %vm2462 = vcmp.lt.s32.totalorder %v2461, 2
    %vm2463 = vcmp.eq.s32.totalorder %v2461, 0
    %v2464 = vxor.u32 %v2458, 2147483648
    %v2465 = vsel %vm2463, %v2457, %v2464
    %vm2466 = vcmp.eq.s32.totalorder %v2461, 2
    %v2467 = vxor.u32 %v2457, 2147483648
    %v2468 = vsel %vm2466, %v2467, %v2458
    %v2469 = vsel %vm2462, %v2465, %v2468
    %v2470 = vsel %vm2459, nan, %v2469
    %v2471 = vand.u32 2147483647, %v379
    %vm2472 = vcmp.le.f32.partialorder %v2471, 0.7853982
    %vm2473 = vcmp.lt.s32.totalorder %v379, 0
    %v2474 = vand.u32 %v379, 2139095040
    %v2475 = vshrl.u32 %v2474, 23
    %v2476 = vsub.s32 %v2475, 127
    %v2477 = vand.u32 2147483647, %v379
    %v2478 = vand.u32 %v2477, 8388607
    %v2479 = vor.u32 %v2478, 8388608
    %v2480 = vsub.s32 0, %v2479
    %v2481 = vadd.s32 %v2476, 1
    %vm2482 = vcmp.gt.s32.totalorder %v2481, 0
    %v2483 = vsel %vm2482, %v2481, 0
    %v2484 = vshrl.u32 %v2483, 5
    %v2485 = vand.u32 %v2483, 31
    %v2486 = vsub.s32 32, %v2485
    %v2487 = vshrl.u32 683565275, %v2486
    %v2488 = vshll.u32 683565275, %v2485
    %v2489 = vshrl.u32 2475754826, %v2486
    %v2490 = vor.u32 %v2488, %v2489
    %v2491 = vshll.u32 2475754826, %v2485
    %v2492 = vshrl.u32 2131351028, %v2486
    %v2493 = vor.u32 %v2491, %v2492
    %v2494 = vshll.u32 2131351028, %v2485
    %v2495 = vshrl.u32 2102212464, %v2486
    %v2496 = vor.u32 %v2494, %v2495
    %v2497 = vshll.u32 2102212464, %v2485
    %v2498 = vshrl.u32 920167782, %v2486
    %v2499 = vor.u32 %v2497, %v2498
    %v2500 = vshll.u32 920167782, %v2485
    %v2501 = vshrl.u32 1326507024, %v2486
    %v2502 = vor.u32 %v2500, %v2501
    %vm2503 = vcmp.lt.s32.totalorder %v2484, 1
    %vm2504 = vcmp.lt.s32.totalorder %v2484, 2
    %vm2505 = vcmp.lt.s32.totalorder %v2484, 3
    %vm2506 = vcmp.lt.s32.totalorder %v2484, 4
    %v2507 = vsel %vm2503, %v2487, %v2490
    %v2508 = vsel %vm2506, %v2496, 2102212464
    %v2509 = vsel %vm2505, %v2493, %v2508
    %v2510 = vsel %vm2504, %v2507, %v2509
    %v2511 = vsel %vm2503, %v2490, %v2493
    %v2512 = vsel %vm2506, %v2499, 920167782
    %v2513 = vsel %vm2505, %v2496, %v2512
    %v2514 = vsel %vm2504, %v2511, %v2513
    %v2515 = vsel %vm2503, %v2493, %v2496
    %v2516 = vsel %vm2506, %v2502, 1326507024
    %v2517 = vsel %vm2505, %v2499, %v2516
    %v2518 = vsel %vm2504, %v2515, %v2517
    %v2519 = vshll.u32 %v2479, 8
    %v2520 = vmul.u32.u64.compose %v2519, %v2518
    %v2521 = vextract.low.u32 %v2520
    %v2522 = vextract.high.u32 %v2520
    %v2523 = vmul.u32.u64.compose %v2519, %v2514
    %v2524 = vextract.low.u32 %v2523
    %v2525 = vextract.high.u32 %v2523
    %v2526 = vmul.u32 %v2519, %v2510
    %v2527 = vadd.s32 %v2522, %v2524
    %vm2528 = vc.u32 %v2522, %v2524
    %v2529 = vadd.s32 %v2525, 1
    %v2530 = vsel %vm2528, %v2529, %v2525
    %v2531 = vadd.s32 %v2526, %v2530
    %v2532 = vadd.s32 %v2531, 536870912
    %v2533 = vshrl.u32 %v2532, 30
    %v2534 = vshll.u32 %v2533, 30
    %v2535 = vsub.s32 %v2531, %v2534
    %vm2536 = vcmp.lt.s32.totalorder %v2535, 0
    %v2537 = vsub.s32 0, %v2535
    %v2538 = vsel %vm2536, %v2537, %v2535
    %v2539 = vclz %v2538
    %v2540 = vsub.s32 %v2539, 2
    %vm2541 = vcmp.gt.s32.totalorder 0, %v2540
    %v2542 = vsel %vm2541, 0, %v2540
    %v2543 = vsub.s32 32, %v2542
    %v2544 = vshll.u32 %v2535, %v2542
    %v2545 = vshrl.u32 %v2527, %v2543
    %v2546 = vor.u32 %v2544, %v2545
    %v2547 = vsub.s32 4294967266, %v2542
    %v2548 = vadd.s32 %v2547, 127
    %v2549 = vshll.u32 %v2548, 23
    %v2550 = vor.u32 4788187, %v2549
    %v2551 = vand.u32 2147483647, %v2550
    %v2553 = vcvt.s32.f32 %v2546
    %v2554 = vmul.f32 %v2553, %v2551
    %v2555 = vxor.u32 %v2554, 2147483648
    %v2556 = vsel %vm2473, %v2555, %v2554
    %v2557 = vsub.s32 4, %v2533
    %v2558 = vsel %vm2473, %v2557, %v2533
    %v2559 = vsel %vm2472, %v379, %v2556
    %v2560 = vsel %vm2472, 0, %v2558
    %v2561 = vcosq.f32.pop %v2559
    %v2562 = vsinq.f32.pop %v2559
    %vm2563 = vweird.f32 %v379
    %v2564 = vadd.s32 %v2560, 3
    %v2565 = vand.u32 %v2564, 3
    %vm2566 = vcmp.lt.s32.totalorder %v2565, 2
    %vm2567 = vcmp.eq.s32.totalorder %v2565, 0
    %v2568 = vxor.u32 %v2562, 2147483648
    %v2569 = vsel %vm2567, %v2561, %v2568
    %vm2570 = vcmp.eq.s32.totalorder %v2565, 2
    %v2571 = vxor.u32 %v2561, 2147483648
    %v2572 = vsel %vm2570, %v2571, %v2562
    %v2573 = vsel %vm2566, %v2569, %v2572
    %v2574 = vsel %vm2563, nan, %v2573
    %v2575 = vand.u32 2147483647, %v380
    %vm2576 = vcmp.le.f32.partialorder %v2575, 0.7853982
    %vm2577 = vcmp.lt.s32.totalorder %v380, 0
    %v2578 = vand.u32 %v380, 2139095040
    %v2579 = vshrl.u32 %v2578, 23
    %v2580 = vsub.s32 %v2579, 127
    %v2581 = vand.u32 2147483647, %v380
    %v2582 = vand.u32 %v2581, 8388607
    %v2583 = vor.u32 %v2582, 8388608
    %v2584 = vsub.s32 0, %v2583
    %v2585 = vadd.s32 %v2580, 1
    %vm2586 = vcmp.gt.s32.totalorder %v2585, 0
    %v2587 = vsel %vm2586, %v2585, 0
    %v2588 = vshrl.u32 %v2587, 5
    %v2589 = vand.u32 %v2587, 31
    %v2590 = vsub.s32 32, %v2589
    %v2591 = vshrl.u32 683565275, %v2590
    %v2592 = vshll.u32 683565275, %v2589
    %v2593 = vshrl.u32 2475754826, %v2590
    %v2594 = vor.u32 %v2592, %v2593
    %v2595 = vshll.u32 2475754826, %v2589
    %v2596 = vshrl.u32 2131351028, %v2590
    %v2597 = vor.u32 %v2595, %v2596
    %v2598 = vshll.u32 2131351028, %v2589
    %v2599 = vshrl.u32 2102212464, %v2590
    %v2600 = vor.u32 %v2598, %v2599
    %v2601 = vshll.u32 2102212464, %v2589
    %v2602 = vshrl.u32 920167782, %v2590
    %v2603 = vor.u32 %v2601, %v2602
    %v2604 = vshll.u32 920167782, %v2589
    %v2605 = vshrl.u32 1326507024, %v2590
    %v2606 = vor.u32 %v2604, %v2605
    %vm2607 = vcmp.lt.s32.totalorder %v2588, 1
    %vm2608 = vcmp.lt.s32.totalorder %v2588, 2
    %vm2609 = vcmp.lt.s32.totalorder %v2588, 3
    %vm2610 = vcmp.lt.s32.totalorder %v2588, 4
    %v2611 = vsel %vm2607, %v2591, %v2594
    %v2612 = vsel %vm2610, %v2600, 2102212464
    %v2613 = vsel %vm2609, %v2597, %v2612
    %v2614 = vsel %vm2608, %v2611, %v2613
    %v2615 = vsel %vm2607, %v2594, %v2597
    %v2616 = vsel %vm2610, %v2603, 920167782
    %v2617 = vsel %vm2609, %v2600, %v2616
    %v2618 = vsel %vm2608, %v2615, %v2617
    %v2619 = vsel %vm2607, %v2597, %v2600
    %v2620 = vsel %vm2610, %v2606, 1326507024
    %v2621 = vsel %vm2609, %v2603, %v2620
    %v2622 = vsel %vm2608, %v2619, %v2621
    %v2623 = vshll.u32 %v2583, 8
    %v2624 = vmul.u32.u64.compose %v2623, %v2622
    %v2625 = vextract.low.u32 %v2624
    %v2626 = vextract.high.u32 %v2624
    %v2627 = vmul.u32.u64.compose %v2623, %v2618
    %v2628 = vextract.low.u32 %v2627
    %v2629 = vextract.high.u32 %v2627
    %v2630 = vmul.u32 %v2623, %v2614
    %v2631 = vadd.s32 %v2626, %v2628
    %vm2632 = vc.u32 %v2626, %v2628
    %v2633 = vadd.s32 %v2629, 1
    %v2634 = vsel %vm2632, %v2633, %v2629
    %v2635 = vadd.s32 %v2630, %v2634
    %v2636 = vadd.s32 %v2635, 536870912
    %v2637 = vshrl.u32 %v2636, 30
    %v2638 = vshll.u32 %v2637, 30
    %v2639 = vsub.s32 %v2635, %v2638
    %vm2640 = vcmp.lt.s32.totalorder %v2639, 0
    %v2641 = vsub.s32 0, %v2639
    %v2642 = vsel %vm2640, %v2641, %v2639
    %v2643 = vclz %v2642
    %v2644 = vsub.s32 %v2643, 2
    %vm2645 = vcmp.gt.s32.totalorder 0, %v2644
    %v2646 = vsel %vm2645, 0, %v2644
    %v2647 = vsub.s32 32, %v2646
    %v2648 = vshll.u32 %v2639, %v2646
    %v2649 = vshrl.u32 %v2631, %v2647
    %v2650 = vor.u32 %v2648, %v2649
    %v2651 = vsub.s32 4294967266, %v2646
    %v2652 = vadd.s32 %v2651, 127
    %v2653 = vshll.u32 %v2652, 23
    %v2654 = vor.u32 4788187, %v2653
    %v2655 = vand.u32 2147483647, %v2654
    %v2657 = vcvt.s32.f32 %v2650
    %v2658 = vmul.f32 %v2657, %v2655
    %v2659 = vxor.u32 %v2658, 2147483648
    %v2660 = vsel %vm2577, %v2659, %v2658
    %v2661 = vsub.s32 4, %v2637
    %v2662 = vsel %vm2577, %v2661, %v2637
    %v2663 = vsel %vm2576, %v380, %v2660
    %v2664 = vsel %vm2576, 0, %v2662
    %v2665 = vcosq.f32.pop %v2663
    %v2666 = vsinq.f32.pop %v2663
    %vm2667 = vweird.f32 %v380
    %v2668 = vadd.s32 %v2664, 3
    %v2669 = vand.u32 %v2668, 3
    %vm2670 = vcmp.lt.s32.totalorder %v2669, 2
    %vm2671 = vcmp.eq.s32.totalorder %v2669, 0
    %v2672 = vxor.u32 %v2666, 2147483648
    %v2673 = vsel %vm2671, %v2665, %v2672
    %vm2674 = vcmp.eq.s32.totalorder %v2669, 2
    %v2675 = vxor.u32 %v2665, 2147483648
    %v2676 = vsel %vm2674, %v2675, %v2666
    %v2677 = vsel %vm2670, %v2673, %v2676
    %v2678 = vsel %vm2667, nan, %v2677
    %v2679 = vand.u32 2147483647, %v381
    %vm2680 = vcmp.le.f32.partialorder %v2679, 0.7853982
    %vm2681 = vcmp.lt.s32.totalorder %v381, 0
    %v2682 = vand.u32 %v381, 2139095040
    %v2683 = vshrl.u32 %v2682, 23
    %v2684 = vsub.s32 %v2683, 127
    %v2685 = vand.u32 2147483647, %v381
    %v2686 = vand.u32 %v2685, 8388607
    %v2687 = vor.u32 %v2686, 8388608
    %v2688 = vsub.s32 0, %v2687
    %v2689 = vadd.s32 %v2684, 1
    %vm2690 = vcmp.gt.s32.totalorder %v2689, 0
    %v2691 = vsel %vm2690, %v2689, 0
    %v2692 = vshrl.u32 %v2691, 5
    %v2693 = vand.u32 %v2691, 31
    %v2694 = vsub.s32 32, %v2693
    %v2695 = vshrl.u32 683565275, %v2694
    %v2696 = vshll.u32 683565275, %v2693
    %v2697 = vshrl.u32 2475754826, %v2694
    %v2698 = vor.u32 %v2696, %v2697
    %v2699 = vshll.u32 2475754826, %v2693
    %v2700 = vshrl.u32 2131351028, %v2694
    %v2701 = vor.u32 %v2699, %v2700
    %v2702 = vshll.u32 2131351028, %v2693
    %v2703 = vshrl.u32 2102212464, %v2694
    %v2704 = vor.u32 %v2702, %v2703
    %v2705 = vshll.u32 2102212464, %v2693
    %v2706 = vshrl.u32 920167782, %v2694
    %v2707 = vor.u32 %v2705, %v2706
    %v2708 = vshll.u32 920167782, %v2693
    %v2709 = vshrl.u32 1326507024, %v2694
    %v2710 = vor.u32 %v2708, %v2709
    %vm2711 = vcmp.lt.s32.totalorder %v2692, 1
    %vm2712 = vcmp.lt.s32.totalorder %v2692, 2
    %vm2713 = vcmp.lt.s32.totalorder %v2692, 3
    %vm2714 = vcmp.lt.s32.totalorder %v2692, 4
    %v2715 = vsel %vm2711, %v2695, %v2698
    %v2716 = vsel %vm2714, %v2704, 2102212464
    %v2717 = vsel %vm2713, %v2701, %v2716
    %v2718 = vsel %vm2712, %v2715, %v2717
    %v2719 = vsel %vm2711, %v2698, %v2701
    %v2720 = vsel %vm2714, %v2707, 920167782
    %v2721 = vsel %vm2713, %v2704, %v2720
    %v2722 = vsel %vm2712, %v2719, %v2721
    %v2723 = vsel %vm2711, %v2701, %v2704
    %v2724 = vsel %vm2714, %v2710, 1326507024
    %v2725 = vsel %vm2713, %v2707, %v2724
    %v2726 = vsel %vm2712, %v2723, %v2725
    %v2727 = vshll.u32 %v2687, 8
    %v2728 = vmul.u32.u64.compose %v2727, %v2726
    %v2729 = vextract.low.u32 %v2728
    %v2730 = vextract.high.u32 %v2728
    %v2731 = vmul.u32.u64.compose %v2727, %v2722
    %v2732 = vextract.low.u32 %v2731
    %v2733 = vextract.high.u32 %v2731
    %v2734 = vmul.u32 %v2727, %v2718
    %v2735 = vadd.s32 %v2730, %v2732
    %vm2736 = vc.u32 %v2730, %v2732
    %v2737 = vadd.s32 %v2733, 1
    %v2738 = vsel %vm2736, %v2737, %v2733
    %v2739 = vadd.s32 %v2734, %v2738
    %v2740 = vadd.s32 %v2739, 536870912
    %v2741 = vshrl.u32 %v2740, 30
    %v2742 = vshll.u32 %v2741, 30
    %v2743 = vsub.s32 %v2739, %v2742
    %vm2744 = vcmp.lt.s32.totalorder %v2743, 0
    %v2745 = vsub.s32 0, %v2743
    %v2746 = vsel %vm2744, %v2745, %v2743
    %v2747 = vclz %v2746
    %v2748 = vsub.s32 %v2747, 2
    %vm2749 = vcmp.gt.s32.totalorder 0, %v2748
    %v2750 = vsel %vm2749, 0, %v2748
    %v2751 = vsub.s32 32, %v2750
    %v2752 = vshll.u32 %v2743, %v2750
    %v2753 = vshrl.u32 %v2735, %v2751
    %v2754 = vor.u32 %v2752, %v2753
    %v2755 = vsub.s32 4294967266, %v2750
    %v2756 = vadd.s32 %v2755, 127
    %v2757 = vshll.u32 %v2756, 23
    %v2758 = vor.u32 4788187, %v2757
    %v2759 = vand.u32 2147483647, %v2758
    %v2761 = vcvt.s32.f32 %v2754
    %v2762 = vmul.f32 %v2761, %v2759
    %v2763 = vxor.u32 %v2762, 2147483648
    %v2764 = vsel %vm2681, %v2763, %v2762
    %v2765 = vsub.s32 4, %v2741
    %v2766 = vsel %vm2681, %v2765, %v2741
    %v2767 = vsel %vm2680, %v381, %v2764
    %v2768 = vsel %vm2680, 0, %v2766
    %v2769 = vcosq.f32.pop %v2767
    %v2770 = vsinq.f32.pop %v2767
    %vm2771 = vweird.f32 %v381
    %v2772 = vadd.s32 %v2768, 3
    %v2773 = vand.u32 %v2772, 3
    %vm2774 = vcmp.lt.s32.totalorder %v2773, 2
    %vm2775 = vcmp.eq.s32.totalorder %v2773, 0
    %v2776 = vxor.u32 %v2770, 2147483648
    %v2777 = vsel %vm2775, %v2769, %v2776
    %vm2778 = vcmp.eq.s32.totalorder %v2773, 2
    %v2779 = vxor.u32 %v2769, 2147483648
    %v2780 = vsel %vm2778, %v2779, %v2770
    %v2781 = vsel %vm2774, %v2777, %v2780
    %v2782 = vsel %vm2771, nan, %v2781
    %v2783 = vand.u32 2147483647, %v382
    %vm2784 = vcmp.le.f32.partialorder %v2783, 0.7853982
    %vm2785 = vcmp.lt.s32.totalorder %v382, 0
    %v2786 = vand.u32 %v382, 2139095040
    %v2787 = vshrl.u32 %v2786, 23
    %v2788 = vsub.s32 %v2787, 127
    %v2789 = vand.u32 2147483647, %v382
    %v2790 = vand.u32 %v2789, 8388607
    %v2791 = vor.u32 %v2790, 8388608
    %v2792 = vsub.s32 0, %v2791
    %v2793 = vadd.s32 %v2788, 1
    %vm2794 = vcmp.gt.s32.totalorder %v2793, 0
    %v2795 = vsel %vm2794, %v2793, 0
    %v2796 = vshrl.u32 %v2795, 5
    %v2797 = vand.u32 %v2795, 31
    %v2798 = vsub.s32 32, %v2797
    %v2799 = vshrl.u32 683565275, %v2798
    %v2800 = vshll.u32 683565275, %v2797
    %v2801 = vshrl.u32 2475754826, %v2798
    %v2802 = vor.u32 %v2800, %v2801
    %v2803 = vshll.u32 2475754826, %v2797
    %v2804 = vshrl.u32 2131351028, %v2798
    %v2805 = vor.u32 %v2803, %v2804
    %v2806 = vshll.u32 2131351028, %v2797
    %v2807 = vshrl.u32 2102212464, %v2798
    %v2808 = vor.u32 %v2806, %v2807
    %v2809 = vshll.u32 2102212464, %v2797
    %v2810 = vshrl.u32 920167782, %v2798
    %v2811 = vor.u32 %v2809, %v2810
    %v2812 = vshll.u32 920167782, %v2797
    %v2813 = vshrl.u32 1326507024, %v2798
    %v2814 = vor.u32 %v2812, %v2813
    %vm2815 = vcmp.lt.s32.totalorder %v2796, 1
    %vm2816 = vcmp.lt.s32.totalorder %v2796, 2
    %vm2817 = vcmp.lt.s32.totalorder %v2796, 3
    %vm2818 = vcmp.lt.s32.totalorder %v2796, 4
    %v2819 = vsel %vm2815, %v2799, %v2802
    %v2820 = vsel %vm2818, %v2808, 2102212464
    %v2821 = vsel %vm2817, %v2805, %v2820
    %v2822 = vsel %vm2816, %v2819, %v2821
    %v2823 = vsel %vm2815, %v2802, %v2805
    %v2824 = vsel %vm2818, %v2811, 920167782
    %v2825 = vsel %vm2817, %v2808, %v2824
    %v2826 = vsel %vm2816, %v2823, %v2825
    %v2827 = vsel %vm2815, %v2805, %v2808
    %v2828 = vsel %vm2818, %v2814, 1326507024
    %v2829 = vsel %vm2817, %v2811, %v2828
    %v2830 = vsel %vm2816, %v2827, %v2829
    %v2831 = vshll.u32 %v2791, 8
    %v2832 = vmul.u32.u64.compose %v2831, %v2830
    %v2833 = vextract.low.u32 %v2832
    %v2834 = vextract.high.u32 %v2832
    %v2835 = vmul.u32.u64.compose %v2831, %v2826
    %v2836 = vextract.low.u32 %v2835
    %v2837 = vextract.high.u32 %v2835
    %v2838 = vmul.u32 %v2831, %v2822
    %v2839 = vadd.s32 %v2834, %v2836
    %vm2840 = vc.u32 %v2834, %v2836
    %v2841 = vadd.s32 %v2837, 1
    %v2842 = vsel %vm2840, %v2841, %v2837
    %v2843 = vadd.s32 %v2838, %v2842
    %v2844 = vadd.s32 %v2843, 536870912
    %v2845 = vshrl.u32 %v2844, 30
    %v2846 = vshll.u32 %v2845, 30
    %v2847 = vsub.s32 %v2843, %v2846
    %vm2848 = vcmp.lt.s32.totalorder %v2847, 0
    %v2849 = vsub.s32 0, %v2847
    %v2850 = vsel %vm2848, %v2849, %v2847
    %v2851 = vclz %v2850
    %v2852 = vsub.s32 %v2851, 2
    %vm2853 = vcmp.gt.s32.totalorder 0, %v2852
    %v2854 = vsel %vm2853, 0, %v2852
    %v2855 = vsub.s32 32, %v2854
    %v2856 = vshll.u32 %v2847, %v2854
    %v2857 = vshrl.u32 %v2839, %v2855
    %v2858 = vor.u32 %v2856, %v2857
    %v2859 = vsub.s32 4294967266, %v2854
    %v2860 = vadd.s32 %v2859, 127
    %v2861 = vshll.u32 %v2860, 23
    %v2862 = vor.u32 4788187, %v2861
    %v2863 = vand.u32 2147483647, %v2862
    %v2865 = vcvt.s32.f32 %v2858
    %v2866 = vmul.f32 %v2865, %v2863
    %v2867 = vxor.u32 %v2866, 2147483648
    %v2868 = vsel %vm2785, %v2867, %v2866
    %v2869 = vsub.s32 4, %v2845
    %v2870 = vsel %vm2785, %v2869, %v2845
    %v2871 = vsel %vm2784, %v382, %v2868
    %v2872 = vsel %vm2784, 0, %v2870
    %v2873 = vcosq.f32.pop %v2871
    %v2874 = vsinq.f32.pop %v2871
    %vm2875 = vweird.f32 %v382
    %v2876 = vadd.s32 %v2872, 3
    %v2877 = vand.u32 %v2876, 3
    %vm2878 = vcmp.lt.s32.totalorder %v2877, 2
    %vm2879 = vcmp.eq.s32.totalorder %v2877, 0
    %v2880 = vxor.u32 %v2874, 2147483648
    %v2881 = vsel %vm2879, %v2873, %v2880
    %vm2882 = vcmp.eq.s32.totalorder %v2877, 2
    %v2883 = vxor.u32 %v2873, 2147483648
    %v2884 = vsel %vm2882, %v2883, %v2874
    %v2885 = vsel %vm2878, %v2881, %v2884
    %v2886 = vsel %vm2875, nan, %v2885
    %v2887 = vand.u32 2147483647, %v383
    %vm2888 = vcmp.le.f32.partialorder %v2887, 0.7853982
    %vm2889 = vcmp.lt.s32.totalorder %v383, 0
    %v2890 = vand.u32 %v383, 2139095040
    %v2891 = vshrl.u32 %v2890, 23
    %v2892 = vsub.s32 %v2891, 127
    %v2893 = vand.u32 2147483647, %v383
    %v2894 = vand.u32 %v2893, 8388607
    %v2895 = vor.u32 %v2894, 8388608
    %v2896 = vsub.s32 0, %v2895
    %v2897 = vadd.s32 %v2892, 1
    %vm2898 = vcmp.gt.s32.totalorder %v2897, 0
    %v2899 = vsel %vm2898, %v2897, 0
    %v2900 = vshrl.u32 %v2899, 5
    %v2901 = vand.u32 %v2899, 31
    %v2902 = vsub.s32 32, %v2901
    %v2903 = vshrl.u32 683565275, %v2902
    %v2904 = vshll.u32 683565275, %v2901
    %v2905 = vshrl.u32 2475754826, %v2902
    %v2906 = vor.u32 %v2904, %v2905
    %v2907 = vshll.u32 2475754826, %v2901
    %v2908 = vshrl.u32 2131351028, %v2902
    %v2909 = vor.u32 %v2907, %v2908
    %v2910 = vshll.u32 2131351028, %v2901
    %v2911 = vshrl.u32 2102212464, %v2902
    %v2912 = vor.u32 %v2910, %v2911
    %v2913 = vshll.u32 2102212464, %v2901
    %v2914 = vshrl.u32 920167782, %v2902
    %v2915 = vor.u32 %v2913, %v2914
    %v2916 = vshll.u32 920167782, %v2901
    %v2917 = vshrl.u32 1326507024, %v2902
    %v2918 = vor.u32 %v2916, %v2917
    %vm2919 = vcmp.lt.s32.totalorder %v2900, 1
    %vm2920 = vcmp.lt.s32.totalorder %v2900, 2
    %vm2921 = vcmp.lt.s32.totalorder %v2900, 3
    %vm2922 = vcmp.lt.s32.totalorder %v2900, 4
    %v2923 = vsel %vm2919, %v2903, %v2906
    %v2924 = vsel %vm2922, %v2912, 2102212464
    %v2925 = vsel %vm2921, %v2909, %v2924
    %v2926 = vsel %vm2920, %v2923, %v2925
    %v2927 = vsel %vm2919, %v2906, %v2909
    %v2928 = vsel %vm2922, %v2915, 920167782
    %v2929 = vsel %vm2921, %v2912, %v2928
    %v2930 = vsel %vm2920, %v2927, %v2929
    %v2931 = vsel %vm2919, %v2909, %v2912
    %v2932 = vsel %vm2922, %v2918, 1326507024
    %v2933 = vsel %vm2921, %v2915, %v2932
    %v2934 = vsel %vm2920, %v2931, %v2933
    %v2935 = vshll.u32 %v2895, 8
    %v2936 = vmul.u32.u64.compose %v2935, %v2934
    %v2937 = vextract.low.u32 %v2936
    %v2938 = vextract.high.u32 %v2936
    %v2939 = vmul.u32.u64.compose %v2935, %v2930
    %v2940 = vextract.low.u32 %v2939
    %v2941 = vextract.high.u32 %v2939
    %v2942 = vmul.u32 %v2935, %v2926
    %v2943 = vadd.s32 %v2938, %v2940
    %vm2944 = vc.u32 %v2938, %v2940
    %v2945 = vadd.s32 %v2941, 1
    %v2946 = vsel %vm2944, %v2945, %v2941
    %v2947 = vadd.s32 %v2942, %v2946
    %v2948 = vadd.s32 %v2947, 536870912
    %v2949 = vshrl.u32 %v2948, 30
    %v2950 = vshll.u32 %v2949, 30
    %v2951 = vsub.s32 %v2947, %v2950
    %vm2952 = vcmp.lt.s32.totalorder %v2951, 0
    %v2953 = vsub.s32 0, %v2951
    %v2954 = vsel %vm2952, %v2953, %v2951
    %v2955 = vclz %v2954
    %v2956 = vsub.s32 %v2955, 2
    %vm2957 = vcmp.gt.s32.totalorder 0, %v2956
    %v2958 = vsel %vm2957, 0, %v2956
    %v2959 = vsub.s32 32, %v2958
    %v2960 = vshll.u32 %v2951, %v2958
    %v2961 = vshrl.u32 %v2943, %v2959
    %v2962 = vor.u32 %v2960, %v2961
    %v2963 = vsub.s32 4294967266, %v2958
    %v2964 = vadd.s32 %v2963, 127
    %v2965 = vshll.u32 %v2964, 23
    %v2966 = vor.u32 4788187, %v2965
    %v2967 = vand.u32 2147483647, %v2966
    %v2969 = vcvt.s32.f32 %v2962
    %v2970 = vmul.f32 %v2969, %v2967
    %v2971 = vxor.u32 %v2970, 2147483648
    %v2972 = vsel %vm2889, %v2971, %v2970
    %v2973 = vsub.s32 4, %v2949
    %v2974 = vsel %vm2889, %v2973, %v2949
    %v2975 = vsel %vm2888, %v383, %v2972
    %v2976 = vsel %vm2888, 0, %v2974
    %v2977 = vcosq.f32.pop %v2975
    %v2978 = vsinq.f32.pop %v2975
    %vm2979 = vweird.f32 %v383
    %v2980 = vadd.s32 %v2976, 3
    %v2981 = vand.u32 %v2980, 3
    %vm2982 = vcmp.lt.s32.totalorder %v2981, 2
    %vm2983 = vcmp.eq.s32.totalorder %v2981, 0
    %v2984 = vxor.u32 %v2978, 2147483648
    %v2985 = vsel %vm2983, %v2977, %v2984
    %vm2986 = vcmp.eq.s32.totalorder %v2981, 2
    %v2987 = vxor.u32 %v2977, 2147483648
    %v2988 = vsel %vm2986, %v2987, %v2978
    %v2989 = vsel %vm2982, %v2985, %v2988
    %v2990 = vsel %vm2979, nan, %v2989
    %v2991 = vand.u32 2147483647, %v384
    %vm2992 = vcmp.le.f32.partialorder %v2991, 0.7853982
    %vm2993 = vcmp.lt.s32.totalorder %v384, 0
    %v2994 = vand.u32 %v384, 2139095040
    %v2995 = vshrl.u32 %v2994, 23
    %v2996 = vsub.s32 %v2995, 127
    %v2997 = vand.u32 2147483647, %v384
    %v2998 = vand.u32 %v2997, 8388607
    %v2999 = vor.u32 %v2998, 8388608
    %v3000 = vsub.s32 0, %v2999
    %v3001 = vadd.s32 %v2996, 1
    %vm3002 = vcmp.gt.s32.totalorder %v3001, 0
    %v3003 = vsel %vm3002, %v3001, 0
    %v3004 = vshrl.u32 %v3003, 5
    %v3005 = vand.u32 %v3003, 31
    %v3006 = vsub.s32 32, %v3005
    %v3007 = vshrl.u32 683565275, %v3006
    %v3008 = vshll.u32 683565275, %v3005
    %v3009 = vshrl.u32 2475754826, %v3006
    %v3010 = vor.u32 %v3008, %v3009
    %v3011 = vshll.u32 2475754826, %v3005
    %v3012 = vshrl.u32 2131351028, %v3006
    %v3013 = vor.u32 %v3011, %v3012
    %v3014 = vshll.u32 2131351028, %v3005
    %v3015 = vshrl.u32 2102212464, %v3006
    %v3016 = vor.u32 %v3014, %v3015
    %v3017 = vshll.u32 2102212464, %v3005
    %v3018 = vshrl.u32 920167782, %v3006
    %v3019 = vor.u32 %v3017, %v3018
    %v3020 = vshll.u32 920167782, %v3005
    %v3021 = vshrl.u32 1326507024, %v3006
    %v3022 = vor.u32 %v3020, %v3021
    %vm3023 = vcmp.lt.s32.totalorder %v3004, 1
    %vm3024 = vcmp.lt.s32.totalorder %v3004, 2
    %vm3025 = vcmp.lt.s32.totalorder %v3004, 3
    %vm3026 = vcmp.lt.s32.totalorder %v3004, 4
    %v3027 = vsel %vm3023, %v3007, %v3010
    %v3028 = vsel %vm3026, %v3016, 2102212464
    %v3029 = vsel %vm3025, %v3013, %v3028
    %v3030 = vsel %vm3024, %v3027, %v3029
    %v3031 = vsel %vm3023, %v3010, %v3013
    %v3032 = vsel %vm3026, %v3019, 920167782
    %v3033 = vsel %vm3025, %v3016, %v3032
    %v3034 = vsel %vm3024, %v3031, %v3033
    %v3035 = vsel %vm3023, %v3013, %v3016
    %v3036 = vsel %vm3026, %v3022, 1326507024
    %v3037 = vsel %vm3025, %v3019, %v3036
    %v3038 = vsel %vm3024, %v3035, %v3037
    %v3039 = vshll.u32 %v2999, 8
    %v3040 = vmul.u32.u64.compose %v3039, %v3038
    %v3041 = vextract.low.u32 %v3040
    %v3042 = vextract.high.u32 %v3040
    %v3043 = vmul.u32.u64.compose %v3039, %v3034
    %v3044 = vextract.low.u32 %v3043
    %v3045 = vextract.high.u32 %v3043
    %v3046 = vmul.u32 %v3039, %v3030
    %v3047 = vadd.s32 %v3042, %v3044
    %vm3048 = vc.u32 %v3042, %v3044
    %v3049 = vadd.s32 %v3045, 1
    %v3050 = vsel %vm3048, %v3049, %v3045
    %v3051 = vadd.s32 %v3046, %v3050
    %v3052 = vadd.s32 %v3051, 536870912
    %v3053 = vshrl.u32 %v3052, 30
    %v3054 = vshll.u32 %v3053, 30
    %v3055 = vsub.s32 %v3051, %v3054
    %vm3056 = vcmp.lt.s32.totalorder %v3055, 0
    %v3057 = vsub.s32 0, %v3055
    %v3058 = vsel %vm3056, %v3057, %v3055
    %v3059 = vclz %v3058
    %v3060 = vsub.s32 %v3059, 2
    %vm3061 = vcmp.gt.s32.totalorder 0, %v3060
    %v3062 = vsel %vm3061, 0, %v3060
    %v3063 = vsub.s32 32, %v3062
    %v3064 = vshll.u32 %v3055, %v3062
    %v3065 = vshrl.u32 %v3047, %v3063
    %v3066 = vor.u32 %v3064, %v3065
    %v3067 = vsub.s32 4294967266, %v3062
    %v3068 = vadd.s32 %v3067, 127
    %v3069 = vshll.u32 %v3068, 23
    %v3070 = vor.u32 4788187, %v3069
    %v3071 = vand.u32 2147483647, %v3070
    %v3073 = vcvt.s32.f32 %v3066
    %v3074 = vmul.f32 %v3073, %v3071
    %v3075 = vxor.u32 %v3074, 2147483648
    %v3076 = vsel %vm2993, %v3075, %v3074
    %v3077 = vsub.s32 4, %v3053
    %v3078 = vsel %vm2993, %v3077, %v3053
    %v3079 = vsel %vm2992, %v384, %v3076
    %v3080 = vsel %vm2992, 0, %v3078
    %v3081 = vcosq.f32.pop %v3079
    %v3082 = vsinq.f32.pop %v3079
    %vm3083 = vweird.f32 %v384
    %v3084 = vadd.s32 %v3080, 3
    %v3085 = vand.u32 %v3084, 3
    %vm3086 = vcmp.lt.s32.totalorder %v3085, 2
    %vm3087 = vcmp.eq.s32.totalorder %v3085, 0
    %v3088 = vxor.u32 %v3082, 2147483648
    %v3089 = vsel %vm3087, %v3081, %v3088
    %vm3090 = vcmp.eq.s32.totalorder %v3085, 2
    %v3091 = vxor.u32 %v3081, 2147483648
    %v3092 = vsel %vm3090, %v3091, %v3082
    %v3093 = vsel %vm3086, %v3089, %v3092
    %v3094 = vsel %vm3083, nan, %v3093
    %v3095 = vand.u32 2147483647, %v385
    %vm3096 = vcmp.le.f32.partialorder %v3095, 0.7853982
    %vm3097 = vcmp.lt.s32.totalorder %v385, 0
    %v3098 = vand.u32 %v385, 2139095040
    %v3099 = vshrl.u32 %v3098, 23
    %v3100 = vsub.s32 %v3099, 127
    %v3101 = vand.u32 2147483647, %v385
    %v3102 = vand.u32 %v3101, 8388607
    %v3103 = vor.u32 %v3102, 8388608
    %v3104 = vsub.s32 0, %v3103
    %v3105 = vadd.s32 %v3100, 1
    %vm3106 = vcmp.gt.s32.totalorder %v3105, 0
    %v3107 = vsel %vm3106, %v3105, 0
    %v3108 = vshrl.u32 %v3107, 5
    %v3109 = vand.u32 %v3107, 31
    %v3110 = vsub.s32 32, %v3109
    %v3111 = vshrl.u32 683565275, %v3110
    %v3112 = vshll.u32 683565275, %v3109
    %v3113 = vshrl.u32 2475754826, %v3110
    %v3114 = vor.u32 %v3112, %v3113
    %v3115 = vshll.u32 2475754826, %v3109
    %v3116 = vshrl.u32 2131351028, %v3110
    %v3117 = vor.u32 %v3115, %v3116
    %v3118 = vshll.u32 2131351028, %v3109
    %v3119 = vshrl.u32 2102212464, %v3110
    %v3120 = vor.u32 %v3118, %v3119
    %v3121 = vshll.u32 2102212464, %v3109
    %v3122 = vshrl.u32 920167782, %v3110
    %v3123 = vor.u32 %v3121, %v3122
    %v3124 = vshll.u32 920167782, %v3109
    %v3125 = vshrl.u32 1326507024, %v3110
    %v3126 = vor.u32 %v3124, %v3125
    %vm3127 = vcmp.lt.s32.totalorder %v3108, 1
    %vm3128 = vcmp.lt.s32.totalorder %v3108, 2
    %vm3129 = vcmp.lt.s32.totalorder %v3108, 3
    %vm3130 = vcmp.lt.s32.totalorder %v3108, 4
    %v3131 = vsel %vm3127, %v3111, %v3114
    %v3132 = vsel %vm3130, %v3120, 2102212464
    %v3133 = vsel %vm3129, %v3117, %v3132
    %v3134 = vsel %vm3128, %v3131, %v3133
    %v3135 = vsel %vm3127, %v3114, %v3117
    %v3136 = vsel %vm3130, %v3123, 920167782
    %v3137 = vsel %vm3129, %v3120, %v3136
    %v3138 = vsel %vm3128, %v3135, %v3137
    %v3139 = vsel %vm3127, %v3117, %v3120
    %v3140 = vsel %vm3130, %v3126, 1326507024
    %v3141 = vsel %vm3129, %v3123, %v3140
    %v3142 = vsel %vm3128, %v3139, %v3141
    %v3143 = vshll.u32 %v3103, 8
    %v3144 = vmul.u32.u64.compose %v3143, %v3142
    %v3145 = vextract.low.u32 %v3144
    %v3146 = vextract.high.u32 %v3144
    %v3147 = vmul.u32.u64.compose %v3143, %v3138
    %v3148 = vextract.low.u32 %v3147
    %v3149 = vextract.high.u32 %v3147
    %v3150 = vmul.u32 %v3143, %v3134
    %v3151 = vadd.s32 %v3146, %v3148
    %vm3152 = vc.u32 %v3146, %v3148
    %v3153 = vadd.s32 %v3149, 1
    %v3154 = vsel %vm3152, %v3153, %v3149
    %v3155 = vadd.s32 %v3150, %v3154
    %v3156 = vadd.s32 %v3155, 536870912
    %v3157 = vshrl.u32 %v3156, 30
    %v3158 = vshll.u32 %v3157, 30
    %v3159 = vsub.s32 %v3155, %v3158
    %vm3160 = vcmp.lt.s32.totalorder %v3159, 0
    %v3161 = vsub.s32 0, %v3159
    %v3162 = vsel %vm3160, %v3161, %v3159
    %v3163 = vclz %v3162
    %v3164 = vsub.s32 %v3163, 2
    %vm3165 = vcmp.gt.s32.totalorder 0, %v3164
    %v3166 = vsel %vm3165, 0, %v3164
    %v3167 = vsub.s32 32, %v3166
    %v3168 = vshll.u32 %v3159, %v3166
    %v3169 = vshrl.u32 %v3151, %v3167
    %v3170 = vor.u32 %v3168, %v3169
    %v3171 = vsub.s32 4294967266, %v3166
    %v3172 = vadd.s32 %v3171, 127
    %v3173 = vshll.u32 %v3172, 23
    %v3174 = vor.u32 4788187, %v3173
    %v3175 = vand.u32 2147483647, %v3174
    %v3177 = vcvt.s32.f32 %v3170
    %v3178 = vmul.f32 %v3177, %v3175
    %v3179 = vxor.u32 %v3178, 2147483648
    %v3180 = vsel %vm3097, %v3179, %v3178
    %v3181 = vsub.s32 4, %v3157
    %v3182 = vsel %vm3097, %v3181, %v3157
    %v3183 = vsel %vm3096, %v385, %v3180
    %v3184 = vsel %vm3096, 0, %v3182
    %v3185 = vcosq.f32.pop %v3183
    %v3186 = vsinq.f32.pop %v3183
    %vm3187 = vweird.f32 %v385
    %v3188 = vadd.s32 %v3184, 3
    %v3189 = vand.u32 %v3188, 3
    %vm3190 = vcmp.lt.s32.totalorder %v3189, 2
    %vm3191 = vcmp.eq.s32.totalorder %v3189, 0
    %v3192 = vxor.u32 %v3186, 2147483648
    %v3193 = vsel %vm3191, %v3185, %v3192
    %vm3194 = vcmp.eq.s32.totalorder %v3189, 2
    %v3195 = vxor.u32 %v3185, 2147483648
    %v3196 = vsel %vm3194, %v3195, %v3186
    %v3197 = vsel %vm3190, %v3193, %v3196
    %v3198 = vsel %vm3187, nan, %v3197
    %v3199 = vand.u32 2147483647, %v386
    %vm3200 = vcmp.le.f32.partialorder %v3199, 0.7853982
    %vm3201 = vcmp.lt.s32.totalorder %v386, 0
    %v3202 = vand.u32 %v386, 2139095040
    %v3203 = vshrl.u32 %v3202, 23
    %v3204 = vsub.s32 %v3203, 127
    %v3205 = vand.u32 2147483647, %v386
    %v3206 = vand.u32 %v3205, 8388607
    %v3207 = vor.u32 %v3206, 8388608
    %v3208 = vsub.s32 0, %v3207
    %v3209 = vadd.s32 %v3204, 1
    %vm3210 = vcmp.gt.s32.totalorder %v3209, 0
    %v3211 = vsel %vm3210, %v3209, 0
    %v3212 = vshrl.u32 %v3211, 5
    %v3213 = vand.u32 %v3211, 31
    %v3214 = vsub.s32 32, %v3213
    %v3215 = vshrl.u32 683565275, %v3214
    %v3216 = vshll.u32 683565275, %v3213
    %v3217 = vshrl.u32 2475754826, %v3214
    %v3218 = vor.u32 %v3216, %v3217
    %v3219 = vshll.u32 2475754826, %v3213
    %v3220 = vshrl.u32 2131351028, %v3214
    %v3221 = vor.u32 %v3219, %v3220
    %v3222 = vshll.u32 2131351028, %v3213
    %v3223 = vshrl.u32 2102212464, %v3214
    %v3224 = vor.u32 %v3222, %v3223
    %v3225 = vshll.u32 2102212464, %v3213
    %v3226 = vshrl.u32 920167782, %v3214
    %v3227 = vor.u32 %v3225, %v3226
    %v3228 = vshll.u32 920167782, %v3213
    %v3229 = vshrl.u32 1326507024, %v3214
    %v3230 = vor.u32 %v3228, %v3229
    %vm3231 = vcmp.lt.s32.totalorder %v3212, 1
    %vm3232 = vcmp.lt.s32.totalorder %v3212, 2
    %vm3233 = vcmp.lt.s32.totalorder %v3212, 3
    %vm3234 = vcmp.lt.s32.totalorder %v3212, 4
    %v3235 = vsel %vm3231, %v3215, %v3218
    %v3236 = vsel %vm3234, %v3224, 2102212464
    %v3237 = vsel %vm3233, %v3221, %v3236
    %v3238 = vsel %vm3232, %v3235, %v3237
    %v3239 = vsel %vm3231, %v3218, %v3221
    %v3240 = vsel %vm3234, %v3227, 920167782
    %v3241 = vsel %vm3233, %v3224, %v3240
    %v3242 = vsel %vm3232, %v3239, %v3241
    %v3243 = vsel %vm3231, %v3221, %v3224
    %v3244 = vsel %vm3234, %v3230, 1326507024
    %v3245 = vsel %vm3233, %v3227, %v3244
    %v3246 = vsel %vm3232, %v3243, %v3245
    %v3247 = vshll.u32 %v3207, 8
    %v3248 = vmul.u32.u64.compose %v3247, %v3246
    %v3249 = vextract.low.u32 %v3248
    %v3250 = vextract.high.u32 %v3248
    %v3251 = vmul.u32.u64.compose %v3247, %v3242
    %v3252 = vextract.low.u32 %v3251
    %v3253 = vextract.high.u32 %v3251
    %v3254 = vmul.u32 %v3247, %v3238
    %v3255 = vadd.s32 %v3250, %v3252
    %vm3256 = vc.u32 %v3250, %v3252
    %v3257 = vadd.s32 %v3253, 1
    %v3258 = vsel %vm3256, %v3257, %v3253
    %v3259 = vadd.s32 %v3254, %v3258
    %v3260 = vadd.s32 %v3259, 536870912
    %v3261 = vshrl.u32 %v3260, 30
    %v3262 = vshll.u32 %v3261, 30
    %v3263 = vsub.s32 %v3259, %v3262
    %vm3264 = vcmp.lt.s32.totalorder %v3263, 0
    %v3265 = vsub.s32 0, %v3263
    %v3266 = vsel %vm3264, %v3265, %v3263
    %v3267 = vclz %v3266
    %v3268 = vsub.s32 %v3267, 2
    %vm3269 = vcmp.gt.s32.totalorder 0, %v3268
    %v3270 = vsel %vm3269, 0, %v3268
    %v3271 = vsub.s32 32, %v3270
    %v3272 = vshll.u32 %v3263, %v3270
    %v3273 = vshrl.u32 %v3255, %v3271
    %v3274 = vor.u32 %v3272, %v3273
    %v3275 = vsub.s32 4294967266, %v3270
    %v3276 = vadd.s32 %v3275, 127
    %v3277 = vshll.u32 %v3276, 23
    %v3278 = vor.u32 4788187, %v3277
    %v3279 = vand.u32 2147483647, %v3278
    %v3281 = vcvt.s32.f32 %v3274
    %v3282 = vmul.f32 %v3281, %v3279
    %v3283 = vxor.u32 %v3282, 2147483648
    %v3284 = vsel %vm3201, %v3283, %v3282
    %v3285 = vsub.s32 4, %v3261
    %v3286 = vsel %vm3201, %v3285, %v3261
    %v3287 = vsel %vm3200, %v386, %v3284
    %v3288 = vsel %vm3200, 0, %v3286
    %v3289 = vcosq.f32.pop %v3287
    %v3290 = vsinq.f32.pop %v3287
    %vm3291 = vweird.f32 %v386
    %v3292 = vadd.s32 %v3288, 3
    %v3293 = vand.u32 %v3292, 3
    %vm3294 = vcmp.lt.s32.totalorder %v3293, 2
    %vm3295 = vcmp.eq.s32.totalorder %v3293, 0
    %v3296 = vxor.u32 %v3290, 2147483648
    %v3297 = vsel %vm3295, %v3289, %v3296
    %vm3298 = vcmp.eq.s32.totalorder %v3293, 2
    %v3299 = vxor.u32 %v3289, 2147483648
    %v3300 = vsel %vm3298, %v3299, %v3290
    %v3301 = vsel %vm3294, %v3297, %v3300
    %v3302 = vsel %vm3291, nan, %v3301
    %v3303 = vand.u32 2147483647, %v387
    %vm3304 = vcmp.le.f32.partialorder %v3303, 0.7853982
    %vm3305 = vcmp.lt.s32.totalorder %v387, 0
    %v3306 = vand.u32 %v387, 2139095040
    %v3307 = vshrl.u32 %v3306, 23
    %v3308 = vsub.s32 %v3307, 127
    %v3309 = vand.u32 2147483647, %v387
    %v3310 = vand.u32 %v3309, 8388607
    %v3311 = vor.u32 %v3310, 8388608
    %v3312 = vsub.s32 0, %v3311
    %v3313 = vadd.s32 %v3308, 1
    %vm3314 = vcmp.gt.s32.totalorder %v3313, 0
    %v3315 = vsel %vm3314, %v3313, 0
    %v3316 = vshrl.u32 %v3315, 5
    %v3317 = vand.u32 %v3315, 31
    %v3318 = vsub.s32 32, %v3317
    %v3319 = vshrl.u32 683565275, %v3318
    %v3320 = vshll.u32 683565275, %v3317
    %v3321 = vshrl.u32 2475754826, %v3318
    %v3322 = vor.u32 %v3320, %v3321
    %v3323 = vshll.u32 2475754826, %v3317
    %v3324 = vshrl.u32 2131351028, %v3318
    %v3325 = vor.u32 %v3323, %v3324
    %v3326 = vshll.u32 2131351028, %v3317
    %v3327 = vshrl.u32 2102212464, %v3318
    %v3328 = vor.u32 %v3326, %v3327
    %v3329 = vshll.u32 2102212464, %v3317
    %v3330 = vshrl.u32 920167782, %v3318
    %v3331 = vor.u32 %v3329, %v3330
    %v3332 = vshll.u32 920167782, %v3317
    %v3333 = vshrl.u32 1326507024, %v3318
    %v3334 = vor.u32 %v3332, %v3333
    %vm3335 = vcmp.lt.s32.totalorder %v3316, 1
    %vm3336 = vcmp.lt.s32.totalorder %v3316, 2
    %vm3337 = vcmp.lt.s32.totalorder %v3316, 3
    %vm3338 = vcmp.lt.s32.totalorder %v3316, 4
    %v3339 = vsel %vm3335, %v3319, %v3322
    %v3340 = vsel %vm3338, %v3328, 2102212464
    %v3341 = vsel %vm3337, %v3325, %v3340
    %v3342 = vsel %vm3336, %v3339, %v3341
    %v3343 = vsel %vm3335, %v3322, %v3325
    %v3344 = vsel %vm3338, %v3331, 920167782
    %v3345 = vsel %vm3337, %v3328, %v3344
    %v3346 = vsel %vm3336, %v3343, %v3345
    %v3347 = vsel %vm3335, %v3325, %v3328
    %v3348 = vsel %vm3338, %v3334, 1326507024
    %v3349 = vsel %vm3337, %v3331, %v3348
    %v3350 = vsel %vm3336, %v3347, %v3349
    %v3351 = vshll.u32 %v3311, 8
    %v3352 = vmul.u32.u64.compose %v3351, %v3350
    %v3353 = vextract.low.u32 %v3352
    %v3354 = vextract.high.u32 %v3352
    %v3355 = vmul.u32.u64.compose %v3351, %v3346
    %v3356 = vextract.low.u32 %v3355
    %v3357 = vextract.high.u32 %v3355
    %v3358 = vmul.u32 %v3351, %v3342
    %v3359 = vadd.s32 %v3354, %v3356
    %vm3360 = vc.u32 %v3354, %v3356
    %v3361 = vadd.s32 %v3357, 1
    %v3362 = vsel %vm3360, %v3361, %v3357
    %v3363 = vadd.s32 %v3358, %v3362
    %v3364 = vadd.s32 %v3363, 536870912
    %v3365 = vshrl.u32 %v3364, 30
    %v3366 = vshll.u32 %v3365, 30
    %v3367 = vsub.s32 %v3363, %v3366
    %vm3368 = vcmp.lt.s32.totalorder %v3367, 0
    %v3369 = vsub.s32 0, %v3367
    %v3370 = vsel %vm3368, %v3369, %v3367
    %v3371 = vclz %v3370
    %v3372 = vsub.s32 %v3371, 2
    %vm3373 = vcmp.gt.s32.totalorder 0, %v3372
    %v3374 = vsel %vm3373, 0, %v3372
    %v3375 = vsub.s32 32, %v3374
    %v3376 = vshll.u32 %v3367, %v3374
    %v3377 = vshrl.u32 %v3359, %v3375
    %v3378 = vor.u32 %v3376, %v3377
    %v3379 = vsub.s32 4294967266, %v3374
    %v3380 = vadd.s32 %v3379, 127
    %v3381 = vshll.u32 %v3380, 23
    %v3382 = vor.u32 4788187, %v3381
    %v3383 = vand.u32 2147483647, %v3382
    %v3385 = vcvt.s32.f32 %v3378
    %v3386 = vmul.f32 %v3385, %v3383
    %v3387 = vxor.u32 %v3386, 2147483648
    %v3388 = vsel %vm3305, %v3387, %v3386
    %v3389 = vsub.s32 4, %v3365
    %v3390 = vsel %vm3305, %v3389, %v3365
    %v3391 = vsel %vm3304, %v387, %v3388
    %v3392 = vsel %vm3304, 0, %v3390
    %v3393 = vcosq.f32.pop %v3391
    %v3394 = vsinq.f32.pop %v3391
    %vm3395 = vweird.f32 %v387
    %v3396 = vadd.s32 %v3392, 3
    %v3397 = vand.u32 %v3396, 3
    %vm3398 = vcmp.lt.s32.totalorder %v3397, 2
    %vm3399 = vcmp.eq.s32.totalorder %v3397, 0
    %v3400 = vxor.u32 %v3394, 2147483648
    %v3401 = vsel %vm3399, %v3393, %v3400
    %vm3402 = vcmp.eq.s32.totalorder %v3397, 2
    %v3403 = vxor.u32 %v3393, 2147483648
    %v3404 = vsel %vm3402, %v3403, %v3394
    %v3405 = vsel %vm3398, %v3401, %v3404
    %v3406 = vsel %vm3395, nan, %v3405
    %v3407 = vand.u32 2147483647, %v388
    %vm3408 = vcmp.le.f32.partialorder %v3407, 0.7853982
    %vm3409 = vcmp.lt.s32.totalorder %v388, 0
    %v3410 = vand.u32 %v388, 2139095040
    %v3411 = vshrl.u32 %v3410, 23
    %v3412 = vsub.s32 %v3411, 127
    %v3413 = vand.u32 2147483647, %v388
    %v3414 = vand.u32 %v3413, 8388607
    %v3415 = vor.u32 %v3414, 8388608
    %v3416 = vsub.s32 0, %v3415
    %v3417 = vadd.s32 %v3412, 1
    %vm3418 = vcmp.gt.s32.totalorder %v3417, 0
    %v3419 = vsel %vm3418, %v3417, 0
    %v3420 = vshrl.u32 %v3419, 5
    %v3421 = vand.u32 %v3419, 31
    %v3422 = vsub.s32 32, %v3421
    %v3423 = vshrl.u32 683565275, %v3422
    %v3424 = vshll.u32 683565275, %v3421
    %v3425 = vshrl.u32 2475754826, %v3422
    %v3426 = vor.u32 %v3424, %v3425
    %v3427 = vshll.u32 2475754826, %v3421
    %v3428 = vshrl.u32 2131351028, %v3422
    %v3429 = vor.u32 %v3427, %v3428
    %v3430 = vshll.u32 2131351028, %v3421
    %v3431 = vshrl.u32 2102212464, %v3422
    %v3432 = vor.u32 %v3430, %v3431
    %v3433 = vshll.u32 2102212464, %v3421
    %v3434 = vshrl.u32 920167782, %v3422
    %v3435 = vor.u32 %v3433, %v3434
    %v3436 = vshll.u32 920167782, %v3421
    %v3437 = vshrl.u32 1326507024, %v3422
    %v3438 = vor.u32 %v3436, %v3437
    %vm3439 = vcmp.lt.s32.totalorder %v3420, 1
    %vm3440 = vcmp.lt.s32.totalorder %v3420, 2
    %vm3441 = vcmp.lt.s32.totalorder %v3420, 3
    %vm3442 = vcmp.lt.s32.totalorder %v3420, 4
    %v3443 = vsel %vm3439, %v3423, %v3426
    %v3444 = vsel %vm3442, %v3432, 2102212464
    %v3445 = vsel %vm3441, %v3429, %v3444
    %v3446 = vsel %vm3440, %v3443, %v3445
    %v3447 = vsel %vm3439, %v3426, %v3429
    %v3448 = vsel %vm3442, %v3435, 920167782
    %v3449 = vsel %vm3441, %v3432, %v3448
    %v3450 = vsel %vm3440, %v3447, %v3449
    %v3451 = vsel %vm3439, %v3429, %v3432
    %v3452 = vsel %vm3442, %v3438, 1326507024
    %v3453 = vsel %vm3441, %v3435, %v3452
    %v3454 = vsel %vm3440, %v3451, %v3453
    %v3455 = vshll.u32 %v3415, 8
    %v3456 = vmul.u32.u64.compose %v3455, %v3454
    %v3457 = vextract.low.u32 %v3456
    %v3458 = vextract.high.u32 %v3456
    %v3459 = vmul.u32.u64.compose %v3455, %v3450
    %v3460 = vextract.low.u32 %v3459
    %v3461 = vextract.high.u32 %v3459
    %v3462 = vmul.u32 %v3455, %v3446
    %v3463 = vadd.s32 %v3458, %v3460
    %vm3464 = vc.u32 %v3458, %v3460
    %v3465 = vadd.s32 %v3461, 1
    %v3466 = vsel %vm3464, %v3465, %v3461
    %v3467 = vadd.s32 %v3462, %v3466
    %v3468 = vadd.s32 %v3467, 536870912
    %v3469 = vshrl.u32 %v3468, 30
    %v3470 = vshll.u32 %v3469, 30
    %v3471 = vsub.s32 %v3467, %v3470
    %vm3472 = vcmp.lt.s32.totalorder %v3471, 0
    %v3473 = vsub.s32 0, %v3471
    %v3474 = vsel %vm3472, %v3473, %v3471
    %v3475 = vclz %v3474
    %v3476 = vsub.s32 %v3475, 2
    %vm3477 = vcmp.gt.s32.totalorder 0, %v3476
    %v3478 = vsel %vm3477, 0, %v3476
    %v3479 = vsub.s32 32, %v3478
    %v3480 = vshll.u32 %v3471, %v3478
    %v3481 = vshrl.u32 %v3463, %v3479
    %v3482 = vor.u32 %v3480, %v3481
    %v3483 = vsub.s32 4294967266, %v3478
    %v3484 = vadd.s32 %v3483, 127
    %v3485 = vshll.u32 %v3484, 23
    %v3486 = vor.u32 4788187, %v3485
    %v3487 = vand.u32 2147483647, %v3486
    %v3489 = vcvt.s32.f32 %v3482
    %v3490 = vmul.f32 %v3489, %v3487
    %v3491 = vxor.u32 %v3490, 2147483648
    %v3492 = vsel %vm3409, %v3491, %v3490
    %v3493 = vsub.s32 4, %v3469
    %v3494 = vsel %vm3409, %v3493, %v3469
    %v3495 = vsel %vm3408, %v388, %v3492
    %v3496 = vsel %vm3408, 0, %v3494
    %v3497 = vcosq.f32.pop %v3495
    %v3498 = vsinq.f32.pop %v3495
    %vm3499 = vweird.f32 %v388
    %v3500 = vadd.s32 %v3496, 3
    %v3501 = vand.u32 %v3500, 3
    %vm3502 = vcmp.lt.s32.totalorder %v3501, 2
    %vm3503 = vcmp.eq.s32.totalorder %v3501, 0
    %v3504 = vxor.u32 %v3498, 2147483648
    %v3505 = vsel %vm3503, %v3497, %v3504
    %vm3506 = vcmp.eq.s32.totalorder %v3501, 2
    %v3507 = vxor.u32 %v3497, 2147483648
    %v3508 = vsel %vm3506, %v3507, %v3498
    %v3509 = vsel %vm3502, %v3505, %v3508
    %v3510 = vsel %vm3499, nan, %v3509
    %v3511 = vand.u32 2147483647, %v389
    %vm3512 = vcmp.le.f32.partialorder %v3511, 0.7853982
    %vm3513 = vcmp.lt.s32.totalorder %v389, 0
    %v3514 = vand.u32 %v389, 2139095040
    %v3515 = vshrl.u32 %v3514, 23
    %v3516 = vsub.s32 %v3515, 127
    %v3517 = vand.u32 2147483647, %v389
    %v3518 = vand.u32 %v3517, 8388607
    %v3519 = vor.u32 %v3518, 8388608
    %v3520 = vsub.s32 0, %v3519
    %v3521 = vadd.s32 %v3516, 1
    %vm3522 = vcmp.gt.s32.totalorder %v3521, 0
    %v3523 = vsel %vm3522, %v3521, 0
    %v3524 = vshrl.u32 %v3523, 5
    %v3525 = vand.u32 %v3523, 31
    %v3526 = vsub.s32 32, %v3525
    %v3527 = vshrl.u32 683565275, %v3526
    %v3528 = vshll.u32 683565275, %v3525
    %v3529 = vshrl.u32 2475754826, %v3526
    %v3530 = vor.u32 %v3528, %v3529
    %v3531 = vshll.u32 2475754826, %v3525
    %v3532 = vshrl.u32 2131351028, %v3526
    %v3533 = vor.u32 %v3531, %v3532
    %v3534 = vshll.u32 2131351028, %v3525
    %v3535 = vshrl.u32 2102212464, %v3526
    %v3536 = vor.u32 %v3534, %v3535
    %v3537 = vshll.u32 2102212464, %v3525
    %v3538 = vshrl.u32 920167782, %v3526
    %v3539 = vor.u32 %v3537, %v3538
    %v3540 = vshll.u32 920167782, %v3525
    %v3541 = vshrl.u32 1326507024, %v3526
    %v3542 = vor.u32 %v3540, %v3541
    %vm3543 = vcmp.lt.s32.totalorder %v3524, 1
    %vm3544 = vcmp.lt.s32.totalorder %v3524, 2
    %vm3545 = vcmp.lt.s32.totalorder %v3524, 3
    %vm3546 = vcmp.lt.s32.totalorder %v3524, 4
    %v3547 = vsel %vm3543, %v3527, %v3530
    %v3548 = vsel %vm3546, %v3536, 2102212464
    %v3549 = vsel %vm3545, %v3533, %v3548
    %v3550 = vsel %vm3544, %v3547, %v3549
    %v3551 = vsel %vm3543, %v3530, %v3533
    %v3552 = vsel %vm3546, %v3539, 920167782
    %v3553 = vsel %vm3545, %v3536, %v3552
    %v3554 = vsel %vm3544, %v3551, %v3553
    %v3555 = vsel %vm3543, %v3533, %v3536
    %v3556 = vsel %vm3546, %v3542, 1326507024
    %v3557 = vsel %vm3545, %v3539, %v3556
    %v3558 = vsel %vm3544, %v3555, %v3557
    %v3559 = vshll.u32 %v3519, 8
    %v3560 = vmul.u32.u64.compose %v3559, %v3558
    %v3561 = vextract.low.u32 %v3560
    %v3562 = vextract.high.u32 %v3560
    %v3563 = vmul.u32.u64.compose %v3559, %v3554
    %v3564 = vextract.low.u32 %v3563
    %v3565 = vextract.high.u32 %v3563
    %v3566 = vmul.u32 %v3559, %v3550
    %v3567 = vadd.s32 %v3562, %v3564
    %vm3568 = vc.u32 %v3562, %v3564
    %v3569 = vadd.s32 %v3565, 1
    %v3570 = vsel %vm3568, %v3569, %v3565
    %v3571 = vadd.s32 %v3566, %v3570
    %v3572 = vadd.s32 %v3571, 536870912
    %v3573 = vshrl.u32 %v3572, 30
    %v3574 = vshll.u32 %v3573, 30
    %v3575 = vsub.s32 %v3571, %v3574
    %vm3576 = vcmp.lt.s32.totalorder %v3575, 0
    %v3577 = vsub.s32 0, %v3575
    %v3578 = vsel %vm3576, %v3577, %v3575
    %v3579 = vclz %v3578
    %v3580 = vsub.s32 %v3579, 2
    %vm3581 = vcmp.gt.s32.totalorder 0, %v3580
    %v3582 = vsel %vm3581, 0, %v3580
    %v3583 = vsub.s32 32, %v3582
    %v3584 = vshll.u32 %v3575, %v3582
    %v3585 = vshrl.u32 %v3567, %v3583
    %v3586 = vor.u32 %v3584, %v3585
    %v3587 = vsub.s32 4294967266, %v3582
    %v3588 = vadd.s32 %v3587, 127
    %v3589 = vshll.u32 %v3588, 23
    %v3590 = vor.u32 4788187, %v3589
    %v3591 = vand.u32 2147483647, %v3590
    %v3593 = vcvt.s32.f32 %v3586
    %v3594 = vmul.f32 %v3593, %v3591
    %v3595 = vxor.u32 %v3594, 2147483648
    %v3596 = vsel %vm3513, %v3595, %v3594
    %v3597 = vsub.s32 4, %v3573
    %v3598 = vsel %vm3513, %v3597, %v3573
    %v3599 = vsel %vm3512, %v389, %v3596
    %v3600 = vsel %vm3512, 0, %v3598
    %v3601 = vcosq.f32.pop %v3599
    %v3602 = vsinq.f32.pop %v3599
    %vm3603 = vweird.f32 %v389
    %v3604 = vadd.s32 %v3600, 3
    %v3605 = vand.u32 %v3604, 3
    %vm3606 = vcmp.lt.s32.totalorder %v3605, 2
    %vm3607 = vcmp.eq.s32.totalorder %v3605, 0
    %v3608 = vxor.u32 %v3602, 2147483648
    %v3609 = vsel %vm3607, %v3601, %v3608
    %vm3610 = vcmp.eq.s32.totalorder %v3605, 2
    %v3611 = vxor.u32 %v3601, 2147483648
    %v3612 = vsel %vm3610, %v3611, %v3602
    %v3613 = vsel %vm3606, %v3609, %v3612
    %v3614 = vsel %vm3603, nan, %v3613
    %v3615 = vand.u32 2147483647, %v390
    %vm3616 = vcmp.le.f32.partialorder %v3615, 0.7853982
    %vm3617 = vcmp.lt.s32.totalorder %v390, 0
    %v3618 = vand.u32 %v390, 2139095040
    %v3619 = vshrl.u32 %v3618, 23
    %v3620 = vsub.s32 %v3619, 127
    %v3621 = vand.u32 2147483647, %v390
    %v3622 = vand.u32 %v3621, 8388607
    %v3623 = vor.u32 %v3622, 8388608
    %v3624 = vsub.s32 0, %v3623
    %v3625 = vadd.s32 %v3620, 1
    %vm3626 = vcmp.gt.s32.totalorder %v3625, 0
    %v3627 = vsel %vm3626, %v3625, 0
    %v3628 = vshrl.u32 %v3627, 5
    %v3629 = vand.u32 %v3627, 31
    %v3630 = vsub.s32 32, %v3629
    %v3631 = vshrl.u32 683565275, %v3630
    %v3632 = vshll.u32 683565275, %v3629
    %v3633 = vshrl.u32 2475754826, %v3630
    %v3634 = vor.u32 %v3632, %v3633
    %v3635 = vshll.u32 2475754826, %v3629
    %v3636 = vshrl.u32 2131351028, %v3630
    %v3637 = vor.u32 %v3635, %v3636
    %v3638 = vshll.u32 2131351028, %v3629
    %v3639 = vshrl.u32 2102212464, %v3630
    %v3640 = vor.u32 %v3638, %v3639
    %v3641 = vshll.u32 2102212464, %v3629
    %v3642 = vshrl.u32 920167782, %v3630
    %v3643 = vor.u32 %v3641, %v3642
    %v3644 = vshll.u32 920167782, %v3629
    %v3645 = vshrl.u32 1326507024, %v3630
    %v3646 = vor.u32 %v3644, %v3645
    %vm3647 = vcmp.lt.s32.totalorder %v3628, 1
    %vm3648 = vcmp.lt.s32.totalorder %v3628, 2
    %vm3649 = vcmp.lt.s32.totalorder %v3628, 3
    %vm3650 = vcmp.lt.s32.totalorder %v3628, 4
    %v3651 = vsel %vm3647, %v3631, %v3634
    %v3652 = vsel %vm3650, %v3640, 2102212464
    %v3653 = vsel %vm3649, %v3637, %v3652
    %v3654 = vsel %vm3648, %v3651, %v3653
    %v3655 = vsel %vm3647, %v3634, %v3637
    %v3656 = vsel %vm3650, %v3643, 920167782
    %v3657 = vsel %vm3649, %v3640, %v3656
    %v3658 = vsel %vm3648, %v3655, %v3657
    %v3659 = vsel %vm3647, %v3637, %v3640
    %v3660 = vsel %vm3650, %v3646, 1326507024
    %v3661 = vsel %vm3649, %v3643, %v3660
    %v3662 = vsel %vm3648, %v3659, %v3661
    %v3663 = vshll.u32 %v3623, 8
    %v3664 = vmul.u32.u64.compose %v3663, %v3662
    %v3665 = vextract.low.u32 %v3664
    %v3666 = vextract.high.u32 %v3664
    %v3667 = vmul.u32.u64.compose %v3663, %v3658
    %v3668 = vextract.low.u32 %v3667
    %v3669 = vextract.high.u32 %v3667
    %v3670 = vmul.u32 %v3663, %v3654
    %v3671 = vadd.s32 %v3666, %v3668
    %vm3672 = vc.u32 %v3666, %v3668
    %v3673 = vadd.s32 %v3669, 1
    %v3674 = vsel %vm3672, %v3673, %v3669
    %v3675 = vadd.s32 %v3670, %v3674
    %v3676 = vadd.s32 %v3675, 536870912
    %v3677 = vshrl.u32 %v3676, 30
    %v3678 = vshll.u32 %v3677, 30
    %v3679 = vsub.s32 %v3675, %v3678
    %vm3680 = vcmp.lt.s32.totalorder %v3679, 0
    %v3681 = vsub.s32 0, %v3679
    %v3682 = vsel %vm3680, %v3681, %v3679
    %v3683 = vclz %v3682
    %v3684 = vsub.s32 %v3683, 2
    %vm3685 = vcmp.gt.s32.totalorder 0, %v3684
    %v3686 = vsel %vm3685, 0, %v3684
    %v3687 = vsub.s32 32, %v3686
    %v3688 = vshll.u32 %v3679, %v3686
    %v3689 = vshrl.u32 %v3671, %v3687
    %v3690 = vor.u32 %v3688, %v3689
    %v3691 = vsub.s32 4294967266, %v3686
    %v3692 = vadd.s32 %v3691, 127
    %v3693 = vshll.u32 %v3692, 23
    %v3694 = vor.u32 4788187, %v3693
    %v3695 = vand.u32 2147483647, %v3694
    %v3697 = vcvt.s32.f32 %v3690
    %v3698 = vmul.f32 %v3697, %v3695
    %v3699 = vxor.u32 %v3698, 2147483648
    %v3700 = vsel %vm3617, %v3699, %v3698
    %v3701 = vsub.s32 4, %v3677
    %v3702 = vsel %vm3617, %v3701, %v3677
    %v3703 = vsel %vm3616, %v390, %v3700
    %v3704 = vsel %vm3616, 0, %v3702
    %v3705 = vcosq.f32.pop %v3703
    %v3706 = vsinq.f32.pop %v3703
    %vm3707 = vweird.f32 %v390
    %v3708 = vadd.s32 %v3704, 3
    %v3709 = vand.u32 %v3708, 3
    %vm3710 = vcmp.lt.s32.totalorder %v3709, 2
    %vm3711 = vcmp.eq.s32.totalorder %v3709, 0
    %v3712 = vxor.u32 %v3706, 2147483648
    %v3713 = vsel %vm3711, %v3705, %v3712
    %vm3714 = vcmp.eq.s32.totalorder %v3709, 2
    %v3715 = vxor.u32 %v3705, 2147483648
    %v3716 = vsel %vm3714, %v3715, %v3706
    %v3717 = vsel %vm3710, %v3713, %v3716
    %v3718 = vsel %vm3707, nan, %v3717
    %3719 = vst [vmem:[#allocation2] sm:$0xff] %v494
    %3720 = vst [vmem:[#allocation2 + $0x8] sm:$0xff] %v598
    %3721 = vst [vmem:[#allocation2 + $0x10] sm:$0xff] %v702
    %3722 = vst [vmem:[#allocation2 + $0x18] sm:$0xff] %v806
    %3723 = vst [vmem:[#allocation2 + $0x20] sm:$0xff] %v910
    %3724 = vst [vmem:[#allocation2 + $0x28] sm:$0xff] %v1014
    %3725 = vst [vmem:[#allocation2 + $0x30] sm:$0xff] %v1118
    %3726 = vst [vmem:[#allocation2 + $0x38] sm:$0xff] %v1222
    %3727 = vst [vmem:[#allocation2 + $0x40] sm:$0xff] %v1326
    %3728 = vst [vmem:[#allocation2 + $0x48] sm:$0xff] %v1430
    %3729 = vst [vmem:[#allocation2 + $0x50] sm:$0xff] %v1534
    %3730 = vst [vmem:[#allocation2 + $0x58] sm:$0xff] %v1638
    %3731 = vst [vmem:[#allocation2 + $0x60] sm:$0xff] %v1742
    %3732 = vst [vmem:[#allocation2 + $0x68] sm:$0xff] %v1846
    %3733 = vst [vmem:[#allocation2 + $0x70] sm:$0xff] %v1950
    %3734 = vst [vmem:[#allocation2 + $0x78] sm:$0xff] %v2054
    %3735 = vst [vmem:[#allocation2 + $0x80] sm:$0xff] %v2158
    %3736 = vst [vmem:[#allocation2 + $0x88] sm:$0xff] %v2262
    %3737 = vst [vmem:[#allocation2 + $0x90] sm:$0xff] %v2366
    %3738 = vst [vmem:[#allocation2 + $0x98] sm:$0xff] %v2470
    %3739 = vst [vmem:[#allocation2 + $0xa0] sm:$0xff] %v2574
    %3740 = vst [vmem:[#allocation2 + $0xa8] sm:$0xff] %v2678
    %3741 = vst [vmem:[#allocation2 + $0xb0] sm:$0xff] %v2782
    %3742 = vst [vmem:[#allocation2 + $0xb8] sm:$0xff] %v2886
    %3743 = vst [vmem:[#allocation2 + $0xc0] sm:$0xff] %v2990
    %3744 = vst [vmem:[#allocation2 + $0xc8] sm:$0xff] %v3094
    %3745 = vst [vmem:[#allocation2 + $0xd0] sm:$0xff] %v3198
    %3746 = vst [vmem:[#allocation2 + $0xd8] sm:$0xff] %v3302
    %3747 = vst [vmem:[#allocation2 + $0xe0] sm:$0xff] %v3406
    %3748 = vst [vmem:[#allocation2 + $0xe8] sm:$0xff] %v3510
    %3749 = vst [vmem:[#allocation2 + $0xf0] sm:$0xff] %v3614
    %3750 = vst [vmem:[#allocation2 + $0xf8] sm:$0xff] %v3718
    // Predicated region
    $region14: #{tpu_custom_call.1} parent=1 // pred_check
      _
    $region15: #{tpu_custom_call.1} parent=1 // pred_check_branch
      %3752 = sbr.rel (0) target = $region17
    $region16: #{tpu_custom_call.1} parent=1 // pred_region
      %s3754 = ssub.s32 4096, 4096
      %3755 = vsyncadd [#allocation3], %s3754
      %s3756 = sshll.u32 [#allocation2], 4
      %s3757 = int_to_ptr.vmem [resolvable:$true] %s3756
      %3762 = dma.vmem_to_hbm [thread:$0]  %s3757, 4096, %s3, [#allocation3], 256, 256, 16
    $region17: #{tpu_custom_call.1} parent=1 // pred_fallthru
      _
    // Predicated region
    $region18: #{tpu_custom_call.1} parent=1 // pred_check
      _
    $region19: #{tpu_custom_call.1} parent=1 // pred_check_branch
      %3764 = sbr.rel (0) target = $region21
    $region20: #{tpu_custom_call.1} parent=1 // pred_region
      %3765 = dma.done [#allocation3], 4096
    $region21: #{tpu_custom_call.1} parent=1 // pred_fallthru
      _
    %3766 = vsyncpa [#allocation3], 1

</llo_original>
